<compile_context>
chip_gen: v7x
topology: tpu7x:2x2x1
jax: 0.10.0
libtpu: 0.0.40
codegen_flags: <defaults>
</compile_context>

<pallas_src>
import jax
import jax.numpy as jnp
from jax import lax
from jax.experimental import pallas as pl
from jax.experimental.pallas import tpu as pltpu


def _round_up(x, m):
    return ((x + m - 1) // m) * m


def _make_encoder_kernel(seq, bpad, hid, vocab, n_layers):
    """Build the fused encoder kernel. All shapes static; loops fully unrolled.

    Ref layout (positional):
      refs[0]                : src ids  [seq*bpad, 1] int32
      refs[1+3l : 4+3l]      : (w_in_l, w_hh_l, bias_l) for layer l
                               layer 0's w_in is the fused token table
                               t0 = E @ W_ih0^T  -> [vocab, 4*hid]
                               layers >0: W_ih^T -> [hid, 4*hid]
      refs[1+3L], refs[2+3L] : hidden / cell outputs  [n_layers, bpad, hid]
      refs[3+3L:]            : scratch (xproj, y, h, c)
    """

    def kernel(*refs):
        src_ref = refs[0]
        layer_refs = [refs[1 + 3 * l: 1 + 3 * (l + 1)] for l in range(n_layers)]
        h_out_ref = refs[1 + 3 * n_layers]
        c_out_ref = refs[2 + 3 * n_layers]
        xproj_sc, y_sc, h_sc, c_sc = refs[3 + 3 * n_layers:]

        # ---- Layer 0: input projection hoisted out of the recurrence. ----
        # Embedding is folded into the projection table, so "embed + project"
        # is a single one-hot row-select matmul on the MXU.
        t0_ref, _, b0_ref = layer_refs[0]
        ids = src_ref[...]                                               # [S*Bp, 1]
        iota = lax.broadcasted_iota(jnp.int32, (seq * bpad, vocab), 1)   # [S*Bp, V]
        onehot = (ids == iota).astype(jnp.float32)
        xproj_sc[...] = (
            jnp.dot(onehot, t0_ref[...], preferred_element_type=jnp.float32)
            + b0_ref[...])                                               # [S*Bp, 4H]

        for layer in range(n_layers):
            _, whh_ref, _ = layer_refs[layer]
            whh = whh_ref[...]                           # [H, 4H], loaded once per layer
            h_sc[...] = jnp.zeros_like(h_sc)
            c_sc[...] = jnp.zeros_like(c_sc)

            # Statically unrolled recurrence; only h @ W_hh is on the serial path.
            for t in range(seq):
                row = t * bpad                           # multiple of 8 -> aligned slices
                gates = xproj_sc[row:row + bpad, :] + jnp.dot(
                    h_sc[...], whh, preferred_element_type=jnp.float32)  # [Bp, 4H]
                i = jax.nn.sigmoid(gates[:, 0 * hid:1 * hid])
                f = jax.nn.sigmoid(gates[:, 1 * hid:2 * hid])
                g = jnp.tanh(gates[:, 2 * hid:3 * hid])
                o = jax.nn.sigmoid(gates[:, 3 * hid:4 * hid])
                c_new = f * c_sc[...] + i * g
                h_new = o * jnp.tanh(c_new)
                c_sc[...] = c_new
                h_sc[...] = h_new
                if layer + 1 < n_layers:
                    y_sc[row:row + bpad, :] = h_new      # stays resident in VMEM

            h_out_ref[layer] = h_sc[...]
            c_out_ref[layer] = c_sc[...]

            # Hoisted (bias-folded) input projection for the next layer: one
            # [S*Bp, H] x [H, 4H] MXU matmul, off the serial recurrence.
            # (Inter-layer dropout is identity in eval mode.)
            if layer + 1 < n_layers:
                wih_n_ref, _, b_n_ref = layer_refs[layer + 1]
                xproj_sc[...] = (
                    jnp.dot(y_sc[...], wih_n_ref[...],
                            preferred_element_type=jnp.float32)
                    + b_n_ref[...])

    return kernel


class EncoderParams:
    """Deterministic parameter initialization mirroring the PyTorch module shapes."""

    def __init__(self, key, input_dim, emb_dim, hid_dim, n_layers):
        self.input_dim = input_dim
        self.emb_dim = emb_dim
        self.hid_dim = hid_dim
        self.n_layers = n_layers

        k_emb, key = jax.random.split(key)
        self.embedding = jax.random.normal(k_emb, (input_dim, emb_dim), jnp.float32) * 0.1

        self.layers = []
        for layer in range(n_layers):
            in_size = emb_dim if layer == 0 else hid_dim
            bound = 1.0 / jnp.sqrt(hid_dim)
            k1, k2, k3, k4, key = jax.random.split(key, 5)
            w_ih = jax.random.uniform(k1, (4 * hid_dim, in_size), jnp.float32, -bound, bound)
            w_hh = jax.random.uniform(k2, (4 * hid_dim, hid_dim), jnp.float32, -bound, bound)
            b_ih = jax.random.uniform(k3, (4 * hid_dim,), jnp.float32, -bound, bound)
            b_hh = jax.random.uniform(k4, (4 * hid_dim,), jnp.float32, -bound, bound)
            self.layers.append(dict(
                w_ih_t=w_ih.T,                               # [in_size, 4*hid]
                w_hh_t=w_hh.T,                               # [hid, 4*hid]
                bias=(b_ih + b_hh).reshape(1, 4 * hid_dim),  # [1, 4*hid]
            ))

        # One-time weight prep: fold embedding into layer-0's input projection,
        # so the kernel does embed+project as a single one-hot MXU matmul.
        self.tok_proj = jnp.dot(self.embedding, self.layers[0]["w_ih_t"])  # [vocab, 4*hid]


def encoder_forward(params: EncoderParams, src):
    """src: [seq_len, batch] int32 ids -> (hidden, cell), each [n_layers, batch, hid]."""
    seq, batch = src.shape
    hid = params.hid_dim
    n_layers = params.n_layers
    vocab = params.input_dim

    # Pad batch to a full f32 sublane group (8): aligned per-step tiles, no
    # change to the real rows (rows are independent throughout the LSTM math).
    bpad = max(8, _round_up(batch, 8))
    src_p = src.astype(jnp.int32)
    if bpad != batch:
        src_p = jnp.concatenate(
            [src_p, jnp.zeros((seq, bpad - batch), jnp.int32)], axis=1)
    src_flat = src_p.reshape(seq * bpad, 1)

    inputs = [src_flat]
    for l in range(n_layers):
        layer = params.layers[l]
        w_in = params.tok_proj if l == 0 else layer["w_ih_t"]
        inputs += [w_in, layer["w_hh_t"], layer["bias"]]

    kernel = _make_encoder_kernel(seq, bpad, hid, vocab, n_layers)

    out_shapes = (
        jax.ShapeDtypeStruct((n_layers, bpad, hid), jnp.float32),   # hidden
        jax.ShapeDtypeStruct((n_layers, bpad, hid), jnp.float32),   # cell
    )
    hidden_p, cell_p = pl.pallas_call(
        kernel,
        out_shape=out_shapes,
        grid_spec=pltpu.PrefetchScalarGridSpec(
            num_scalar_prefetch=0,
            grid=(),
            in_specs=[pl.BlockSpec(memory_space=pltpu.VMEM)] * len(inputs),
            out_specs=[pl.BlockSpec(memory_space=pltpu.VMEM)] * 2,
            scratch_shapes=[
                pltpu.VMEM((seq * bpad, 4 * hid), jnp.float32),  # hoisted x-projection
                pltpu.VMEM((seq * bpad, hid), jnp.float32),      # inter-layer activations
                pltpu.VMEM((bpad, hid), jnp.float32),            # running h state
                pltpu.VMEM((bpad, hid), jnp.float32),            # running c state
            ],
        ),
    )(*inputs)

    # Drop the padded batch rows.
    return hidden_p[:, :batch, :], cell_p[:, :batch, :]


def _reference_forward(params: EncoderParams, src):
    """Pure-JAX reference of the same LSTM math (independent sanity check)."""
    embedded = jnp.take(params.embedding, src, axis=0)
    x = embedded
    hid = params.hid_dim
    hs, cs = [], []
    for layer in params.layers:
        seq, batch, _ = x.shape
        h = jnp.zeros((batch, hid), jnp.float32)
        c = jnp.zeros((batch, hid), jnp.float32)
        ys = []
        for t in range(seq):
            gates = x[t] @ layer["w_ih_t"] + h @ layer["w_hh_t"] + layer["bias"]
            i = jax.nn.sigmoid(gates[:, 0 * hid:1 * hid])
            f = jax.nn.sigmoid(gates[:, 1 * hid:2 * hid])
            g = jnp.tanh(gates[:, 2 * hid:3 * hid])
            o = jax.nn.sigmoid(gates[:, 3 * hid:4 * hid])
            c = f * c + i * g
            h = o * jnp.tanh(c)
            ys.append(h)
        x = jnp.stack(ys, axis=0)
        hs.append(h)
        cs.append(c)
    return jnp.stack(hs, axis=0), jnp.stack(cs, axis=0)


if __name__ == "__main__":
    INPUT_DIM = 50     # vocab size
    EMB_DIM = 16
    HID_DIM = 32
    N_LAYERS = 2
    SEQ_LEN = 8
    BATCH = 2

    key = jax.random.PRNGKey(0)
    k_params, k_src = jax.random.split(key)

    params = EncoderParams(k_params, INPUT_DIM, EMB_DIM, HID_DIM, N_LAYERS)
    src = jax.random.randint(k_src, (SEQ_LEN, BATCH), 0, INPUT_DIM, dtype=jnp.int32)

    enc = jax.jit(lambda s: encoder_forward(params, s))
    hidden, cell = enc(src)
    hidden, cell = jax.block_until_ready(hidden), jax.block_until_ready(cell)

    assert hidden.shape == (N_LAYERS, BATCH, HID_DIM)
    assert cell.shape == (N_LAYERS, BATCH, HID_DIM)

    # Cross-check kernel against pure-JAX reference. Tolerance slightly looser
    # than 1e-5 because the fused E@W_ih0 table reassociates layer-0's matmul.
    h_ref, c_ref = _reference_forward(params, src)
    assert jnp.allclose(hidden, h_ref, atol=1e-4), "hidden mismatch"
    assert jnp.allclose(cell, c_ref, atol=1e-4), "cell mismatch"

    print("KERNEL_OK")
</pallas_src>

<mosaic_0001>
module attributes {stable_mosaic.version = 11 : i64} {
  func.func @kernel(%arg0: memref<64x1xi32, #tpu.memory_space<vmem>>, %arg1: memref<50x128xf32, #tpu.memory_space<vmem>>, %arg2: memref<32x128xf32, #tpu.memory_space<vmem>>, %arg3: memref<1x128xf32, #tpu.memory_space<vmem>>, %arg4: memref<32x128xf32, #tpu.memory_space<vmem>>, %arg5: memref<32x128xf32, #tpu.memory_space<vmem>>, %arg6: memref<1x128xf32, #tpu.memory_space<vmem>>, %arg7: memref<2x8x32xf32, #tpu.memory_space<vmem>>, %arg8: memref<2x8x32xf32, #tpu.memory_space<vmem>>, %arg9: memref<64x128xf32, #tpu.memory_space<vmem>>, %arg10: memref<64x32xf32, #tpu.memory_space<vmem>>, %arg11: memref<8x32xf32, #tpu.memory_space<vmem>>, %arg12: memref<8x32xf32, #tpu.memory_space<vmem>>) attributes {dimension_semantics = [], scalar_prefetch = 0 : i64, scratch_operands = 4 : i64, tpu.core_type = #tpu.core_type<tc>} {
    %c0 = arith.constant 0 : index
    %c0_0 = arith.constant 0 : index
    %0 = vector.load %arg0[%c0, %c0_0] : memref<64x1xi32, #tpu.memory_space<vmem>>, vector<64x1xi32>
    %1 = tpu.iota {dimensions = array<i32: 1>} : vector<64x50xi32>
    %2 = vector.broadcast %0 : vector<64x1xi32> to vector<64x50xi32>
    %3 = arith.cmpi eq, %2, %1 : vector<64x50xi32>
    %4 = arith.extui %3 : vector<64x50xi1> to vector<64x50xi32>
    %5 = arith.sitofp %4 : vector<64x50xi32> to vector<64x50xf32>
    %c0_1 = arith.constant 0 : index
    %c0_2 = arith.constant 0 : index
    %6 = vector.load %arg1[%c0_1, %c0_2] : memref<50x128xf32, #tpu.memory_space<vmem>>, vector<50x128xf32>
    %cst = arith.constant dense<0.000000e+00> : vector<64x128xf32>
    %7 = tpu.matmul %5, %6, %cst {dimension_numbers = #tpu.dot_dimension_numbers<[1], [0], [0], [1], [0, 0, 1, 1], [], []>} : vector<64x50xf32>, vector<50x128xf32>, vector<64x128xf32> -> vector<64x128xf32>
    %c0_3 = arith.constant 0 : index
    %c0_4 = arith.constant 0 : index
    %8 = vector.load %arg3[%c0_3, %c0_4] : memref<1x128xf32, #tpu.memory_space<vmem>>, vector<1x128xf32>
    %9 = vector.broadcast %8 : vector<1x128xf32> to vector<64x128xf32>
    %10 = arith.addf %7, %9 : vector<64x128xf32>
    %c0_5 = arith.constant 0 : index
    %c0_6 = arith.constant 0 : index
    %11 = vector.load %arg9[%c0_5, %c0_6] : memref<64x128xf32, #tpu.memory_space<vmem>>, vector<64x128xf32>
    tpu.vector_store %arg9[%c0_5, %c0_6], %10 {strides = array<i32>} : memref<64x128xf32, #tpu.memory_space<vmem>>, vector<64x128xf32>,
    %c0_7 = arith.constant 0 : index
    %c0_8 = arith.constant 0 : index
    %12 = vector.load %arg2[%c0_7, %c0_8] : memref<32x128xf32, #tpu.memory_space<vmem>>, vector<32x128xf32>
    %cst_9 = arith.constant 0.000000e+00 : f32
    %13 = vector.broadcast %cst_9 : f32 to vector<8x32xf32>
    %c0_10 = arith.constant 0 : index
    %c0_11 = arith.constant 0 : index
    %14 = vector.load %arg11[%c0_10, %c0_11] : memref<8x32xf32, #tpu.memory_space<vmem>>, vector<8x32xf32>
    tpu.vector_store %arg11[%c0_10, %c0_11], %13 {strides = array<i32>} : memref<8x32xf32, #tpu.memory_space<vmem>>, vector<8x32xf32>,
    %cst_12 = arith.constant 0.000000e+00 : f32
    %15 = vector.broadcast %cst_12 : f32 to vector<8x32xf32>
    %c0_13 = arith.constant 0 : index
    %c0_14 = arith.constant 0 : index
    %16 = vector.load %arg12[%c0_13, %c0_14] : memref<8x32xf32, #tpu.memory_space<vmem>>, vector<8x32xf32>
    tpu.vector_store %arg12[%c0_13, %c0_14], %15 {strides = array<i32>} : memref<8x32xf32, #tpu.memory_space<vmem>>, vector<8x32xf32>,
    %c0_15 = arith.constant 0 : index
    %c0_16 = arith.constant 0 : index
    %17 = vector.load %arg9[%c0_15, %c0_16] : memref<64x128xf32, #tpu.memory_space<vmem>>, vector<8x128xf32>
    %c0_17 = arith.constant 0 : index
    %c0_18 = arith.constant 0 : index
    %18 = vector.load %arg11[%c0_17, %c0_18] : memref<8x32xf32, #tpu.memory_space<vmem>>, vector<8x32xf32>
    %cst_19 = arith.constant dense<0.000000e+00> : vector<8x128xf32>
    %19 = tpu.matmul %18, %12, %cst_19 {dimension_numbers = #tpu.dot_dimension_numbers<[1], [0], [0], [1], [0, 0, 1, 1], [], []>} : vector<8x32xf32>, vector<32x128xf32>, vector<8x128xf32> -> vector<8x128xf32>
    %20 = arith.addf %17, %19 : vector<8x128xf32>
    %21 = vector.extract_strided_slice %20 {offsets = [0, 0], sizes = [8, 32], strides = [1, 1]} : vector<8x128xf32> to vector<8x32xf32>
    %22 = arith.negf %21 : vector<8x32xf32>
    %23 = math.exp %22 : vector<8x32xf32>
    %cst_20 = arith.constant 1.000000e+00 : f32
    %24 = vector.broadcast %cst_20 : f32 to vector<8x32xf32>
    %25 = arith.addf %24, %23 : vector<8x32xf32>
    %26 = arith.divf %24, %25 : vector<8x32xf32>
    %27 = vector.extract_strided_slice %20 {offsets = [0, 32], sizes = [8, 32], strides = [1, 1]} : vector<8x128xf32> to vector<8x32xf32>
    %28 = arith.negf %27 : vector<8x32xf32>
    %29 = math.exp %28 : vector<8x32xf32>
    %cst_21 = arith.constant 1.000000e+00 : f32
    %30 = vector.broadcast %cst_21 : f32 to vector<8x32xf32>
    %31 = arith.addf %30, %29 : vector<8x32xf32>
    %32 = arith.divf %30, %31 : vector<8x32xf32>
    %33 = vector.extract_strided_slice %20 {offsets = [0, 64], sizes = [8, 32], strides = [1, 1]} : vector<8x128xf32> to vector<8x32xf32>
    %34 = math.tanh %33 : vector<8x32xf32>
    %35 = vector.extract_strided_slice %20 {offsets = [0, 96], sizes = [8, 32], strides = [1, 1]} : vector<8x128xf32> to vector<8x32xf32>
    %36 = arith.negf %35 : vector<8x32xf32>
    %37 = math.exp %36 : vector<8x32xf32>
    %cst_22 = arith.constant 1.000000e+00 : f32
    %38 = vector.broadcast %cst_22 : f32 to vector<8x32xf32>
    %39 = arith.addf %38, %37 : vector<8x32xf32>
    %40 = arith.divf %38, %39 : vector<8x32xf32>
    %c0_23 = arith.constant 0 : index
    %c0_24 = arith.constant 0 : index
    %41 = vector.load %arg12[%c0_23, %c0_24] : memref<8x32xf32, #tpu.memory_space<vmem>>, vector<8x32xf32>
    %42 = arith.mulf %32, %41 : vector<8x32xf32>
    %43 = arith.mulf %26, %34 : vector<8x32xf32>
    %44 = arith.addf %42, %43 : vector<8x32xf32>
    %45 = math.tanh %44 : vector<8x32xf32>
    %46 = arith.mulf %40, %45 : vector<8x32xf32>
    %c0_25 = arith.constant 0 : index
    %c0_26 = arith.constant 0 : index
    %47 = vector.load %arg12[%c0_25, %c0_26] : memref<8x32xf32, #tpu.memory_space<vmem>>, vector<8x32xf32>
    tpu.vector_store %arg12[%c0_25, %c0_26], %44 {strides = array<i32>} : memref<8x32xf32, #tpu.memory_space<vmem>>, vector<8x32xf32>,
    %c0_27 = arith.constant 0 : index
    %c0_28 = arith.constant 0 : index
    %48 = vector.load %arg11[%c0_27, %c0_28] : memref<8x32xf32, #tpu.memory_space<vmem>>, vector<8x32xf32>
    tpu.vector_store %arg11[%c0_27, %c0_28], %46 {strides = array<i32>} : memref<8x32xf32, #tpu.memory_space<vmem>>, vector<8x32xf32>,
    %c0_29 = arith.constant 0 : index
    %c0_30 = arith.constant 0 : index
    %49 = vector.load %arg10[%c0_29, %c0_30] : memref<64x32xf32, #tpu.memory_space<vmem>>, vector<8x32xf32>
    tpu.vector_store %arg10[%c0_29, %c0_30], %46 {strides = array<i32>} : memref<64x32xf32, #tpu.memory_space<vmem>>, vector<8x32xf32>,
    %c8 = arith.constant 8 : index
    %c0_31 = arith.constant 0 : index
    %50 = vector.load %arg9[%c8, %c0_31] : memref<64x128xf32, #tpu.memory_space<vmem>>, vector<8x128xf32>
    %c0_32 = arith.constant 0 : index
    %c0_33 = arith.constant 0 : index
    %51 = vector.load %arg11[%c0_32, %c0_33] : memref<8x32xf32, #tpu.memory_space<vmem>>, vector<8x32xf32>
    %cst_34 = arith.constant dense<0.000000e+00> : vector<8x128xf32>
    %52 = tpu.matmul %51, %12, %cst_34 {dimension_numbers = #tpu.dot_dimension_numbers<[1], [0], [0], [1], [0, 0, 1, 1], [], []>} : vector<8x32xf32>, vector<32x128xf32>, vector<8x128xf32> -> vector<8x128xf32>
    %53 = arith.addf %50, %52 : vector<8x128xf32>
    %54 = vector.extract_strided_slice %53 {offsets = [0, 0], sizes = [8, 32], strides = [1, 1]} : vector<8x128xf32> to vector<8x32xf32>
    %55 = arith.negf %54 : vector<8x32xf32>
    %56 = math.exp %55 : vector<8x32xf32>
    %cst_35 = arith.constant 1.000000e+00 : f32
    %57 = vector.broadcast %cst_35 : f32 to vector<8x32xf32>
    %58 = arith.addf %57, %56 : vector<8x32xf32>
    %59 = arith.divf %57, %58 : vector<8x32xf32>
    %60 = vector.extract_strided_slice %53 {offsets = [0, 32], sizes = [8, 32], strides = [1, 1]} : vector<8x128xf32> to vector<8x32xf32>
    %61 = arith.negf %60 : vector<8x32xf32>
    %62 = math.exp %61 : vector<8x32xf32>
    %cst_36 = arith.constant 1.000000e+00 : f32
    %63 = vector.broadcast %cst_36 : f32 to vector<8x32xf32>
    %64 = arith.addf %63, %62 : vector<8x32xf32>
    %65 = arith.divf %63, %64 : vector<8x32xf32>
    %66 = vector.extract_strided_slice %53 {offsets = [0, 64], sizes = [8, 32], strides = [1, 1]} : vector<8x128xf32> to vector<8x32xf32>
    %67 = math.tanh %66 : vector<8x32xf32>
    %68 = vector.extract_strided_slice %53 {offsets = [0, 96], sizes = [8, 32], strides = [1, 1]} : vector<8x128xf32> to vector<8x32xf32>
    %69 = arith.negf %68 : vector<8x32xf32>
    %70 = math.exp %69 : vector<8x32xf32>
    %cst_37 = arith.constant 1.000000e+00 : f32
    %71 = vector.broadcast %cst_37 : f32 to vector<8x32xf32>
    %72 = arith.addf %71, %70 : vector<8x32xf32>
    %73 = arith.divf %71, %72 : vector<8x32xf32>
    %c0_38 = arith.constant 0 : index
    %c0_39 = arith.constant 0 : index
    %74 = vector.load %arg12[%c0_38, %c0_39] : memref<8x32xf32, #tpu.memory_space<vmem>>, vector<8x32xf32>
    %75 = arith.mulf %65, %74 : vector<8x32xf32>
    %76 = arith.mulf %59, %67 : vector<8x32xf32>
    %77 = arith.addf %75, %76 : vector<8x32xf32>
    %78 = math.tanh %77 : vector<8x32xf32>
    %79 = arith.mulf %73, %78 : vector<8x32xf32>
    %c0_40 = arith.constant 0 : index
    %c0_41 = arith.constant 0 : index
    %80 = vector.load %arg12[%c0_40, %c0_41] : memref<8x32xf32, #tpu.memory_space<vmem>>, vector<8x32xf32>
    tpu.vector_store %arg12[%c0_40, %c0_41], %77 {strides = array<i32>} : memref<8x32xf32, #tpu.memory_space<vmem>>, vector<8x32xf32>,
    %c0_42 = arith.constant 0 : index
    %c0_43 = arith.constant 0 : index
    %81 = vector.load %arg11[%c0_42, %c0_43] : memref<8x32xf32, #tpu.memory_space<vmem>>, vector<8x32xf32>
    tpu.vector_store %arg11[%c0_42, %c0_43], %79 {strides = array<i32>} : memref<8x32xf32, #tpu.memory_space<vmem>>, vector<8x32xf32>,
    %c8_44 = arith.constant 8 : index
    %c0_45 = arith.constant 0 : index
    %82 = vector.load %arg10[%c8_44, %c0_45] : memref<64x32xf32, #tpu.memory_space<vmem>>, vector<8x32xf32>
    tpu.vector_store %arg10[%c8_44, %c0_45], %79 {strides = array<i32>} : memref<64x32xf32, #tpu.memory_space<vmem>>, vector<8x32xf32>,
    %c16 = arith.constant 16 : index
    %c0_46 = arith.constant 0 : index
    %83 = vector.load %arg9[%c16, %c0_46] : memref<64x128xf32, #tpu.memory_space<vmem>>, vector<8x128xf32>
    %c0_47 = arith.constant 0 : index
    %c0_48 = arith.constant 0 : index
    %84 = vector.load %arg11[%c0_47, %c0_48] : memref<8x32xf32, #tpu.memory_space<vmem>>, vector<8x32xf32>
    %cst_49 = arith.constant dense<0.000000e+00> : vector<8x128xf32>
    %85 = tpu.matmul %84, %12, %cst_49 {dimension_numbers = #tpu.dot_dimension_numbers<[1], [0], [0], [1], [0, 0, 1, 1], [], []>} : vector<8x32xf32>, vector<32x128xf32>, vector<8x128xf32> -> vector<8x128xf32>
    %86 = arith.addf %83, %85 : vector<8x128xf32>
    %87 = vector.extract_strided_slice %86 {offsets = [0, 0], sizes = [8, 32], strides = [1, 1]} : vector<8x128xf32> to vector<8x32xf32>
    %88 = arith.negf %87 : vector<8x32xf32>
    %89 = math.exp %88 : vector<8x32xf32>
    %cst_50 = arith.constant 1.000000e+00 : f32
    %90 = vector.broadcast %cst_50 : f32 to vector<8x32xf32>
    %91 = arith.addf %90, %89 : vector<8x32xf32>
    %92 = arith.divf %90, %91 : vector<8x32xf32>
    %93 = vector.extract_strided_slice %86 {offsets = [0, 32], sizes = [8, 32], strides = [1, 1]} : vector<8x128xf32> to vector<8x32xf32>
    %94 = arith.negf %93 : vector<8x32xf32>
    %95 = math.exp %94 : vector<8x32xf32>
    %cst_51 = arith.constant 1.000000e+00 : f32
    %96 = vector.broadcast %cst_51 : f32 to vector<8x32xf32>
    %97 = arith.addf %96, %95 : vector<8x32xf32>
    %98 = arith.divf %96, %97 : vector<8x32xf32>
    %99 = vector.extract_strided_slice %86 {offsets = [0, 64], sizes = [8, 32], strides = [1, 1]} : vector<8x128xf32> to vector<8x32xf32>
    %100 = math.tanh %99 : vector<8x32xf32>
    %101 = vector.extract_strided_slice %86 {offsets = [0, 96], sizes = [8, 32], strides = [1, 1]} : vector<8x128xf32> to vector<8x32xf32>
    %102 = arith.negf %101 : vector<8x32xf32>
    %103 = math.exp %102 : vector<8x32xf32>
    %cst_52 = arith.constant 1.000000e+00 : f32
    %104 = vector.broadcast %cst_52 : f32 to vector<8x32xf32>
    %105 = arith.addf %104, %103 : vector<8x32xf32>
    %106 = arith.divf %104, %105 : vector<8x32xf32>
    %c0_53 = arith.constant 0 : index
    %c0_54 = arith.constant 0 : index
    %107 = vector.load %arg12[%c0_53, %c0_54] : memref<8x32xf32, #tpu.memory_space<vmem>>, vector<8x32xf32>
    %108 = arith.mulf %98, %107 : vector<8x32xf32>
    %109 = arith.mulf %92, %100 : vector<8x32xf32>
    %110 = arith.addf %108, %109 : vector<8x32xf32>
    %111 = math.tanh %110 : vector<8x32xf32>
    %112 = arith.mulf %106, %111 : vector<8x32xf32>
    %c0_55 = arith.constant 0 : index
    %c0_56 = arith.constant 0 : index
    %113 = vector.load %arg12[%c0_55, %c0_56] : memref<8x32xf32, #tpu.memory_space<vmem>>, vector<8x32xf32>
    tpu.vector_store %arg12[%c0_55, %c0_56], %110 {strides = array<i32>} : memref<8x32xf32, #tpu.memory_space<vmem>>, vector<8x32xf32>,
    %c0_57 = arith.constant 0 : index
    %c0_58 = arith.constant 0 : index
    %114 = vector.load %arg11[%c0_57, %c0_58] : memref<8x32xf32, #tpu.memory_space<vmem>>, vector<8x32xf32>
    tpu.vector_store %arg11[%c0_57, %c0_58], %112 {strides = array<i32>} : memref<8x32xf32, #tpu.memory_space<vmem>>, vector<8x32xf32>,
    %c16_59 = arith.constant 16 : index
    %c0_60 = arith.constant 0 : index
    %115 = vector.load %arg10[%c16_59, %c0_60] : memref<64x32xf32, #tpu.memory_space<vmem>>, vector<8x32xf32>
    tpu.vector_store %arg10[%c16_59, %c0_60], %112 {strides = array<i32>} : memref<64x32xf32, #tpu.memory_space<vmem>>, vector<8x32xf32>,
    %c24 = arith.constant 24 : index
    %c0_61 = arith.constant 0 : index
    %116 = vector.load %arg9[%c24, %c0_61] : memref<64x128xf32, #tpu.memory_space<vmem>>, vector<8x128xf32>
    %c0_62 = arith.constant 0 : index
    %c0_63 = arith.constant 0 : index
    %117 = vector.load %arg11[%c0_62, %c0_63] : memref<8x32xf32, #tpu.memory_space<vmem>>, vector<8x32xf32>
    %cst_64 = arith.constant dense<0.000000e+00> : vector<8x128xf32>
    %118 = tpu.matmul %117, %12, %cst_64 {dimension_numbers = #tpu.dot_dimension_numbers<[1], [0], [0], [1], [0, 0, 1, 1], [], []>} : vector<8x32xf32>, vector<32x128xf32>, vector<8x128xf32> -> vector<8x128xf32>
    %119 = arith.addf %116, %118 : vector<8x128xf32>
    %120 = vector.extract_strided_slice %119 {offsets = [0, 0], sizes = [8, 32], strides = [1, 1]} : vector<8x128xf32> to vector<8x32xf32>
    %121 = arith.negf %120 : vector<8x32xf32>
    %122 = math.exp %121 : vector<8x32xf32>
    %cst_65 = arith.constant 1.000000e+00 : f32
    %123 = vector.broadcast %cst_65 : f32 to vector<8x32xf32>
    %124 = arith.addf %123, %122 : vector<8x32xf32>
    %125 = arith.divf %123, %124 : vector<8x32xf32>
    %126 = vector.extract_strided_slice %119 {offsets = [0, 32], sizes = [8, 32], strides = [1, 1]} : vector<8x128xf32> to vector<8x32xf32>
    %127 = arith.negf %126 : vector<8x32xf32>
    %128 = math.exp %127 : vector<8x32xf32>
    %cst_66 = arith.constant 1.000000e+00 : f32
    %129 = vector.broadcast %cst_66 : f32 to vector<8x32xf32>
    %130 = arith.addf %129, %128 : vector<8x32xf32>
    %131 = arith.divf %129, %130 : vector<8x32xf32>
    %132 = vector.extract_strided_slice %119 {offsets = [0, 64], sizes = [8, 32], strides = [1, 1]} : vector<8x128xf32> to vector<8x32xf32>
    %133 = math.tanh %132 : vector<8x32xf32>
    %134 = vector.extract_strided_slice %119 {offsets = [0, 96], sizes = [8, 32], strides = [1, 1]} : vector<8x128xf32> to vector<8x32xf32>
    %135 = arith.negf %134 : vector<8x32xf32>
    %136 = math.exp %135 : vector<8x32xf32>
    %cst_67 = arith.constant 1.000000e+00 : f32
    %137 = vector.broadcast %cst_67 : f32 to vector<8x32xf32>
    %138 = arith.addf %137, %136 : vector<8x32xf32>
    %139 = arith.divf %137, %138 : vector<8x32xf32>
    %c0_68 = arith.constant 0 : index
    %c0_69 = arith.constant 0 : index
    %140 = vector.load %arg12[%c0_68, %c0_69] : memref<8x32xf32, #tpu.memory_space<vmem>>, vector<8x32xf32>
    %141 = arith.mulf %131, %140 : vector<8x32xf32>
    %142 = arith.mulf %125, %133 : vector<8x32xf32>
    %143 = arith.addf %141, %142 : vector<8x32xf32>
    %144 = math.tanh %143 : vector<8x32xf32>
    %145 = arith.mulf %139, %144 : vector<8x32xf32>
    %c0_70 = arith.constant 0 : index
    %c0_71 = arith.constant 0 : index
    %146 = vector.load %arg12[%c0_70, %c0_71] : memref<8x32xf32, #tpu.memory_space<vmem>>, vector<8x32xf32>
    tpu.vector_store %arg12[%c0_70, %c0_71], %143 {strides = array<i32>} : memref<8x32xf32, #tpu.memory_space<vmem>>, vector<8x32xf32>,
    %c0_72 = arith.constant 0 : index
    %c0_73 = arith.constant 0 : index
    %147 = vector.load %arg11[%c0_72, %c0_73] : memref<8x32xf32, #tpu.memory_space<vmem>>, vector<8x32xf32>
    tpu.vector_store %arg11[%c0_72, %c0_73], %145 {strides = array<i32>} : memref<8x32xf32, #tpu.memory_space<vmem>>, vector<8x32xf32>,
    %c24_74 = arith.constant 24 : index
    %c0_75 = arith.constant 0 : index
    %148 = vector.load %arg10[%c24_74, %c0_75] : memref<64x32xf32, #tpu.memory_space<vmem>>, vector<8x32xf32>
    tpu.vector_store %arg10[%c24_74, %c0_75], %145 {strides = array<i32>} : memref<64x32xf32, #tpu.memory_space<vmem>>, vector<8x32xf32>,
    %c32 = arith.constant 32 : index
    %c0_76 = arith.constant 0 : index
    %149 = vector.load %arg9[%c32, %c0_76] : memref<64x128xf32, #tpu.memory_space<vmem>>, vector<8x128xf32>
    %c0_77 = arith.constant 0 : index
    %c0_78 = arith.constant 0 : index
    %150 = vector.load %arg11[%c0_77, %c0_78] : memref<8x32xf32, #tpu.memory_space<vmem>>, vector<8x32xf32>
    %cst_79 = arith.constant dense<0.000000e+00> : vector<8x128xf32>
    %151 = tpu.matmul %150, %12, %cst_79 {dimension_numbers = #tpu.dot_dimension_numbers<[1], [0], [0], [1], [0, 0, 1, 1], [], []>} : vector<8x32xf32>, vector<32x128xf32>, vector<8x128xf32> -> vector<8x128xf32>
    %152 = arith.addf %149, %151 : vector<8x128xf32>
    %153 = vector.extract_strided_slice %152 {offsets = [0, 0], sizes = [8, 32], strides = [1, 1]} : vector<8x128xf32> to vector<8x32xf32>
    %154 = arith.negf %153 : vector<8x32xf32>
    %155 = math.exp %154 : vector<8x32xf32>
    %cst_80 = arith.constant 1.000000e+00 : f32
    %156 = vector.broadcast %cst_80 : f32 to vector<8x32xf32>
    %157 = arith.addf %156, %155 : vector<8x32xf32>
    %158 = arith.divf %156, %157 : vector<8x32xf32>
    %159 = vector.extract_strided_slice %152 {offsets = [0, 32], sizes = [8, 32], strides = [1, 1]} : vector<8x128xf32> to vector<8x32xf32>
    %160 = arith.negf %159 : vector<8x32xf32>
    %161 = math.exp %160 : vector<8x32xf32>
    %cst_81 = arith.constant 1.000000e+00 : f32
    %162 = vector.broadcast %cst_81 : f32 to vector<8x32xf32>
    %163 = arith.addf %162, %161 : vector<8x32xf32>
    %164 = arith.divf %162, %163 : vector<8x32xf32>
    %165 = vector.extract_strided_slice %152 {offsets = [0, 64], sizes = [8, 32], strides = [1, 1]} : vector<8x128xf32> to vector<8x32xf32>
    %166 = math.tanh %165 : vector<8x32xf32>
    %167 = vector.extract_strided_slice %152 {offsets = [0, 96], sizes = [8, 32], strides = [1, 1]} : vector<8x128xf32> to vector<8x32xf32>
    %168 = arith.negf %167 : vector<8x32xf32>
    %169 = math.exp %168 : vector<8x32xf32>
    %cst_82 = arith.constant 1.000000e+00 : f32
    %170 = vector.broadcast %cst_82 : f32 to vector<8x32xf32>
    %171 = arith.addf %170, %169 : vector<8x32xf32>
    %172 = arith.divf %170, %171 : vector<8x32xf32>
    %c0_83 = arith.constant 0 : index
    %c0_84 = arith.constant 0 : index
    %173 = vector.load %arg12[%c0_83, %c0_84] : memref<8x32xf32, #tpu.memory_space<vmem>>, vector<8x32xf32>
    %174 = arith.mulf %164, %173 : vector<8x32xf32>
    %175 = arith.mulf %158, %166 : vector<8x32xf32>
    %176 = arith.addf %174, %175 : vector<8x32xf32>
    %177 = math.tanh %176 : vector<8x32xf32>
    %178 = arith.mulf %172, %177 : vector<8x32xf32>
    %c0_85 = arith.constant 0 : index
    %c0_86 = arith.constant 0 : index
    %179 = vector.load %arg12[%c0_85, %c0_86] : memref<8x32xf32, #tpu.memory_space<vmem>>, vector<8x32xf32>
    tpu.vector_store %arg12[%c0_85, %c0_86], %176 {strides = array<i32>} : memref<8x32xf32, #tpu.memory_space<vmem>>, vector<8x32xf32>,
    %c0_87 = arith.constant 0 : index
    %c0_88 = arith.constant 0 : index
    %180 = vector.load %arg11[%c0_87, %c0_88] : memref<8x32xf32, #tpu.memory_space<vmem>>, vector<8x32xf32>
    tpu.vector_store %arg11[%c0_87, %c0_88], %178 {strides = array<i32>} : memref<8x32xf32, #tpu.memory_space<vmem>>, vector<8x32xf32>,
    %c32_89 = arith.constant 32 : index
    %c0_90 = arith.constant 0 : index
    %181 = vector.load %arg10[%c32_89, %c0_90] : memref<64x32xf32, #tpu.memory_space<vmem>>, vector<8x32xf32>
    tpu.vector_store %arg10[%c32_89, %c0_90], %178 {strides = array<i32>} : memref<64x32xf32, #tpu.memory_space<vmem>>, vector<8x32xf32>,
    %c40 = arith.constant 40 : index
    %c0_91 = arith.constant 0 : index
    %182 = vector.load %arg9[%c40, %c0_91] : memref<64x128xf32, #tpu.memory_space<vmem>>, vector<8x128xf32>
    %c0_92 = arith.constant 0 : index
    %c0_93 = arith.constant 0 : index
    %183 = vector.load %arg11[%c0_92, %c0_93] : memref<8x32xf32, #tpu.memory_space<vmem>>, vector<8x32xf32>
    %cst_94 = arith.constant dense<0.000000e+00> : vector<8x128xf32>
    %184 = tpu.matmul %183, %12, %cst_94 {dimension_numbers = #tpu.dot_dimension_numbers<[1], [0], [0], [1], [0, 0, 1, 1], [], []>} : vector<8x32xf32>, vector<32x128xf32>, vector<8x128xf32> -> vector<8x128xf32>
    %185 = arith.addf %182, %184 : vector<8x128xf32>
    %186 = vector.extract_strided_slice %185 {offsets = [0, 0], sizes = [8, 32], strides = [1, 1]} : vector<8x128xf32> to vector<8x32xf32>
    %187 = arith.negf %186 : vector<8x32xf32>
    %188 = math.exp %187 : vector<8x32xf32>
    %cst_95 = arith.constant 1.000000e+00 : f32
    %189 = vector.broadcast %cst_95 : f32 to vector<8x32xf32>
    %190 = arith.addf %189, %188 : vector<8x32xf32>
    %191 = arith.divf %189, %190 : vector<8x32xf32>
    %192 = vector.extract_strided_slice %185 {offsets = [0, 32], sizes = [8, 32], strides = [1, 1]} : vector<8x128xf32> to vector<8x32xf32>
    %193 = arith.negf %192 : vector<8x32xf32>
    %194 = math.exp %193 : vector<8x32xf32>
    %cst_96 = arith.constant 1.000000e+00 : f32
    %195 = vector.broadcast %cst_96 : f32 to vector<8x32xf32>
    %196 = arith.addf %195, %194 : vector<8x32xf32>
    %197 = arith.divf %195, %196 : vector<8x32xf32>
    %198 = vector.extract_strided_slice %185 {offsets = [0, 64], sizes = [8, 32], strides = [1, 1]} : vector<8x128xf32> to vector<8x32xf32>
    %199 = math.tanh %198 : vector<8x32xf32>
    %200 = vector.extract_strided_slice %185 {offsets = [0, 96], sizes = [8, 32], strides = [1, 1]} : vector<8x128xf32> to vector<8x32xf32>
    %201 = arith.negf %200 : vector<8x32xf32>
    %202 = math.exp %201 : vector<8x32xf32>
    %cst_97 = arith.constant 1.000000e+00 : f32
    %203 = vector.broadcast %cst_97 : f32 to vector<8x32xf32>
    %204 = arith.addf %203, %202 : vector<8x32xf32>
    %205 = arith.divf %203, %204 : vector<8x32xf32>
    %c0_98 = arith.constant 0 : index
    %c0_99 = arith.constant 0 : index
    %206 = vector.load %arg12[%c0_98, %c0_99] : memref<8x32xf32, #tpu.memory_space<vmem>>, vector<8x32xf32>
    %207 = arith.mulf %197, %206 : vector<8x32xf32>
    %208 = arith.mulf %191, %199 : vector<8x32xf32>
    %209 = arith.addf %207, %208 : vector<8x32xf32>
    %210 = math.tanh %209 : vector<8x32xf32>
    %211 = arith.mulf %205, %210 : vector<8x32xf32>
    %c0_100 = arith.constant 0 : index
    %c0_101 = arith.constant 0 : index
    %212 = vector.load %arg12[%c0_100, %c0_101] : memref<8x32xf32, #tpu.memory_space<vmem>>, vector<8x32xf32>
    tpu.vector_store %arg12[%c0_100, %c0_101], %209 {strides = array<i32>} : memref<8x32xf32, #tpu.memory_space<vmem>>, vector<8x32xf32>,
    %c0_102 = arith.constant 0 : index
    %c0_103 = arith.constant 0 : index
    %213 = vector.load %arg11[%c0_102, %c0_103] : memref<8x32xf32, #tpu.memory_space<vmem>>, vector<8x32xf32>
    tpu.vector_store %arg11[%c0_102, %c0_103], %211 {strides = array<i32>} : memref<8x32xf32, #tpu.memory_space<vmem>>, vector<8x32xf32>,
    %c40_104 = arith.constant 40 : index
    %c0_105 = arith.constant 0 : index
    %214 = vector.load %arg10[%c40_104, %c0_105] : memref<64x32xf32, #tpu.memory_space<vmem>>, vector<8x32xf32>
    tpu.vector_store %arg10[%c40_104, %c0_105], %211 {strides = array<i32>} : memref<64x32xf32, #tpu.memory_space<vmem>>, vector<8x32xf32>,
    %c48 = arith.constant 48 : index
    %c0_106 = arith.constant 0 : index
    %215 = vector.load %arg9[%c48, %c0_106] : memref<64x128xf32, #tpu.memory_space<vmem>>, vector<8x128xf32>
    %c0_107 = arith.constant 0 : index
    %c0_108 = arith.constant 0 : index
    %216 = vector.load %arg11[%c0_107, %c0_108] : memref<8x32xf32, #tpu.memory_space<vmem>>, vector<8x32xf32>
    %cst_109 = arith.constant dense<0.000000e+00> : vector<8x128xf32>
    %217 = tpu.matmul %216, %12, %cst_109 {dimension_numbers = #tpu.dot_dimension_numbers<[1], [0], [0], [1], [0, 0, 1, 1], [], []>} : vector<8x32xf32>, vector<32x128xf32>, vector<8x128xf32> -> vector<8x128xf32>
    %218 = arith.addf %215, %217 : vector<8x128xf32>
    %219 = vector.extract_strided_slice %218 {offsets = [0, 0], sizes = [8, 32], strides = [1, 1]} : vector<8x128xf32> to vector<8x32xf32>
    %220 = arith.negf %219 : vector<8x32xf32>
    %221 = math.exp %220 : vector<8x32xf32>
    %cst_110 = arith.constant 1.000000e+00 : f32
    %222 = vector.broadcast %cst_110 : f32 to vector<8x32xf32>
    %223 = arith.addf %222, %221 : vector<8x32xf32>
    %224 = arith.divf %222, %223 : vector<8x32xf32>
    %225 = vector.extract_strided_slice %218 {offsets = [0, 32], sizes = [8, 32], strides = [1, 1]} : vector<8x128xf32> to vector<8x32xf32>
    %226 = arith.negf %225 : vector<8x32xf32>
    %227 = math.exp %226 : vector<8x32xf32>
    %cst_111 = arith.constant 1.000000e+00 : f32
    %228 = vector.broadcast %cst_111 : f32 to vector<8x32xf32>
    %229 = arith.addf %228, %227 : vector<8x32xf32>
    %230 = arith.divf %228, %229 : vector<8x32xf32>
    %231 = vector.extract_strided_slice %218 {offsets = [0, 64], sizes = [8, 32], strides = [1, 1]} : vector<8x128xf32> to vector<8x32xf32>
    %232 = math.tanh %231 : vector<8x32xf32>
    %233 = vector.extract_strided_slice %218 {offsets = [0, 96], sizes = [8, 32], strides = [1, 1]} : vector<8x128xf32> to vector<8x32xf32>
    %234 = arith.negf %233 : vector<8x32xf32>
    %235 = math.exp %234 : vector<8x32xf32>
    %cst_112 = arith.constant 1.000000e+00 : f32
    %236 = vector.broadcast %cst_112 : f32 to vector<8x32xf32>
    %237 = arith.addf %236, %235 : vector<8x32xf32>
    %238 = arith.divf %236, %237 : vector<8x32xf32>
    %c0_113 = arith.constant 0 : index
    %c0_114 = arith.constant 0 : index
    %239 = vector.load %arg12[%c0_113, %c0_114] : memref<8x32xf32, #tpu.memory_space<vmem>>, vector<8x32xf32>
    %240 = arith.mulf %230, %239 : vector<8x32xf32>
    %241 = arith.mulf %224, %232 : vector<8x32xf32>
    %242 = arith.addf %240, %241 : vector<8x32xf32>
    %243 = math.tanh %242 : vector<8x32xf32>
    %244 = arith.mulf %238, %243 : vector<8x32xf32>
    %c0_115 = arith.constant 0 : index
    %c0_116 = arith.constant 0 : index
    %245 = vector.load %arg12[%c0_115, %c0_116] : memref<8x32xf32, #tpu.memory_space<vmem>>, vector<8x32xf32>
    tpu.vector_store %arg12[%c0_115, %c0_116], %242 {strides = array<i32>} : memref<8x32xf32, #tpu.memory_space<vmem>>, vector<8x32xf32>,
    %c0_117 = arith.constant 0 : index
    %c0_118 = arith.constant 0 : index
    %246 = vector.load %arg11[%c0_117, %c0_118] : memref<8x32xf32, #tpu.memory_space<vmem>>, vector<8x32xf32>
    tpu.vector_store %arg11[%c0_117, %c0_118], %244 {strides = array<i32>} : memref<8x32xf32, #tpu.memory_space<vmem>>, vector<8x32xf32>,
    %c48_119 = arith.constant 48 : index
    %c0_120 = arith.constant 0 : index
    %247 = vector.load %arg10[%c48_119, %c0_120] : memref<64x32xf32, #tpu.memory_space<vmem>>, vector<8x32xf32>
    tpu.vector_store %arg10[%c48_119, %c0_120], %244 {strides = array<i32>} : memref<64x32xf32, #tpu.memory_space<vmem>>, vector<8x32xf32>,
    %c56 = arith.constant 56 : index
    %c0_121 = arith.constant 0 : index
    %248 = vector.load %arg9[%c56, %c0_121] : memref<64x128xf32, #tpu.memory_space<vmem>>, vector<8x128xf32>
    %c0_122 = arith.constant 0 : index
    %c0_123 = arith.constant 0 : index
    %249 = vector.load %arg11[%c0_122, %c0_123] : memref<8x32xf32, #tpu.memory_space<vmem>>, vector<8x32xf32>
    %cst_124 = arith.constant dense<0.000000e+00> : vector<8x128xf32>
    %250 = tpu.matmul %249, %12, %cst_124 {dimension_numbers = #tpu.dot_dimension_numbers<[1], [0], [0], [1], [0, 0, 1, 1], [], []>} : vector<8x32xf32>, vector<32x128xf32>, vector<8x128xf32> -> vector<8x128xf32>
    %251 = arith.addf %248, %250 : vector<8x128xf32>
    %252 = vector.extract_strided_slice %251 {offsets = [0, 0], sizes = [8, 32], strides = [1, 1]} : vector<8x128xf32> to vector<8x32xf32>
    %253 = arith.negf %252 : vector<8x32xf32>
    %254 = math.exp %253 : vector<8x32xf32>
    %cst_125 = arith.constant 1.000000e+00 : f32
    %255 = vector.broadcast %cst_125 : f32 to vector<8x32xf32>
    %256 = arith.addf %255, %254 : vector<8x32xf32>
    %257 = arith.divf %255, %256 : vector<8x32xf32>
    %258 = vector.extract_strided_slice %251 {offsets = [0, 32], sizes = [8, 32], strides = [1, 1]} : vector<8x128xf32> to vector<8x32xf32>
    %259 = arith.negf %258 : vector<8x32xf32>
    %260 = math.exp %259 : vector<8x32xf32>
    %cst_126 = arith.constant 1.000000e+00 : f32
    %261 = vector.broadcast %cst_126 : f32 to vector<8x32xf32>
    %262 = arith.addf %261, %260 : vector<8x32xf32>
    %263 = arith.divf %261, %262 : vector<8x32xf32>
    %264 = vector.extract_strided_slice %251 {offsets = [0, 64], sizes = [8, 32], strides = [1, 1]} : vector<8x128xf32> to vector<8x32xf32>
    %265 = math.tanh %264 : vector<8x32xf32>
    %266 = vector.extract_strided_slice %251 {offsets = [0, 96], sizes = [8, 32], strides = [1, 1]} : vector<8x128xf32> to vector<8x32xf32>
    %267 = arith.negf %266 : vector<8x32xf32>
    %268 = math.exp %267 : vector<8x32xf32>
    %cst_127 = arith.constant 1.000000e+00 : f32
    %269 = vector.broadcast %cst_127 : f32 to vector<8x32xf32>
    %270 = arith.addf %269, %268 : vector<8x32xf32>
    %271 = arith.divf %269, %270 : vector<8x32xf32>
    %c0_128 = arith.constant 0 : index
    %c0_129 = arith.constant 0 : index
    %272 = vector.load %arg12[%c0_128, %c0_129] : memref<8x32xf32, #tpu.memory_space<vmem>>, vector<8x32xf32>
    %273 = arith.mulf %263, %272 : vector<8x32xf32>
    %274 = arith.mulf %257, %265 : vector<8x32xf32>
    %275 = arith.addf %273, %274 : vector<8x32xf32>
    %276 = math.tanh %275 : vector<8x32xf32>
    %277 = arith.mulf %271, %276 : vector<8x32xf32>
    %c0_130 = arith.constant 0 : index
    %c0_131 = arith.constant 0 : index
    %278 = vector.load %arg12[%c0_130, %c0_131] : memref<8x32xf32, #tpu.memory_space<vmem>>, vector<8x32xf32>
    tpu.vector_store %arg12[%c0_130, %c0_131], %275 {strides = array<i32>} : memref<8x32xf32, #tpu.memory_space<vmem>>, vector<8x32xf32>,
    %c0_132 = arith.constant 0 : index
    %c0_133 = arith.constant 0 : index
    %279 = vector.load %arg11[%c0_132, %c0_133] : memref<8x32xf32, #tpu.memory_space<vmem>>, vector<8x32xf32>
    tpu.vector_store %arg11[%c0_132, %c0_133], %277 {strides = array<i32>} : memref<8x32xf32, #tpu.memory_space<vmem>>, vector<8x32xf32>,
    %c56_134 = arith.constant 56 : index
    %c0_135 = arith.constant 0 : index
    %280 = vector.load %arg10[%c56_134, %c0_135] : memref<64x32xf32, #tpu.memory_space<vmem>>, vector<8x32xf32>
    tpu.vector_store %arg10[%c56_134, %c0_135], %277 {strides = array<i32>} : memref<64x32xf32, #tpu.memory_space<vmem>>, vector<8x32xf32>,
    %c0_136 = arith.constant 0 : index
    %c0_137 = arith.constant 0 : index
    %281 = vector.load %arg11[%c0_136, %c0_137] : memref<8x32xf32, #tpu.memory_space<vmem>>, vector<8x32xf32>
    %c0_138 = arith.constant 0 : index
    %c0_139 = arith.constant 0 : index
    %c0_140 = arith.constant 0 : index
    %282 = vector.load %arg7[%c0_138, %c0_139, %c0_140] : memref<2x8x32xf32, #tpu.memory_space<vmem>>, vector<1x8x32xf32>
    %283 = vector.shape_cast %282 : vector<1x8x32xf32> to vector<8x32xf32>
    %284 = vector.shape_cast %281 : vector<8x32xf32> to vector<1x8x32xf32>
    tpu.vector_store %arg7[%c0_138, %c0_139, %c0_140], %284 {strides = array<i32>} : memref<2x8x32xf32, #tpu.memory_space<vmem>>, vector<1x8x32xf32>,
    %c0_141 = arith.constant 0 : index
    %c0_142 = arith.constant 0 : index
    %285 = vector.load %arg12[%c0_141, %c0_142] : memref<8x32xf32, #tpu.memory_space<vmem>>, vector<8x32xf32>
    %c0_143 = arith.constant 0 : index
    %c0_144 = arith.constant 0 : index
    %c0_145 = arith.constant 0 : index
    %286 = vector.load %arg8[%c0_143, %c0_144, %c0_145] : memref<2x8x32xf32, #tpu.memory_space<vmem>>, vector<1x8x32xf32>
    %287 = vector.shape_cast %286 : vector<1x8x32xf32> to vector<8x32xf32>
    %288 = vector.shape_cast %285 : vector<8x32xf32> to vector<1x8x32xf32>
    tpu.vector_store %arg8[%c0_143, %c0_144, %c0_145], %288 {strides = array<i32>} : memref<2x8x32xf32, #tpu.memory_space<vmem>>, vector<1x8x32xf32>,
    %c0_146 = arith.constant 0 : index
    %c0_147 = arith.constant 0 : index
    %289 = vector.load %arg10[%c0_146, %c0_147] : memref<64x32xf32, #tpu.memory_space<vmem>>, vector<64x32xf32>
    %c0_148 = arith.constant 0 : index
    %c0_149 = arith.constant 0 : index
    %290 = vector.load %arg4[%c0_148, %c0_149] : memref<32x128xf32, #tpu.memory_space<vmem>>, vector<32x128xf32>
    %cst_150 = arith.constant dense<0.000000e+00> : vector<64x128xf32>
    %291 = tpu.matmul %289, %290, %cst_150 {dimension_numbers = #tpu.dot_dimension_numbers<[1], [0], [0], [1], [0, 0, 1, 1], [], []>} : vector<64x32xf32>, vector<32x128xf32>, vector<64x128xf32> -> vector<64x128xf32>
    %c0_151 = arith.constant 0 : index
    %c0_152 = arith.constant 0 : index
    %292 = vector.load %arg6[%c0_151, %c0_152] : memref<1x128xf32, #tpu.memory_space<vmem>>, vector<1x128xf32>
    %293 = vector.broadcast %292 : vector<1x128xf32> to vector<64x128xf32>
    %294 = arith.addf %291, %293 : vector<64x128xf32>
    %c0_153 = arith.constant 0 : index
    %c0_154 = arith.constant 0 : index
    %295 = vector.load %arg9[%c0_153, %c0_154] : memref<64x128xf32, #tpu.memory_space<vmem>>, vector<64x128xf32>
    tpu.vector_store %arg9[%c0_153, %c0_154], %294 {strides = array<i32>} : memref<64x128xf32, #tpu.memory_space<vmem>>, vector<64x128xf32>,
    %c0_155 = arith.constant 0 : index
    %c0_156 = arith.constant 0 : index
    %296 = vector.load %arg5[%c0_155, %c0_156] : memref<32x128xf32, #tpu.memory_space<vmem>>, vector<32x128xf32>
    %cst_157 = arith.constant 0.000000e+00 : f32
    %297 = vector.broadcast %cst_157 : f32 to vector<8x32xf32>
    %c0_158 = arith.constant 0 : index
    %c0_159 = arith.constant 0 : index
    %298 = vector.load %arg11[%c0_158, %c0_159] : memref<8x32xf32, #tpu.memory_space<vmem>>, vector<8x32xf32>
    tpu.vector_store %arg11[%c0_158, %c0_159], %297 {strides = array<i32>} : memref<8x32xf32, #tpu.memory_space<vmem>>, vector<8x32xf32>,
    %cst_160 = arith.constant 0.000000e+00 : f32
    %299 = vector.broadcast %cst_160 : f32 to vector<8x32xf32>
    %c0_161 = arith.constant 0 : index
    %c0_162 = arith.constant 0 : index
    %300 = vector.load %arg12[%c0_161, %c0_162] : memref<8x32xf32, #tpu.memory_space<vmem>>, vector<8x32xf32>
    tpu.vector_store %arg12[%c0_161, %c0_162], %299 {strides = array<i32>} : memref<8x32xf32, #tpu.memory_space<vmem>>, vector<8x32xf32>,
    %c0_163 = arith.constant 0 : index
    %c0_164 = arith.constant 0 : index
    %301 = vector.load %arg9[%c0_163, %c0_164] : memref<64x128xf32, #tpu.memory_space<vmem>>, vector<8x128xf32>
    %c0_165 = arith.constant 0 : index
    %c0_166 = arith.constant 0 : index
    %302 = vector.load %arg11[%c0_165, %c0_166] : memref<8x32xf32, #tpu.memory_space<vmem>>, vector<8x32xf32>
    %cst_167 = arith.constant dense<0.000000e+00> : vector<8x128xf32>
    %303 = tpu.matmul %302, %296, %cst_167 {dimension_numbers = #tpu.dot_dimension_numbers<[1], [0], [0], [1], [0, 0, 1, 1], [], []>} : vector<8x32xf32>, vector<32x128xf32>, vector<8x128xf32> -> vector<8x128xf32>
    %304 = arith.addf %301, %303 : vector<8x128xf32>
    %305 = vector.extract_strided_slice %304 {offsets = [0, 0], sizes = [8, 32], strides = [1, 1]} : vector<8x128xf32> to vector<8x32xf32>
    %306 = arith.negf %305 : vector<8x32xf32>
    %307 = math.exp %306 : vector<8x32xf32>
    %cst_168 = arith.constant 1.000000e+00 : f32
    %308 = vector.broadcast %cst_168 : f32 to vector<8x32xf32>
    %309 = arith.addf %308, %307 : vector<8x32xf32>
    %310 = arith.divf %308, %309 : vector<8x32xf32>
    %311 = vector.extract_strided_slice %304 {offsets = [0, 32], sizes = [8, 32], strides = [1, 1]} : vector<8x128xf32> to vector<8x32xf32>
    %312 = arith.negf %311 : vector<8x32xf32>
    %313 = math.exp %312 : vector<8x32xf32>
    %cst_169 = arith.constant 1.000000e+00 : f32
    %314 = vector.broadcast %cst_169 : f32 to vector<8x32xf32>
    %315 = arith.addf %314, %313 : vector<8x32xf32>
    %316 = arith.divf %314, %315 : vector<8x32xf32>
    %317 = vector.extract_strided_slice %304 {offsets = [0, 64], sizes = [8, 32], strides = [1, 1]} : vector<8x128xf32> to vector<8x32xf32>
    %318 = math.tanh %317 : vector<8x32xf32>
    %319 = vector.extract_strided_slice %304 {offsets = [0, 96], sizes = [8, 32], strides = [1, 1]} : vector<8x128xf32> to vector<8x32xf32>
    %320 = arith.negf %319 : vector<8x32xf32>
    %321 = math.exp %320 : vector<8x32xf32>
    %cst_170 = arith.constant 1.000000e+00 : f32
    %322 = vector.broadcast %cst_170 : f32 to vector<8x32xf32>
    %323 = arith.addf %322, %321 : vector<8x32xf32>
    %324 = arith.divf %322, %323 : vector<8x32xf32>
    %c0_171 = arith.constant 0 : index
    %c0_172 = arith.constant 0 : index
    %325 = vector.load %arg12[%c0_171, %c0_172] : memref<8x32xf32, #tpu.memory_space<vmem>>, vector<8x32xf32>
    %326 = arith.mulf %316, %325 : vector<8x32xf32>
    %327 = arith.mulf %310, %318 : vector<8x32xf32>
    %328 = arith.addf %326, %327 : vector<8x32xf32>
    %329 = math.tanh %328 : vector<8x32xf32>
    %330 = arith.mulf %324, %329 : vector<8x32xf32>
    %c0_173 = arith.constant 0 : index
    %c0_174 = arith.constant 0 : index
    %331 = vector.load %arg12[%c0_173, %c0_174] : memref<8x32xf32, #tpu.memory_space<vmem>>, vector<8x32xf32>
    tpu.vector_store %arg12[%c0_173, %c0_174], %328 {strides = array<i32>} : memref<8x32xf32, #tpu.memory_space<vmem>>, vector<8x32xf32>,
    %c0_175 = arith.constant 0 : index
    %c0_176 = arith.constant 0 : index
    %332 = vector.load %arg11[%c0_175, %c0_176] : memref<8x32xf32, #tpu.memory_space<vmem>>, vector<8x32xf32>
    tpu.vector_store %arg11[%c0_175, %c0_176], %330 {strides = array<i32>} : memref<8x32xf32, #tpu.memory_space<vmem>>, vector<8x32xf32>,
    %c8_177 = arith.constant 8 : index
    %c0_178 = arith.constant 0 : index
    %333 = vector.load %arg9[%c8_177, %c0_178] : memref<64x128xf32, #tpu.memory_space<vmem>>, vector<8x128xf32>
    %c0_179 = arith.constant 0 : index
    %c0_180 = arith.constant 0 : index
    %334 = vector.load %arg11[%c0_179, %c0_180] : memref<8x32xf32, #tpu.memory_space<vmem>>, vector<8x32xf32>
    %cst_181 = arith.constant dense<0.000000e+00> : vector<8x128xf32>
    %335 = tpu.matmul %334, %296, %cst_181 {dimension_numbers = #tpu.dot_dimension_numbers<[1], [0], [0], [1], [0, 0, 1, 1], [], []>} : vector<8x32xf32>, vector<32x128xf32>, vector<8x128xf32> -> vector<8x128xf32>
    %336 = arith.addf %333, %335 : vector<8x128xf32>
    %337 = vector.extract_strided_slice %336 {offsets = [0, 0], sizes = [8, 32], strides = [1, 1]} : vector<8x128xf32> to vector<8x32xf32>
    %338 = arith.negf %337 : vector<8x32xf32>
    %339 = math.exp %338 : vector<8x32xf32>
    %cst_182 = arith.constant 1.000000e+00 : f32
    %340 = vector.broadcast %cst_182 : f32 to vector<8x32xf32>
    %341 = arith.addf %340, %339 : vector<8x32xf32>
    %342 = arith.divf %340, %341 : vector<8x32xf32>
    %343 = vector.extract_strided_slice %336 {offsets = [0, 32], sizes = [8, 32], strides = [1, 1]} : vector<8x128xf32> to vector<8x32xf32>
    %344 = arith.negf %343 : vector<8x32xf32>
    %345 = math.exp %344 : vector<8x32xf32>
    %cst_183 = arith.constant 1.000000e+00 : f32
    %346 = vector.broadcast %cst_183 : f32 to vector<8x32xf32>
    %347 = arith.addf %346, %345 : vector<8x32xf32>
    %348 = arith.divf %346, %347 : vector<8x32xf32>
    %349 = vector.extract_strided_slice %336 {offsets = [0, 64], sizes = [8, 32], strides = [1, 1]} : vector<8x128xf32> to vector<8x32xf32>
    %350 = math.tanh %349 : vector<8x32xf32>
    %351 = vector.extract_strided_slice %336 {offsets = [0, 96], sizes = [8, 32], strides = [1, 1]} : vector<8x128xf32> to vector<8x32xf32>
    %352 = arith.negf %351 : vector<8x32xf32>
    %353 = math.exp %352 : vector<8x32xf32>
    %cst_184 = arith.constant 1.000000e+00 : f32
    %354 = vector.broadcast %cst_184 : f32 to vector<8x32xf32>
    %355 = arith.addf %354, %353 : vector<8x32xf32>
    %356 = arith.divf %354, %355 : vector<8x32xf32>
    %c0_185 = arith.constant 0 : index
    %c0_186 = arith.constant 0 : index
    %357 = vector.load %arg12[%c0_185, %c0_186] : memref<8x32xf32, #tpu.memory_space<vmem>>, vector<8x32xf32>
    %358 = arith.mulf %348, %357 : vector<8x32xf32>
    %359 = arith.mulf %342, %350 : vector<8x32xf32>
    %360 = arith.addf %358, %359 : vector<8x32xf32>
    %361 = math.tanh %360 : vector<8x32xf32>
    %362 = arith.mulf %356, %361 : vector<8x32xf32>
    %c0_187 = arith.constant 0 : index
    %c0_188 = arith.constant 0 : index
    %363 = vector.load %arg12[%c0_187, %c0_188] : memref<8x32xf32, #tpu.memory_space<vmem>>, vector<8x32xf32>
    tpu.vector_store %arg12[%c0_187, %c0_188], %360 {strides = array<i32>} : memref<8x32xf32, #tpu.memory_space<vmem>>, vector<8x32xf32>,
    %c0_189 = arith.constant 0 : index
    %c0_190 = arith.constant 0 : index
    %364 = vector.load %arg11[%c0_189, %c0_190] : memref<8x32xf32, #tpu.memory_space<vmem>>, vector<8x32xf32>
    tpu.vector_store %arg11[%c0_189, %c0_190], %362 {strides = array<i32>} : memref<8x32xf32, #tpu.memory_space<vmem>>, vector<8x32xf32>,
    %c16_191 = arith.constant 16 : index
    %c0_192 = arith.constant 0 : index
    %365 = vector.load %arg9[%c16_191, %c0_192] : memref<64x128xf32, #tpu.memory_space<vmem>>, vector<8x128xf32>
    %c0_193 = arith.constant 0 : index
    %c0_194 = arith.constant 0 : index
    %366 = vector.load %arg11[%c0_193, %c0_194] : memref<8x32xf32, #tpu.memory_space<vmem>>, vector<8x32xf32>
    %cst_195 = arith.constant dense<0.000000e+00> : vector<8x128xf32>
    %367 = tpu.matmul %366, %296, %cst_195 {dimension_numbers = #tpu.dot_dimension_numbers<[1], [0], [0], [1], [0, 0, 1, 1], [], []>} : vector<8x32xf32>, vector<32x128xf32>, vector<8x128xf32> -> vector<8x128xf32>
    %368 = arith.addf %365, %367 : vector<8x128xf32>
    %369 = vector.extract_strided_slice %368 {offsets = [0, 0], sizes = [8, 32], strides = [1, 1]} : vector<8x128xf32> to vector<8x32xf32>
    %370 = arith.negf %369 : vector<8x32xf32>
    %371 = math.exp %370 : vector<8x32xf32>
    %cst_196 = arith.constant 1.000000e+00 : f32
    %372 = vector.broadcast %cst_196 : f32 to vector<8x32xf32>
    %373 = arith.addf %372, %371 : vector<8x32xf32>
    %374 = arith.divf %372, %373 : vector<8x32xf32>
    %375 = vector.extract_strided_slice %368 {offsets = [0, 32], sizes = [8, 32], strides = [1, 1]} : vector<8x128xf32> to vector<8x32xf32>
    %376 = arith.negf %375 : vector<8x32xf32>
    %377 = math.exp %376 : vector<8x32xf32>
    %cst_197 = arith.constant 1.000000e+00 : f32
    %378 = vector.broadcast %cst_197 : f32 to vector<8x32xf32>
    %379 = arith.addf %378, %377 : vector<8x32xf32>
    %380 = arith.divf %378, %379 : vector<8x32xf32>
    %381 = vector.extract_strided_slice %368 {offsets = [0, 64], sizes = [8, 32], strides = [1, 1]} : vector<8x128xf32> to vector<8x32xf32>
    %382 = math.tanh %381 : vector<8x32xf32>
    %383 = vector.extract_strided_slice %368 {offsets = [0, 96], sizes = [8, 32], strides = [1, 1]} : vector<8x128xf32> to vector<8x32xf32>
    %384 = arith.negf %383 : vector<8x32xf32>
    %385 = math.exp %384 : vector<8x32xf32>
    %cst_198 = arith.constant 1.000000e+00 : f32
    %386 = vector.broadcast %cst_198 : f32 to vector<8x32xf32>
    %387 = arith.addf %386, %385 : vector<8x32xf32>
    %388 = arith.divf %386, %387 : vector<8x32xf32>
    %c0_199 = arith.constant 0 : index
    %c0_200 = arith.constant 0 : index
    %389 = vector.load %arg12[%c0_199, %c0_200] : memref<8x32xf32, #tpu.memory_space<vmem>>, vector<8x32xf32>
    %390 = arith.mulf %380, %389 : vector<8x32xf32>
    %391 = arith.mulf %374, %382 : vector<8x32xf32>
    %392 = arith.addf %390, %391 : vector<8x32xf32>
    %393 = math.tanh %392 : vector<8x32xf32>
    %394 = arith.mulf %388, %393 : vector<8x32xf32>
    %c0_201 = arith.constant 0 : index
    %c0_202 = arith.constant 0 : index
    %395 = vector.load %arg12[%c0_201, %c0_202] : memref<8x32xf32, #tpu.memory_space<vmem>>, vector<8x32xf32>
    tpu.vector_store %arg12[%c0_201, %c0_202], %392 {strides = array<i32>} : memref<8x32xf32, #tpu.memory_space<vmem>>, vector<8x32xf32>,
    %c0_203 = arith.constant 0 : index
    %c0_204 = arith.constant 0 : index
    %396 = vector.load %arg11[%c0_203, %c0_204] : memref<8x32xf32, #tpu.memory_space<vmem>>, vector<8x32xf32>
    tpu.vector_store %arg11[%c0_203, %c0_204], %394 {strides = array<i32>} : memref<8x32xf32, #tpu.memory_space<vmem>>, vector<8x32xf32>,
    %c24_205 = arith.constant 24 : index
    %c0_206 = arith.constant 0 : index
    %397 = vector.load %arg9[%c24_205, %c0_206] : memref<64x128xf32, #tpu.memory_space<vmem>>, vector<8x128xf32>
    %c0_207 = arith.constant 0 : index
    %c0_208 = arith.constant 0 : index
    %398 = vector.load %arg11[%c0_207, %c0_208] : memref<8x32xf32, #tpu.memory_space<vmem>>, vector<8x32xf32>
    %cst_209 = arith.constant dense<0.000000e+00> : vector<8x128xf32>
    %399 = tpu.matmul %398, %296, %cst_209 {dimension_numbers = #tpu.dot_dimension_numbers<[1], [0], [0], [1], [0, 0, 1, 1], [], []>} : vector<8x32xf32>, vector<32x128xf32>, vector<8x128xf32> -> vector<8x128xf32>
    %400 = arith.addf %397, %399 : vector<8x128xf32>
    %401 = vector.extract_strided_slice %400 {offsets = [0, 0], sizes = [8, 32], strides = [1, 1]} : vector<8x128xf32> to vector<8x32xf32>
    %402 = arith.negf %401 : vector<8x32xf32>
    %403 = math.exp %402 : vector<8x32xf32>
    %cst_210 = arith.constant 1.000000e+00 : f32
    %404 = vector.broadcast %cst_210 : f32 to vector<8x32xf32>
    %405 = arith.addf %404, %403 : vector<8x32xf32>
    %406 = arith.divf %404, %405 : vector<8x32xf32>
    %407 = vector.extract_strided_slice %400 {offsets = [0, 32], sizes = [8, 32], strides = [1, 1]} : vector<8x128xf32> to vector<8x32xf32>
    %408 = arith.negf %407 : vector<8x32xf32>
    %409 = math.exp %408 : vector<8x32xf32>
    %cst_211 = arith.constant 1.000000e+00 : f32
    %410 = vector.broadcast %cst_211 : f32 to vector<8x32xf32>
    %411 = arith.addf %410, %409 : vector<8x32xf32>
    %412 = arith.divf %410, %411 : vector<8x32xf32>
    %413 = vector.extract_strided_slice %400 {offsets = [0, 64], sizes = [8, 32], strides = [1, 1]} : vector<8x128xf32> to vector<8x32xf32>
    %414 = math.tanh %413 : vector<8x32xf32>
    %415 = vector.extract_strided_slice %400 {offsets = [0, 96], sizes = [8, 32], strides = [1, 1]} : vector<8x128xf32> to vector<8x32xf32>
    %416 = arith.negf %415 : vector<8x32xf32>
    %417 = math.exp %416 : vector<8x32xf32>
    %cst_212 = arith.constant 1.000000e+00 : f32
    %418 = vector.broadcast %cst_212 : f32 to vector<8x32xf32>
    %419 = arith.addf %418, %417 : vector<8x32xf32>
    %420 = arith.divf %418, %419 : vector<8x32xf32>
    %c0_213 = arith.constant 0 : index
    %c0_214 = arith.constant 0 : index
    %421 = vector.load %arg12[%c0_213, %c0_214] : memref<8x32xf32, #tpu.memory_space<vmem>>, vector<8x32xf32>
    %422 = arith.mulf %412, %421 : vector<8x32xf32>
    %423 = arith.mulf %406, %414 : vector<8x32xf32>
    %424 = arith.addf %422, %423 : vector<8x32xf32>
    %425 = math.tanh %424 : vector<8x32xf32>
    %426 = arith.mulf %420, %425 : vector<8x32xf32>
    %c0_215 = arith.constant 0 : index
    %c0_216 = arith.constant 0 : index
    %427 = vector.load %arg12[%c0_215, %c0_216] : memref<8x32xf32, #tpu.memory_space<vmem>>, vector<8x32xf32>
    tpu.vector_store %arg12[%c0_215, %c0_216], %424 {strides = array<i32>} : memref<8x32xf32, #tpu.memory_space<vmem>>, vector<8x32xf32>,
    %c0_217 = arith.constant 0 : index
    %c0_218 = arith.constant 0 : index
    %428 = vector.load %arg11[%c0_217, %c0_218] : memref<8x32xf32, #tpu.memory_space<vmem>>, vector<8x32xf32>
    tpu.vector_store %arg11[%c0_217, %c0_218], %426 {strides = array<i32>} : memref<8x32xf32, #tpu.memory_space<vmem>>, vector<8x32xf32>,
    %c32_219 = arith.constant 32 : index
    %c0_220 = arith.constant 0 : index
    %429 = vector.load %arg9[%c32_219, %c0_220] : memref<64x128xf32, #tpu.memory_space<vmem>>, vector<8x128xf32>
    %c0_221 = arith.constant 0 : index
    %c0_222 = arith.constant 0 : index
    %430 = vector.load %arg11[%c0_221, %c0_222] : memref<8x32xf32, #tpu.memory_space<vmem>>, vector<8x32xf32>
    %cst_223 = arith.constant dense<0.000000e+00> : vector<8x128xf32>
    %431 = tpu.matmul %430, %296, %cst_223 {dimension_numbers = #tpu.dot_dimension_numbers<[1], [0], [0], [1], [0, 0, 1, 1], [], []>} : vector<8x32xf32>, vector<32x128xf32>, vector<8x128xf32> -> vector<8x128xf32>
    %432 = arith.addf %429, %431 : vector<8x128xf32>
    %433 = vector.extract_strided_slice %432 {offsets = [0, 0], sizes = [8, 32], strides = [1, 1]} : vector<8x128xf32> to vector<8x32xf32>
    %434 = arith.negf %433 : vector<8x32xf32>
    %435 = math.exp %434 : vector<8x32xf32>
    %cst_224 = arith.constant 1.000000e+00 : f32
    %436 = vector.broadcast %cst_224 : f32 to vector<8x32xf32>
    %437 = arith.addf %436, %435 : vector<8x32xf32>
    %438 = arith.divf %436, %437 : vector<8x32xf32>
    %439 = vector.extract_strided_slice %432 {offsets = [0, 32], sizes = [8, 32], strides = [1, 1]} : vector<8x128xf32> to vector<8x32xf32>
    %440 = arith.negf %439 : vector<8x32xf32>
    %441 = math.exp %440 : vector<8x32xf32>
    %cst_225 = arith.constant 1.000000e+00 : f32
    %442 = vector.broadcast %cst_225 : f32 to vector<8x32xf32>
    %443 = arith.addf %442, %441 : vector<8x32xf32>
    %444 = arith.divf %442, %443 : vector<8x32xf32>
    %445 = vector.extract_strided_slice %432 {offsets = [0, 64], sizes = [8, 32], strides = [1, 1]} : vector<8x128xf32> to vector<8x32xf32>
    %446 = math.tanh %445 : vector<8x32xf32>
    %447 = vector.extract_strided_slice %432 {offsets = [0, 96], sizes = [8, 32], strides = [1, 1]} : vector<8x128xf32> to vector<8x32xf32>
    %448 = arith.negf %447 : vector<8x32xf32>
    %449 = math.exp %448 : vector<8x32xf32>
    %cst_226 = arith.constant 1.000000e+00 : f32
    %450 = vector.broadcast %cst_226 : f32 to vector<8x32xf32>
    %451 = arith.addf %450, %449 : vector<8x32xf32>
    %452 = arith.divf %450, %451 : vector<8x32xf32>
    %c0_227 = arith.constant 0 : index
    %c0_228 = arith.constant 0 : index
    %453 = vector.load %arg12[%c0_227, %c0_228] : memref<8x32xf32, #tpu.memory_space<vmem>>, vector<8x32xf32>
    %454 = arith.mulf %444, %453 : vector<8x32xf32>
    %455 = arith.mulf %438, %446 : vector<8x32xf32>
    %456 = arith.addf %454, %455 : vector<8x32xf32>
    %457 = math.tanh %456 : vector<8x32xf32>
    %458 = arith.mulf %452, %457 : vector<8x32xf32>
    %c0_229 = arith.constant 0 : index
    %c0_230 = arith.constant 0 : index
    %459 = vector.load %arg12[%c0_229, %c0_230] : memref<8x32xf32, #tpu.memory_space<vmem>>, vector<8x32xf32>
    tpu.vector_store %arg12[%c0_229, %c0_230], %456 {strides = array<i32>} : memref<8x32xf32, #tpu.memory_space<vmem>>, vector<8x32xf32>,
    %c0_231 = arith.constant 0 : index
    %c0_232 = arith.constant 0 : index
    %460 = vector.load %arg11[%c0_231, %c0_232] : memref<8x32xf32, #tpu.memory_space<vmem>>, vector<8x32xf32>
    tpu.vector_store %arg11[%c0_231, %c0_232], %458 {strides = array<i32>} : memref<8x32xf32, #tpu.memory_space<vmem>>, vector<8x32xf32>,
    %c40_233 = arith.constant 40 : index
    %c0_234 = arith.constant 0 : index
    %461 = vector.load %arg9[%c40_233, %c0_234] : memref<64x128xf32, #tpu.memory_space<vmem>>, vector<8x128xf32>
    %c0_235 = arith.constant 0 : index
    %c0_236 = arith.constant 0 : index
    %462 = vector.load %arg11[%c0_235, %c0_236] : memref<8x32xf32, #tpu.memory_space<vmem>>, vector<8x32xf32>
    %cst_237 = arith.constant dense<0.000000e+00> : vector<8x128xf32>
    %463 = tpu.matmul %462, %296, %cst_237 {dimension_numbers = #tpu.dot_dimension_numbers<[1], [0], [0], [1], [0, 0, 1, 1], [], []>} : vector<8x32xf32>, vector<32x128xf32>, vector<8x128xf32> -> vector<8x128xf32>
    %464 = arith.addf %461, %463 : vector<8x128xf32>
    %465 = vector.extract_strided_slice %464 {offsets = [0, 0], sizes = [8, 32], strides = [1, 1]} : vector<8x128xf32> to vector<8x32xf32>
    %466 = arith.negf %465 : vector<8x32xf32>
    %467 = math.exp %466 : vector<8x32xf32>
    %cst_238 = arith.constant 1.000000e+00 : f32
    %468 = vector.broadcast %cst_238 : f32 to vector<8x32xf32>
    %469 = arith.addf %468, %467 : vector<8x32xf32>
    %470 = arith.divf %468, %469 : vector<8x32xf32>
    %471 = vector.extract_strided_slice %464 {offsets = [0, 32], sizes = [8, 32], strides = [1, 1]} : vector<8x128xf32> to vector<8x32xf32>
    %472 = arith.negf %471 : vector<8x32xf32>
    %473 = math.exp %472 : vector<8x32xf32>
    %cst_239 = arith.constant 1.000000e+00 : f32
    %474 = vector.broadcast %cst_239 : f32 to vector<8x32xf32>
    %475 = arith.addf %474, %473 : vector<8x32xf32>
    %476 = arith.divf %474, %475 : vector<8x32xf32>
    %477 = vector.extract_strided_slice %464 {offsets = [0, 64], sizes = [8, 32], strides = [1, 1]} : vector<8x128xf32> to vector<8x32xf32>
    %478 = math.tanh %477 : vector<8x32xf32>
    %479 = vector.extract_strided_slice %464 {offsets = [0, 96], sizes = [8, 32], strides = [1, 1]} : vector<8x128xf32> to vector<8x32xf32>
    %480 = arith.negf %479 : vector<8x32xf32>
    %481 = math.exp %480 : vector<8x32xf32>
    %cst_240 = arith.constant 1.000000e+00 : f32
    %482 = vector.broadcast %cst_240 : f32 to vector<8x32xf32>
    %483 = arith.addf %482, %481 : vector<8x32xf32>
    %484 = arith.divf %482, %483 : vector<8x32xf32>
    %c0_241 = arith.constant 0 : index
    %c0_242 = arith.constant 0 : index
    %485 = vector.load %arg12[%c0_241, %c0_242] : memref<8x32xf32, #tpu.memory_space<vmem>>, vector<8x32xf32>
    %486 = arith.mulf %476, %485 : vector<8x32xf32>
    %487 = arith.mulf %470, %478 : vector<8x32xf32>
    %488 = arith.addf %486, %487 : vector<8x32xf32>
    %489 = math.tanh %488 : vector<8x32xf32>
    %490 = arith.mulf %484, %489 : vector<8x32xf32>
    %c0_243 = arith.constant 0 : index
    %c0_244 = arith.constant 0 : index
    %491 = vector.load %arg12[%c0_243, %c0_244] : memref<8x32xf32, #tpu.memory_space<vmem>>, vector<8x32xf32>
    tpu.vector_store %arg12[%c0_243, %c0_244], %488 {strides = array<i32>} : memref<8x32xf32, #tpu.memory_space<vmem>>, vector<8x32xf32>,
    %c0_245 = arith.constant 0 : index
    %c0_246 = arith.constant 0 : index
    %492 = vector.load %arg11[%c0_245, %c0_246] : memref<8x32xf32, #tpu.memory_space<vmem>>, vector<8x32xf32>
    tpu.vector_store %arg11[%c0_245, %c0_246], %490 {strides = array<i32>} : memref<8x32xf32, #tpu.memory_space<vmem>>, vector<8x32xf32>,
    %c48_247 = arith.constant 48 : index
    %c0_248 = arith.constant 0 : index
    %493 = vector.load %arg9[%c48_247, %c0_248] : memref<64x128xf32, #tpu.memory_space<vmem>>, vector<8x128xf32>
    %c0_249 = arith.constant 0 : index
    %c0_250 = arith.constant 0 : index
    %494 = vector.load %arg11[%c0_249, %c0_250] : memref<8x32xf32, #tpu.memory_space<vmem>>, vector<8x32xf32>
    %cst_251 = arith.constant dense<0.000000e+00> : vector<8x128xf32>
    %495 = tpu.matmul %494, %296, %cst_251 {dimension_numbers = #tpu.dot_dimension_numbers<[1], [0], [0], [1], [0, 0, 1, 1], [], []>} : vector<8x32xf32>, vector<32x128xf32>, vector<8x128xf32> -> vector<8x128xf32>
    %496 = arith.addf %493, %495 : vector<8x128xf32>
    %497 = vector.extract_strided_slice %496 {offsets = [0, 0], sizes = [8, 32], strides = [1, 1]} : vector<8x128xf32> to vector<8x32xf32>
    %498 = arith.negf %497 : vector<8x32xf32>
    %499 = math.exp %498 : vector<8x32xf32>
    %cst_252 = arith.constant 1.000000e+00 : f32
    %500 = vector.broadcast %cst_252 : f32 to vector<8x32xf32>
    %501 = arith.addf %500, %499 : vector<8x32xf32>
    %502 = arith.divf %500, %501 : vector<8x32xf32>
    %503 = vector.extract_strided_slice %496 {offsets = [0, 32], sizes = [8, 32], strides = [1, 1]} : vector<8x128xf32> to vector<8x32xf32>
    %504 = arith.negf %503 : vector<8x32xf32>
    %505 = math.exp %504 : vector<8x32xf32>
    %cst_253 = arith.constant 1.000000e+00 : f32
    %506 = vector.broadcast %cst_253 : f32 to vector<8x32xf32>
    %507 = arith.addf %506, %505 : vector<8x32xf32>
    %508 = arith.divf %506, %507 : vector<8x32xf32>
    %509 = vector.extract_strided_slice %496 {offsets = [0, 64], sizes = [8, 32], strides = [1, 1]} : vector<8x128xf32> to vector<8x32xf32>
    %510 = math.tanh %509 : vector<8x32xf32>
    %511 = vector.extract_strided_slice %496 {offsets = [0, 96], sizes = [8, 32], strides = [1, 1]} : vector<8x128xf32> to vector<8x32xf32>
    %512 = arith.negf %511 : vector<8x32xf32>
    %513 = math.exp %512 : vector<8x32xf32>
    %cst_254 = arith.constant 1.000000e+00 : f32
    %514 = vector.broadcast %cst_254 : f32 to vector<8x32xf32>
    %515 = arith.addf %514, %513 : vector<8x32xf32>
    %516 = arith.divf %514, %515 : vector<8x32xf32>
    %c0_255 = arith.constant 0 : index
    %c0_256 = arith.constant 0 : index
    %517 = vector.load %arg12[%c0_255, %c0_256] : memref<8x32xf32, #tpu.memory_space<vmem>>, vector<8x32xf32>
    %518 = arith.mulf %508, %517 : vector<8x32xf32>
    %519 = arith.mulf %502, %510 : vector<8x32xf32>
    %520 = arith.addf %518, %519 : vector<8x32xf32>
    %521 = math.tanh %520 : vector<8x32xf32>
    %522 = arith.mulf %516, %521 : vector<8x32xf32>
    %c0_257 = arith.constant 0 : index
    %c0_258 = arith.constant 0 : index
    %523 = vector.load %arg12[%c0_257, %c0_258] : memref<8x32xf32, #tpu.memory_space<vmem>>, vector<8x32xf32>
    tpu.vector_store %arg12[%c0_257, %c0_258], %520 {strides = array<i32>} : memref<8x32xf32, #tpu.memory_space<vmem>>, vector<8x32xf32>,
    %c0_259 = arith.constant 0 : index
    %c0_260 = arith.constant 0 : index
    %524 = vector.load %arg11[%c0_259, %c0_260] : memref<8x32xf32, #tpu.memory_space<vmem>>, vector<8x32xf32>
    tpu.vector_store %arg11[%c0_259, %c0_260], %522 {strides = array<i32>} : memref<8x32xf32, #tpu.memory_space<vmem>>, vector<8x32xf32>,
    %c56_261 = arith.constant 56 : index
    %c0_262 = arith.constant 0 : index
    %525 = vector.load %arg9[%c56_261, %c0_262] : memref<64x128xf32, #tpu.memory_space<vmem>>, vector<8x128xf32>
    %c0_263 = arith.constant 0 : index
    %c0_264 = arith.constant 0 : index
    %526 = vector.load %arg11[%c0_263, %c0_264] : memref<8x32xf32, #tpu.memory_space<vmem>>, vector<8x32xf32>
    %cst_265 = arith.constant dense<0.000000e+00> : vector<8x128xf32>
    %527 = tpu.matmul %526, %296, %cst_265 {dimension_numbers = #tpu.dot_dimension_numbers<[1], [0], [0], [1], [0, 0, 1, 1], [], []>} : vector<8x32xf32>, vector<32x128xf32>, vector<8x128xf32> -> vector<8x128xf32>
    %528 = arith.addf %525, %527 : vector<8x128xf32>
    %529 = vector.extract_strided_slice %528 {offsets = [0, 0], sizes = [8, 32], strides = [1, 1]} : vector<8x128xf32> to vector<8x32xf32>
    %530 = arith.negf %529 : vector<8x32xf32>
    %531 = math.exp %530 : vector<8x32xf32>
    %cst_266 = arith.constant 1.000000e+00 : f32
    %532 = vector.broadcast %cst_266 : f32 to vector<8x32xf32>
    %533 = arith.addf %532, %531 : vector<8x32xf32>
    %534 = arith.divf %532, %533 : vector<8x32xf32>
    %535 = vector.extract_strided_slice %528 {offsets = [0, 32], sizes = [8, 32], strides = [1, 1]} : vector<8x128xf32> to vector<8x32xf32>
    %536 = arith.negf %535 : vector<8x32xf32>
    %537 = math.exp %536 : vector<8x32xf32>
    %cst_267 = arith.constant 1.000000e+00 : f32
    %538 = vector.broadcast %cst_267 : f32 to vector<8x32xf32>
    %539 = arith.addf %538, %537 : vector<8x32xf32>
    %540 = arith.divf %538, %539 : vector<8x32xf32>
    %541 = vector.extract_strided_slice %528 {offsets = [0, 64], sizes = [8, 32], strides = [1, 1]} : vector<8x128xf32> to vector<8x32xf32>
    %542 = math.tanh %541 : vector<8x32xf32>
    %543 = vector.extract_strided_slice %528 {offsets = [0, 96], sizes = [8, 32], strides = [1, 1]} : vector<8x128xf32> to vector<8x32xf32>
    %544 = arith.negf %543 : vector<8x32xf32>
    %545 = math.exp %544 : vector<8x32xf32>
    %cst_268 = arith.constant 1.000000e+00 : f32
    %546 = vector.broadcast %cst_268 : f32 to vector<8x32xf32>
    %547 = arith.addf %546, %545 : vector<8x32xf32>
    %548 = arith.divf %546, %547 : vector<8x32xf32>
    %c0_269 = arith.constant 0 : index
    %c0_270 = arith.constant 0 : index
    %549 = vector.load %arg12[%c0_269, %c0_270] : memref<8x32xf32, #tpu.memory_space<vmem>>, vector<8x32xf32>
    %550 = arith.mulf %540, %549 : vector<8x32xf32>
    %551 = arith.mulf %534, %542 : vector<8x32xf32>
    %552 = arith.addf %550, %551 : vector<8x32xf32>
    %553 = math.tanh %552 : vector<8x32xf32>
    %554 = arith.mulf %548, %553 : vector<8x32xf32>
    %c0_271 = arith.constant 0 : index
    %c0_272 = arith.constant 0 : index
    %555 = vector.load %arg12[%c0_271, %c0_272] : memref<8x32xf32, #tpu.memory_space<vmem>>, vector<8x32xf32>
    tpu.vector_store %arg12[%c0_271, %c0_272], %552 {strides = array<i32>} : memref<8x32xf32, #tpu.memory_space<vmem>>, vector<8x32xf32>,
    %c0_273 = arith.constant 0 : index
    %c0_274 = arith.constant 0 : index
    %556 = vector.load %arg11[%c0_273, %c0_274] : memref<8x32xf32, #tpu.memory_space<vmem>>, vector<8x32xf32>
    tpu.vector_store %arg11[%c0_273, %c0_274], %554 {strides = array<i32>} : memref<8x32xf32, #tpu.memory_space<vmem>>, vector<8x32xf32>,
    %c0_275 = arith.constant 0 : index
    %c0_276 = arith.constant 0 : index
    %557 = vector.load %arg11[%c0_275, %c0_276] : memref<8x32xf32, #tpu.memory_space<vmem>>, vector<8x32xf32>
    %c1 = arith.constant 1 : index
    %c0_277 = arith.constant 0 : index
    %c0_278 = arith.constant 0 : index
    %558 = vector.load %arg7[%c1, %c0_277, %c0_278] : memref<2x8x32xf32, #tpu.memory_space<vmem>>, vector<1x8x32xf32>
    %559 = vector.shape_cast %558 : vector<1x8x32xf32> to vector<8x32xf32>
    %560 = vector.shape_cast %557 : vector<8x32xf32> to vector<1x8x32xf32>
    tpu.vector_store %arg7[%c1, %c0_277, %c0_278], %560 {strides = array<i32>} : memref<2x8x32xf32, #tpu.memory_space<vmem>>, vector<1x8x32xf32>,
    %c0_279 = arith.constant 0 : index
    %c0_280 = arith.constant 0 : index
    %561 = vector.load %arg12[%c0_279, %c0_280] : memref<8x32xf32, #tpu.memory_space<vmem>>, vector<8x32xf32>
    %c1_281 = arith.constant 1 : index
    %c0_282 = arith.constant 0 : index
    %c0_283 = arith.constant 0 : index
    %562 = vector.load %arg8[%c1_281, %c0_282, %c0_283] : memref<2x8x32xf32, #tpu.memory_space<vmem>>, vector<1x8x32xf32>
    %563 = vector.shape_cast %562 : vector<1x8x32xf32> to vector<8x32xf32>
    %564 = vector.shape_cast %561 : vector<8x32xf32> to vector<1x8x32xf32>
    tpu.vector_store %arg8[%c1_281, %c0_282, %c0_283], %564 {strides = array<i32>} : memref<2x8x32xf32, #tpu.memory_space<vmem>>, vector<1x8x32xf32>,
    return
  }
}

</mosaic_0001>

<llo_original>
// kernel: _lambda_.1
$region0: #{_lambda_.1}
  #allocation0 [shape = 'u32[]', space=smem, size = 0x4, offset = 0x4, fixed_abs, tag = 'smem constant byte address 0x4 - core index']
  #allocation1 [shape = 'u32[144,128]{1,0:T(1,128)}', space=vmem, size = 0x12000, scoped, tag = 'internal scratch']
  #allocation2 [shape = 'f32[64,128]{1,0:T(8,128)}', space=vmem, size = 0x8000, scoped, tag = 'scratch operand']
  #allocation3 [shape = 'f32[64,32]{1,0:T(8,128)}', space=vmem, size = 0x8000, scoped, tag = 'scratch operand']
  #allocation4 [shape = 'f32[8,32]{1,0:T(8,128)}', space=vmem, size = 0x1000, scoped, tag = 'scratch operand']
  #allocation5 [shape = 'f32[8,32]{1,0:T(8,128)}', space=vmem, size = 0x1000, scoped, tag = 'scratch operand']
  %s0 = inlined_call_operand.vmem [shape: s32[64,1], index: 0, kind: input, shape index: {}]
  %s1 = inlined_call_operand.vmem [shape: f32[50,128], index: 1, kind: input, shape index: {}]
  %s2 = inlined_call_operand.hbm [shape: f32[32,128], index: 2, kind: input, shape index: {}]
  %s3 = inlined_call_operand.vmem [shape: f32[1,128], index: 3, kind: input, shape index: {}]
  %s4 = inlined_call_operand.hbm [shape: f32[32,128], index: 4, kind: input, shape index: {}]
  %s5 = inlined_call_operand.vmem [shape: f32[32,128], index: 5, kind: input, shape index: {}]
  %s6 = inlined_call_operand.vmem [shape: f32[1,128], index: 6, kind: input, shape index: {}]
  %s7 = inlined_call_operand.vmem [shape: f32[2,8,32], index: 7, kind: output, shape index: {0}]
  %s8 = inlined_call_operand.vmem [shape: f32[2,8,32], index: 8, kind: output, shape index: {1}]
  %9 = xla_tuple %s7, %s8
  %s10 = sld [smem:[#allocation0]]
  $region54: #{_lambda_.1} parent=0
    _
  %s12 = ssub.s32 1, %s10
  %s13 = scalar_select 0, %s12, %s10
  $region1: #{_lambda_.1} parent=0
    #allocation6 [shape = 'u8[16384]{0}', space=vmem, size = 0x4000, scoped, tag = 'input window, operand 2, single buffered']
    #allocation7 [shape = 's32[1]{0}', space=sflag, size = 0x4, scoped, tag = 'scoped memory for _lambda_.1']
    #allocation8 [shape = 'u8[16384]{0}', space=vmem, size = 0x4000, scoped, tag = 'input window, operand 4, single buffered']
    #allocation9 [shape = 's32[1]{0}', space=sflag, size = 0x4, scoped, tag = 'scoped memory for _lambda_.1']
    %14 = vsyncpa [#allocation7], 0
    %15 = vsyncpa [#allocation9], 0
    // Predicated region
    $region2: #{_lambda_.1} parent=1 // pred_check
      _
    $region3: #{_lambda_.1} parent=1 // pred_check_branch
      %17 = sbr.rel (0) target = $region5
    $region4: #{_lambda_.1} parent=1 // pred_region
      _
    $region5: #{_lambda_.1} parent=1 // pred_fallthru
      _
    // Predicated region
    $region6: #{_lambda_.1} parent=1 // pred_check
      _
    $region7: #{_lambda_.1} parent=1 // pred_check_branch
      %19 = sbr.rel (0) target = $region9
    $region8: #{_lambda_.1} parent=1 // pred_region
      _
    $region9: #{_lambda_.1} parent=1 // pred_fallthru
      _
    // Predicated region
    $region10: #{_lambda_.1} parent=1 // pred_check
      _
    $region11: #{_lambda_.1} parent=1 // pred_check_branch
      %21 = sbr.rel (0) target = $region13
    $region12: #{_lambda_.1} parent=1 // pred_region
      %s23 = ssub.s32 512, 512
      %24 = vsyncadd [#allocation7], %s23
      %s25 = sshll.u32 [#allocation6], 4
      %s26 = int_to_ptr.vmem [resolvable:$true] %s25
      %31 = dma.hbm_to_vmem [thread:$0]  %s2, 512, %s26, [#allocation7], 128, 128, 8
    $region13: #{_lambda_.1} parent=1 // pred_fallthru
      _
    // Predicated region
    $region14: #{_lambda_.1} parent=1 // pred_check
      _
    $region15: #{_lambda_.1} parent=1 // pred_check_branch
      %33 = sbr.rel (0) target = $region17
    $region16: #{_lambda_.1} parent=1 // pred_region
      _
    $region17: #{_lambda_.1} parent=1 // pred_fallthru
      _
    // Predicated region
    $region18: #{_lambda_.1} parent=1 // pred_check
      _
    $region19: #{_lambda_.1} parent=1 // pred_check_branch
      %35 = sbr.rel (0) target = $region21
    $region20: #{_lambda_.1} parent=1 // pred_region
      %s37 = ssub.s32 512, 512
      %38 = vsyncadd [#allocation9], %s37
      %s39 = sshll.u32 [#allocation8], 4
      %s40 = int_to_ptr.vmem [resolvable:$true] %s39
      %45 = dma.hbm_to_vmem [thread:$0]  %s4, 512, %s40, [#allocation9], 128, 128, 8
    $region21: #{_lambda_.1} parent=1 // pred_fallthru
      _
    // Predicated region
    $region22: #{_lambda_.1} parent=1 // pred_check
      _
    $region23: #{_lambda_.1} parent=1 // pred_check_branch
      %47 = sbr.rel (0) target = $region25
    $region24: #{_lambda_.1} parent=1 // pred_region
      _
    $region25: #{_lambda_.1} parent=1 // pred_fallthru
      _
    // Predicated region
    $region26: #{_lambda_.1} parent=1 // pred_check
      _
    $region27: #{_lambda_.1} parent=1 // pred_check_branch
      %49 = sbr.rel (0) target = $region29
    $region28: #{_lambda_.1} parent=1 // pred_region
      _
    $region29: #{_lambda_.1} parent=1 // pred_fallthru
      _
    // Predicated region
    $region30: #{_lambda_.1} parent=1 // pred_check
      _
    $region31: #{_lambda_.1} parent=1 // pred_check_branch
      %51 = sbr.rel (0) target = $region33
    $region32: #{_lambda_.1} parent=1 // pred_region
      %52 = dma.done [#allocation7], 512
    $region33: #{_lambda_.1} parent=1 // pred_fallthru
      _
    // Predicated region
    $region34: #{_lambda_.1} parent=1 // pred_check
      _
    $region35: #{_lambda_.1} parent=1 // pred_check_branch
      %54 = sbr.rel (0) target = $region37
    $region36: #{_lambda_.1} parent=1 // pred_region
      %55 = dma.done [#allocation9], 512
    $region37: #{_lambda_.1} parent=1 // pred_fallthru
      _
    %v56 = vld [vmem:[%s0] sm:$0xff]
    %v57 = vld [vmem:[%s0 + $0x8] sm:$0xff]
    %v58 = vld [vmem:[%s0 + $0x10] sm:$0xff]
    %v59 = vld [vmem:[%s0 + $0x18] sm:$0xff]
    %v60 = vld [vmem:[%s0 + $0x20] sm:$0xff]
    %v61 = vld [vmem:[%s0 + $0x28] sm:$0xff]
    %v62 = vld [vmem:[%s0 + $0x30] sm:$0xff]
    %v63 = vld [vmem:[%s0 + $0x38] sm:$0xff]
    %v64 = vlaneseq
    %v65 = vand.u32 %v64, 127
    %66 = vset.pattern.permute.xlu0 0
    %67 = vperm.xlu0 %66, %v56
    %v68 = vpop.permute.xlu0 %67
    %69 = vset.pattern.permute.xlu0 0
    %70 = vperm.xlu0 %69, %v57
    %v71 = vpop.permute.xlu0 %70
    %72 = vset.pattern.permute.xlu0 0
    %73 = vperm.xlu0 %72, %v58
    %v74 = vpop.permute.xlu0 %73
    %75 = vset.pattern.permute.xlu0 0
    %76 = vperm.xlu0 %75, %v59
    %v77 = vpop.permute.xlu0 %76
    %78 = vset.pattern.permute.xlu0 0
    %79 = vperm.xlu0 %78, %v60
    %v80 = vpop.permute.xlu0 %79
    %81 = vset.pattern.permute.xlu0 0
    %82 = vperm.xlu0 %81, %v61
    %v83 = vpop.permute.xlu0 %82
    %84 = vset.pattern.permute.xlu0 0
    %85 = vperm.xlu0 %84, %v62
    %v86 = vpop.permute.xlu0 %85
    %87 = vset.pattern.permute.xlu0 0
    %88 = vperm.xlu0 %87, %v63
    %v89 = vpop.permute.xlu0 %88
    %vm90 = vcmp.eq.s32.totalorder %v68, %v65
    %vm91 = vcmp.eq.s32.totalorder %v71, %v65
    %vm92 = vcmp.eq.s32.totalorder %v74, %v65
    %vm93 = vcmp.eq.s32.totalorder %v77, %v65
    %vm94 = vcmp.eq.s32.totalorder %v80, %v65
    %vm95 = vcmp.eq.s32.totalorder %v83, %v65
    %vm96 = vcmp.eq.s32.totalorder %v86, %v65
    %vm97 = vcmp.eq.s32.totalorder %v89, %v65
    %v98 = vsel %vm90, 1, 0
    %v99 = vsel %vm91, 1, 0
    %v100 = vsel %vm92, 1, 0
    %v101 = vsel %vm93, 1, 0
    %v102 = vsel %vm94, 1, 0
    %v103 = vsel %vm95, 1, 0
    %v104 = vsel %vm96, 1, 0
    %v105 = vsel %vm97, 1, 0
    %v106 = vcvt.s32.f32 %v98
    %v107 = vcvt.s32.f32 %v99
    %v108 = vcvt.s32.f32 %v100
    %v109 = vcvt.s32.f32 %v101
    %v110 = vcvt.s32.f32 %v102
    %v111 = vcvt.s32.f32 %v103
    %v112 = vcvt.s32.f32 %v104
    %v113 = vcvt.s32.f32 %v105
    %v114 = vld [vmem:[%s1] sm:$0xff]
    %v115 = vld [vmem:[%s1 + $0x8] sm:$0xff]
    %v116 = vld [vmem:[%s1 + $0x10] sm:$0xff]
    %v117 = vld [vmem:[%s1 + $0x18] sm:$0xff]
    %v118 = vld [vmem:[%s1 + $0x20] sm:$0xff]
    %v119 = vld [vmem:[%s1 + $0x28] sm:$0xff]
    %v120 = vld [vmem:[%s1 + $0x30] sm:$0x3]
    %v121 = vld [vmem:[%s3] sm:$0x1]
    %v123 = vlaneseq
    %v124 = vshrl.u32 %v123, 7
    %v125 = vsub.s32 0, %v124
    %v126 = vrot.slane %v121, %v125
    %vm128 = vcmask 408576
    %v130 = vsel %vm128, %v106, 0
    %v133 = vsel %vm128, %v107, 0
    %v136 = vsel %vm128, %v108, 0
    %v139 = vsel %vm128, %v109, 0
    %v142 = vsel %vm128, %v110, 0
    %v145 = vsel %vm128, %v111, 0
    %v148 = vsel %vm128, %v112, 0
    %v151 = vsel %vm128, %v113, 0
    %vm153 = vcmask 1041408
    %v155 = vsel %vm153, %v120, 0
    %157 = vmatprep.subr.mxu0 0.0
    %158 = vmatpush1.msra.mxu0 %v114
    %159 = vmatprep.subr.mxu0 0.0
    %160 = vmatpush1.msra.mxu0 %v115
    %161 = vmatprep.subr.mxu0 0.0
    %162 = vmatpush1.msra.mxu0 %v116
    %163 = vmatprep.subr.mxu0 0.0
    %164 = vmatpush1.msra.mxu0 %v117
    %165 = vmatprep.subr.mxu0 0.0
    %166 = vmatpush1.msra.mxu0 %v118
    %167 = vmatprep.subr.mxu0 0.0
    %168 = vmatpush1.msra.mxu0 %v119
    %169 = vmatprep.subr.mxu0 0.0
    %170 = vmatpush1.msra.mxu0 %v155
    %171 = vmatprep.subr.mxu0 0.0
    %172 = vmatpush1.msra.mxu0 0.0
    %173 = vmatprep.subr.mxu0 0.0
    %174 = vmatpush1.msra.mxu0 0.0
    %175 = vmatprep.subr.mxu0 0.0
    %176 = vmatpush1.msra.mxu0 0.0
    %177 = vmatprep.subr.mxu0 0.0
    %178 = vmatpush1.msra.mxu0 0.0
    %179 = vmatprep.subr.mxu0 0.0
    %180 = vmatpush1.msra.mxu0 0.0
    %181 = vmatprep.subr.mxu0 0.0
    %182 = vmatpush1.msra.mxu0 0.0
    %183 = vmatprep.subr.mxu0 0.0
    %184 = vmatpush1.msra.mxu0 0.0
    %185 = vmatprep.subr.mxu0 0.0
    %186 = vmatpush1.msra.mxu0 0.0
    %187 = vmatprep.subr.mxu0 0.0
    %188 = vmatpush1.msra.mxu0 0.0
    %189 = vmatprep.subr.mxu0 0.0
    %190 = vmatpush1.msra.mxu0 0.0
    %191 = vmatprep.subr.mxu0 0.0
    %192 = vmatpush1.msra.mxu0 0.0
    %193 = vmatprep.subr.mxu0 0.0
    %194 = vmatpush1.msra.mxu0 0.0
    %195 = vmatprep.subr.mxu0 0.0
    %196 = vmatpush1.msra.mxu0 0.0
    %197 = vmatprep.subr.mxu0 0.0
    %198 = vmatpush1.msra.mxu0 0.0
    %199 = vmatprep.subr.mxu0 0.0
    %200 = vmatpush1.msra.mxu0 0.0
    %201 = vmatprep.subr.mxu0 0.0
    %202 = vmatpush1.msra.mxu0 0.0
    %203 = vmatprep.subr.mxu0 0.0
    %204 = vmatpush1.msra.mxu0 0.0
    %205 = vmatprep.subr.mxu0 0.0
    %206 = vmatpush1.msra.mxu0 0.0
    %207 = vmatprep.subr.mxu0 0.0
    %208 = vmatpush1.msra.mxu0 0.0
    %209 = vmatprep.subr.mxu0 0.0
    %210 = vmatpush1.msra.mxu0 0.0
    %211 = vmatprep.subr.mxu0 0.0
    %212 = vmatpush1.msra.mxu0 0.0
    %213 = vmatprep.subr.mxu0 0.0
    %214 = vmatpush1.msra.mxu0 0.0
    %215 = vmatprep.subr.mxu0 0.0
    %216 = vmatpush1.msra.mxu0 0.0
    %217 = vmatprep.subr.mxu0 0.0
    %218 = vmatpush1.msra.mxu0 0.0
    %219 = vmatprep.subr.mxu0 0.0
    %220 = vmatpush1.msra.mxu0 0.0
    %221 = vmatprep.mubr.f32.mxu0 0.0
    %222 = vmatmul.mubr.f32.gmra.mrb[0].mxu0 %v130
    %v223 = vpop.f32.mrb[0].mxu0
    %v224 = vadd.f32 %v126, %v223
    %v225 = vpop.f32.mrb[0].mxu0
    %226 = vmatprep.mubr.f32.mxu0 0.0
    %227 = vmatmul.mubr.f32.gmra.mrb[0].mxu0 %v133
    %v228 = vpop.f32.mrb[0].mxu0
    %v229 = vadd.f32 %v126, %v228
    %v230 = vpop.f32.mrb[0].mxu0
    %231 = vmatprep.mubr.f32.mxu0 0.0
    %232 = vmatmul.mubr.f32.gmra.mrb[0].mxu0 %v136
    %v233 = vpop.f32.mrb[0].mxu0
    %v234 = vadd.f32 %v126, %v233
    %v235 = vpop.f32.mrb[0].mxu0
    %236 = vmatprep.mubr.f32.mxu0 0.0
    %237 = vmatmul.mubr.f32.gmra.mrb[0].mxu0 %v139
    %v238 = vpop.f32.mrb[0].mxu0
    %v239 = vadd.f32 %v126, %v238
    %v240 = vpop.f32.mrb[0].mxu0
    %241 = vmatprep.mubr.f32.mxu0 0.0
    %242 = vmatmul.mubr.f32.gmra.mrb[0].mxu0 %v142
    %v243 = vpop.f32.mrb[0].mxu0
    %v244 = vadd.f32 %v126, %v243
    %v245 = vpop.f32.mrb[0].mxu0
    %246 = vmatprep.mubr.f32.mxu0 0.0
    %247 = vmatmul.mubr.f32.gmra.mrb[0].mxu0 %v145
    %v248 = vpop.f32.mrb[0].mxu0
    %v249 = vadd.f32 %v126, %v248
    %v250 = vpop.f32.mrb[0].mxu0
    %251 = vmatprep.mubr.f32.mxu0 0.0
    %252 = vmatmul.mubr.f32.gmra.mrb[0].mxu0 %v148
    %v253 = vpop.f32.mrb[0].mxu0
    %v254 = vadd.f32 %v126, %v253
    %v255 = vpop.f32.mrb[0].mxu0
    %256 = vmatprep.mubr.f32.mxu0 0.0
    %257 = vmatmul.mubr.f32.gmra.mrb[0].mxu0 %v151
    %v258 = vpop.f32.mrb[0].mxu0
    %v259 = vadd.f32 %v126, %v258
    %v260 = vpop.f32.mrb[0].mxu0
    %261 = vdwg.mxu0
    %262 = vst [vmem:[#allocation2] sm:$0xff] %v224
    %263 = vst [vmem:[#allocation2 + $0x8] sm:$0xff] %v229
    %264 = vst [vmem:[#allocation2 + $0x10] sm:$0xff] %v234
    %265 = vst [vmem:[#allocation2 + $0x18] sm:$0xff] %v239
    %266 = vst [vmem:[#allocation2 + $0x20] sm:$0xff] %v244
    %267 = vst [vmem:[#allocation2 + $0x28] sm:$0xff] %v249
    %268 = vst [vmem:[#allocation2 + $0x30] sm:$0xff] %v254
    %269 = vst [vmem:[#allocation2 + $0x38] sm:$0xff] %v259
    %v270 = vld [vmem:[#allocation6] sm:$0xff]
    %v271 = vld [vmem:[#allocation6 + $0x8] sm:$0xff]
    %v272 = vld [vmem:[#allocation6 + $0x10] sm:$0xff]
    %v273 = vld [vmem:[#allocation6 + $0x18] sm:$0xff]
    %vm274 = vcmask 261120
    %275 = vst.msk [vmem:[#allocation4] sm:$0xff] %vm274, 0.0
    %276 = vst.msk [vmem:[#allocation5] sm:$0xff] %vm274, 0.0
    %v277 = vld [vmem:[#allocation2] sm:$0xff]
    %v278 = vld [vmem:[#allocation4] sm:$0xff]
    %v280 = vsel %vm274, %v278, 0
    %282 = vmatprep.subr.mxu0 0.0
    %283 = vmatpush1.msra.mxu0 %v270
    %284 = vmatprep.subr.mxu0 0.0
    %285 = vmatpush1.msra.mxu0 %v271
    %286 = vmatprep.subr.mxu0 0.0
    %287 = vmatpush1.msra.mxu0 %v272
    %288 = vmatprep.subr.mxu0 0.0
    %289 = vmatpush1.msra.mxu0 %v273
    %290 = vmatprep.subr.mxu0 0.0
    %291 = vmatpush1.msra.mxu0 0.0
    %292 = vmatprep.subr.mxu0 0.0
    %293 = vmatpush1.msra.mxu0 0.0
    %294 = vmatprep.subr.mxu0 0.0
    %295 = vmatpush1.msra.mxu0 0.0
    %296 = vmatprep.subr.mxu0 0.0
    %297 = vmatpush1.msra.mxu0 0.0
    %298 = vmatprep.subr.mxu0 0.0
    %299 = vmatpush1.msra.mxu0 0.0
    %300 = vmatprep.subr.mxu0 0.0
    %301 = vmatpush1.msra.mxu0 0.0
    %302 = vmatprep.subr.mxu0 0.0
    %303 = vmatpush1.msra.mxu0 0.0
    %304 = vmatprep.subr.mxu0 0.0
    %305 = vmatpush1.msra.mxu0 0.0
    %306 = vmatprep.subr.mxu0 0.0
    %307 = vmatpush1.msra.mxu0 0.0
    %308 = vmatprep.subr.mxu0 0.0
    %309 = vmatpush1.msra.mxu0 0.0
    %310 = vmatprep.subr.mxu0 0.0
    %311 = vmatpush1.msra.mxu0 0.0
    %312 = vmatprep.subr.mxu0 0.0
    %313 = vmatpush1.msra.mxu0 0.0
    %314 = vmatprep.subr.mxu0 0.0
    %315 = vmatpush1.msra.mxu0 0.0
    %316 = vmatprep.subr.mxu0 0.0
    %317 = vmatpush1.msra.mxu0 0.0
    %318 = vmatprep.subr.mxu0 0.0
    %319 = vmatpush1.msra.mxu0 0.0
    %320 = vmatprep.subr.mxu0 0.0
    %321 = vmatpush1.msra.mxu0 0.0
    %322 = vmatprep.subr.mxu0 0.0
    %323 = vmatpush1.msra.mxu0 0.0
    %324 = vmatprep.subr.mxu0 0.0
    %325 = vmatpush1.msra.mxu0 0.0
    %326 = vmatprep.subr.mxu0 0.0
    %327 = vmatpush1.msra.mxu0 0.0
    %328 = vmatprep.subr.mxu0 0.0
    %329 = vmatpush1.msra.mxu0 0.0
    %330 = vmatprep.subr.mxu0 0.0
    %331 = vmatpush1.msra.mxu0 0.0
    %332 = vmatprep.subr.mxu0 0.0
    %333 = vmatpush1.msra.mxu0 0.0
    %334 = vmatprep.subr.mxu0 0.0
    %335 = vmatpush1.msra.mxu0 0.0
    %336 = vmatprep.subr.mxu0 0.0
    %337 = vmatpush1.msra.mxu0 0.0
    %338 = vmatprep.subr.mxu0 0.0
    %339 = vmatpush1.msra.mxu0 0.0
    %340 = vmatprep.subr.mxu0 0.0
    %341 = vmatpush1.msra.mxu0 0.0
    %342 = vmatprep.subr.mxu0 0.0
    %343 = vmatpush1.msra.mxu0 0.0
    %344 = vmatprep.subr.mxu0 0.0
    %345 = vmatpush1.msra.mxu0 0.0
    %346 = vmatprep.mubr.f32.mxu0 0.0
    %347 = vmatmul.mubr.f32.gmra.mrb[0].mxu0 %v280
    %v348 = vpop.f32.mrb[0].mxu0
    %v349 = vadd.f32 0.0, %v348
    %v350 = vpop.f32.mrb[0].mxu0
    %351 = vdwg.mxu0
    %v352 = vadd.f32 %v277, %v349
    %v353 = vxor.u32 %v352, 2147483648
    %v354 = vmul.f32 %v353, 1.442695
    %v355 = vpow.pop %v354
    %v356 = vadd.f32 %v355, 1.0
    %v357 = vrcp.pop %v356
    %v358 = vmul.f32 1.0, %v357
    %v359 = vtanh.pop %v352
    %v360 = vld [vmem:[#allocation5] sm:$0xff]
    %362 = vrot.lane.b32.xlu0 %v360, 32
    %v363 = vpop.permute.xlu0 %362
    %v365 = vmul.f32 %v358, %v363
    %367 = vrot.lane.b32.xlu0 %v359, 64
    %v368 = vpop.permute.xlu0 %367
    %v370 = vmul.f32 %v358, %v368
    %372 = vrot.lane.b32.xlu0 %v370, 32
    %v373 = vpop.permute.xlu0 %372
    %v375 = vadd.f32 %v365, %v373
    %v376 = vtanh.pop %v375
    %378 = vrot.lane.b32.xlu0 %v376, 64
    %v379 = vpop.permute.xlu0 %378
    %v381 = vmul.f32 %v358, %v379
    %383 = vrot.lane.b32.xlu0 %v375, 96
    %v384 = vpop.permute.xlu0 %383
    %386 = vst.msk [vmem:[#allocation5] sm:$0xff] %vm274, %v384
    %388 = vrot.lane.b32.xlu0 %v381, 32
    %v389 = vpop.permute.xlu0 %388
    %391 = vst.msk [vmem:[#allocation4] sm:$0xff] %vm274, %v389
    %392 = vst.msk [vmem:[#allocation3] sm:$0xff] %vm274, %v389
    %v393 = vld [vmem:[#allocation2 + $0x8] sm:$0xff]
    %v394 = vld [vmem:[#allocation4] sm:$0xff]
    %v396 = vsel %vm274, %v394, 0
    %398 = vmatprep.subr.mxu0 0.0
    %399 = vmatpush1.msra.mxu0 %v270
    %400 = vmatprep.subr.mxu0 0.0
    %401 = vmatpush1.msra.mxu0 %v271
    %402 = vmatprep.subr.mxu0 0.0
    %403 = vmatpush1.msra.mxu0 %v272
    %404 = vmatprep.subr.mxu0 0.0
    %405 = vmatpush1.msra.mxu0 %v273
    %406 = vmatprep.subr.mxu0 0.0
    %407 = vmatpush1.msra.mxu0 0.0
    %408 = vmatprep.subr.mxu0 0.0
    %409 = vmatpush1.msra.mxu0 0.0
    %410 = vmatprep.subr.mxu0 0.0
    %411 = vmatpush1.msra.mxu0 0.0
    %412 = vmatprep.subr.mxu0 0.0
    %413 = vmatpush1.msra.mxu0 0.0
    %414 = vmatprep.subr.mxu0 0.0
    %415 = vmatpush1.msra.mxu0 0.0
    %416 = vmatprep.subr.mxu0 0.0
    %417 = vmatpush1.msra.mxu0 0.0
    %418 = vmatprep.subr.mxu0 0.0
    %419 = vmatpush1.msra.mxu0 0.0
    %420 = vmatprep.subr.mxu0 0.0
    %421 = vmatpush1.msra.mxu0 0.0
    %422 = vmatprep.subr.mxu0 0.0
    %423 = vmatpush1.msra.mxu0 0.0
    %424 = vmatprep.subr.mxu0 0.0
    %425 = vmatpush1.msra.mxu0 0.0
    %426 = vmatprep.subr.mxu0 0.0
    %427 = vmatpush1.msra.mxu0 0.0
    %428 = vmatprep.subr.mxu0 0.0
    %429 = vmatpush1.msra.mxu0 0.0
    %430 = vmatprep.subr.mxu0 0.0
    %431 = vmatpush1.msra.mxu0 0.0
    %432 = vmatprep.subr.mxu0 0.0
    %433 = vmatpush1.msra.mxu0 0.0
    %434 = vmatprep.subr.mxu0 0.0
    %435 = vmatpush1.msra.mxu0 0.0
    %436 = vmatprep.subr.mxu0 0.0
    %437 = vmatpush1.msra.mxu0 0.0
    %438 = vmatprep.subr.mxu0 0.0
    %439 = vmatpush1.msra.mxu0 0.0
    %440 = vmatprep.subr.mxu0 0.0
    %441 = vmatpush1.msra.mxu0 0.0
    %442 = vmatprep.subr.mxu0 0.0
    %443 = vmatpush1.msra.mxu0 0.0
    %444 = vmatprep.subr.mxu0 0.0
    %445 = vmatpush1.msra.mxu0 0.0
    %446 = vmatprep.subr.mxu0 0.0
    %447 = vmatpush1.msra.mxu0 0.0
    %448 = vmatprep.subr.mxu0 0.0
    %449 = vmatpush1.msra.mxu0 0.0
    %450 = vmatprep.subr.mxu0 0.0
    %451 = vmatpush1.msra.mxu0 0.0
    %452 = vmatprep.subr.mxu0 0.0
    %453 = vmatpush1.msra.mxu0 0.0
    %454 = vmatprep.subr.mxu0 0.0
    %455 = vmatpush1.msra.mxu0 0.0
    %456 = vmatprep.subr.mxu0 0.0
    %457 = vmatpush1.msra.mxu0 0.0
    %458 = vmatprep.subr.mxu0 0.0
    %459 = vmatpush1.msra.mxu0 0.0
    %460 = vmatprep.subr.mxu0 0.0
    %461 = vmatpush1.msra.mxu0 0.0
    %462 = vmatprep.mubr.f32.mxu0 0.0
    %463 = vmatmul.mubr.f32.gmra.mrb[0].mxu0 %v396
    %v464 = vpop.f32.mrb[0].mxu0
    %v465 = vadd.f32 0.0, %v464
    %v466 = vpop.f32.mrb[0].mxu0
    %467 = vdwg.mxu0
    %v468 = vadd.f32 %v393, %v465
    %v469 = vxor.u32 %v468, 2147483648
    %v470 = vmul.f32 %v469, 1.442695
    %v471 = vpow.pop %v470
    %v472 = vadd.f32 %v471, 1.0
    %v473 = vrcp.pop %v472
    %v474 = vmul.f32 1.0, %v473
    %v475 = vtanh.pop %v468
    %v476 = vld [vmem:[#allocation5] sm:$0xff]
    %478 = vrot.lane.b32.xlu0 %v476, 32
    %v479 = vpop.permute.xlu0 %478
    %v481 = vmul.f32 %v474, %v479
    %483 = vrot.lane.b32.xlu0 %v475, 64
    %v484 = vpop.permute.xlu0 %483
    %v486 = vmul.f32 %v474, %v484
    %488 = vrot.lane.b32.xlu0 %v486, 32
    %v489 = vpop.permute.xlu0 %488
    %v491 = vadd.f32 %v481, %v489
    %v492 = vtanh.pop %v491
    %494 = vrot.lane.b32.xlu0 %v492, 64
    %v495 = vpop.permute.xlu0 %494
    %v497 = vmul.f32 %v474, %v495
    %499 = vrot.lane.b32.xlu0 %v491, 96
    %v500 = vpop.permute.xlu0 %499
    %502 = vst.msk [vmem:[#allocation5] sm:$0xff] %vm274, %v500
    %504 = vrot.lane.b32.xlu0 %v497, 32
    %v505 = vpop.permute.xlu0 %504
    %507 = vst.msk [vmem:[#allocation4] sm:$0xff] %vm274, %v505
    %508 = vst.msk [vmem:[#allocation3 + $0x8] sm:$0xff] %vm274, %v505
    %v509 = vld [vmem:[#allocation2 + $0x10] sm:$0xff]
    %v510 = vld [vmem:[#allocation4] sm:$0xff]
    %v512 = vsel %vm274, %v510, 0
    %514 = vmatprep.subr.mxu0 0.0
    %515 = vmatpush1.msra.mxu0 %v270
    %516 = vmatprep.subr.mxu0 0.0
    %517 = vmatpush1.msra.mxu0 %v271
    %518 = vmatprep.subr.mxu0 0.0
    %519 = vmatpush1.msra.mxu0 %v272
    %520 = vmatprep.subr.mxu0 0.0
    %521 = vmatpush1.msra.mxu0 %v273
    %522 = vmatprep.subr.mxu0 0.0
    %523 = vmatpush1.msra.mxu0 0.0
    %524 = vmatprep.subr.mxu0 0.0
    %525 = vmatpush1.msra.mxu0 0.0
    %526 = vmatprep.subr.mxu0 0.0
    %527 = vmatpush1.msra.mxu0 0.0
    %528 = vmatprep.subr.mxu0 0.0
    %529 = vmatpush1.msra.mxu0 0.0
    %530 = vmatprep.subr.mxu0 0.0
    %531 = vmatpush1.msra.mxu0 0.0
    %532 = vmatprep.subr.mxu0 0.0
    %533 = vmatpush1.msra.mxu0 0.0
    %534 = vmatprep.subr.mxu0 0.0
    %535 = vmatpush1.msra.mxu0 0.0
    %536 = vmatprep.subr.mxu0 0.0
    %537 = vmatpush1.msra.mxu0 0.0
    %538 = vmatprep.subr.mxu0 0.0
    %539 = vmatpush1.msra.mxu0 0.0
    %540 = vmatprep.subr.mxu0 0.0
    %541 = vmatpush1.msra.mxu0 0.0
    %542 = vmatprep.subr.mxu0 0.0
    %543 = vmatpush1.msra.mxu0 0.0
    %544 = vmatprep.subr.mxu0 0.0
    %545 = vmatpush1.msra.mxu0 0.0
    %546 = vmatprep.subr.mxu0 0.0
    %547 = vmatpush1.msra.mxu0 0.0
    %548 = vmatprep.subr.mxu0 0.0
    %549 = vmatpush1.msra.mxu0 0.0
    %550 = vmatprep.subr.mxu0 0.0
    %551 = vmatpush1.msra.mxu0 0.0
    %552 = vmatprep.subr.mxu0 0.0
    %553 = vmatpush1.msra.mxu0 0.0
    %554 = vmatprep.subr.mxu0 0.0
    %555 = vmatpush1.msra.mxu0 0.0
    %556 = vmatprep.subr.mxu0 0.0
    %557 = vmatpush1.msra.mxu0 0.0
    %558 = vmatprep.subr.mxu0 0.0
    %559 = vmatpush1.msra.mxu0 0.0
    %560 = vmatprep.subr.mxu0 0.0
    %561 = vmatpush1.msra.mxu0 0.0
    %562 = vmatprep.subr.mxu0 0.0
    %563 = vmatpush1.msra.mxu0 0.0
    %564 = vmatprep.subr.mxu0 0.0
    %565 = vmatpush1.msra.mxu0 0.0
    %566 = vmatprep.subr.mxu0 0.0
    %567 = vmatpush1.msra.mxu0 0.0
    %568 = vmatprep.subr.mxu0 0.0
    %569 = vmatpush1.msra.mxu0 0.0
    %570 = vmatprep.subr.mxu0 0.0
    %571 = vmatpush1.msra.mxu0 0.0
    %572 = vmatprep.subr.mxu0 0.0
    %573 = vmatpush1.msra.mxu0 0.0
    %574 = vmatprep.subr.mxu0 0.0
    %575 = vmatpush1.msra.mxu0 0.0
    %576 = vmatprep.subr.mxu0 0.0
    %577 = vmatpush1.msra.mxu0 0.0
    %578 = vmatprep.mubr.f32.mxu0 0.0
    %579 = vmatmul.mubr.f32.gmra.mrb[0].mxu0 %v512
    %v580 = vpop.f32.mrb[0].mxu0
    %v581 = vadd.f32 0.0, %v580
    %v582 = vpop.f32.mrb[0].mxu0
    %583 = vdwg.mxu0
    %v584 = vadd.f32 %v509, %v581
    %v585 = vxor.u32 %v584, 2147483648
    %v586 = vmul.f32 %v585, 1.442695
    %v587 = vpow.pop %v586
    %v588 = vadd.f32 %v587, 1.0
    %v589 = vrcp.pop %v588
    %v590 = vmul.f32 1.0, %v589
    %v591 = vtanh.pop %v584
    %v592 = vld [vmem:[#allocation5] sm:$0xff]
    %594 = vrot.lane.b32.xlu0 %v592, 32
    %v595 = vpop.permute.xlu0 %594
    %v597 = vmul.f32 %v590, %v595
    %599 = vrot.lane.b32.xlu0 %v591, 64
    %v600 = vpop.permute.xlu0 %599
    %v602 = vmul.f32 %v590, %v600
    %604 = vrot.lane.b32.xlu0 %v602, 32
    %v605 = vpop.permute.xlu0 %604
    %v607 = vadd.f32 %v597, %v605
    %v608 = vtanh.pop %v607
    %610 = vrot.lane.b32.xlu0 %v608, 64
    %v611 = vpop.permute.xlu0 %610
    %v613 = vmul.f32 %v590, %v611
    %615 = vrot.lane.b32.xlu0 %v607, 96
    %v616 = vpop.permute.xlu0 %615
    %618 = vst.msk [vmem:[#allocation5] sm:$0xff] %vm274, %v616
    %620 = vrot.lane.b32.xlu0 %v613, 32
    %v621 = vpop.permute.xlu0 %620
    %623 = vst.msk [vmem:[#allocation4] sm:$0xff] %vm274, %v621
    %624 = vst.msk [vmem:[#allocation3 + $0x10] sm:$0xff] %vm274, %v621
    %v625 = vld [vmem:[#allocation2 + $0x18] sm:$0xff]
    %v626 = vld [vmem:[#allocation4] sm:$0xff]
    %v628 = vsel %vm274, %v626, 0
    %630 = vmatprep.subr.mxu0 0.0
    %631 = vmatpush1.msra.mxu0 %v270
    %632 = vmatprep.subr.mxu0 0.0
    %633 = vmatpush1.msra.mxu0 %v271
    %634 = vmatprep.subr.mxu0 0.0
    %635 = vmatpush1.msra.mxu0 %v272
    %636 = vmatprep.subr.mxu0 0.0
    %637 = vmatpush1.msra.mxu0 %v273
    %638 = vmatprep.subr.mxu0 0.0
    %639 = vmatpush1.msra.mxu0 0.0
    %640 = vmatprep.subr.mxu0 0.0
    %641 = vmatpush1.msra.mxu0 0.0
    %642 = vmatprep.subr.mxu0 0.0
    %643 = vmatpush1.msra.mxu0 0.0
    %644 = vmatprep.subr.mxu0 0.0
    %645 = vmatpush1.msra.mxu0 0.0
    %646 = vmatprep.subr.mxu0 0.0
    %647 = vmatpush1.msra.mxu0 0.0
    %648 = vmatprep.subr.mxu0 0.0
    %649 = vmatpush1.msra.mxu0 0.0
    %650 = vmatprep.subr.mxu0 0.0
    %651 = vmatpush1.msra.mxu0 0.0
    %652 = vmatprep.subr.mxu0 0.0
    %653 = vmatpush1.msra.mxu0 0.0
    %654 = vmatprep.subr.mxu0 0.0
    %655 = vmatpush1.msra.mxu0 0.0
    %656 = vmatprep.subr.mxu0 0.0
    %657 = vmatpush1.msra.mxu0 0.0
    %658 = vmatprep.subr.mxu0 0.0
    %659 = vmatpush1.msra.mxu0 0.0
    %660 = vmatprep.subr.mxu0 0.0
    %661 = vmatpush1.msra.mxu0 0.0
    %662 = vmatprep.subr.mxu0 0.0
    %663 = vmatpush1.msra.mxu0 0.0
    %664 = vmatprep.subr.mxu0 0.0
    %665 = vmatpush1.msra.mxu0 0.0
    %666 = vmatprep.subr.mxu0 0.0
    %667 = vmatpush1.msra.mxu0 0.0
    %668 = vmatprep.subr.mxu0 0.0
    %669 = vmatpush1.msra.mxu0 0.0
    %670 = vmatprep.subr.mxu0 0.0
    %671 = vmatpush1.msra.mxu0 0.0
    %672 = vmatprep.subr.mxu0 0.0
    %673 = vmatpush1.msra.mxu0 0.0
    %674 = vmatprep.subr.mxu0 0.0
    %675 = vmatpush1.msra.mxu0 0.0
    %676 = vmatprep.subr.mxu0 0.0
    %677 = vmatpush1.msra.mxu0 0.0
    %678 = vmatprep.subr.mxu0 0.0
    %679 = vmatpush1.msra.mxu0 0.0
    %680 = vmatprep.subr.mxu0 0.0
    %681 = vmatpush1.msra.mxu0 0.0
    %682 = vmatprep.subr.mxu0 0.0
    %683 = vmatpush1.msra.mxu0 0.0
    %684 = vmatprep.subr.mxu0 0.0
    %685 = vmatpush1.msra.mxu0 0.0
    %686 = vmatprep.subr.mxu0 0.0
    %687 = vmatpush1.msra.mxu0 0.0
    %688 = vmatprep.subr.mxu0 0.0
    %689 = vmatpush1.msra.mxu0 0.0
    %690 = vmatprep.subr.mxu0 0.0
    %691 = vmatpush1.msra.mxu0 0.0
    %692 = vmatprep.subr.mxu0 0.0
    %693 = vmatpush1.msra.mxu0 0.0
    %694 = vmatprep.mubr.f32.mxu0 0.0
    %695 = vmatmul.mubr.f32.gmra.mrb[0].mxu0 %v628
    %v696 = vpop.f32.mrb[0].mxu0
    %v697 = vadd.f32 0.0, %v696
    %v698 = vpop.f32.mrb[0].mxu0
    %699 = vdwg.mxu0
    %v700 = vadd.f32 %v625, %v697
    %v701 = vxor.u32 %v700, 2147483648
    %v702 = vmul.f32 %v701, 1.442695
    %v703 = vpow.pop %v702
    %v704 = vadd.f32 %v703, 1.0
    %v705 = vrcp.pop %v704
    %v706 = vmul.f32 1.0, %v705
    %v707 = vtanh.pop %v700
    %v708 = vld [vmem:[#allocation5] sm:$0xff]
    %710 = vrot.lane.b32.xlu0 %v708, 32
    %v711 = vpop.permute.xlu0 %710
    %v713 = vmul.f32 %v706, %v711
    %715 = vrot.lane.b32.xlu0 %v707, 64
    %v716 = vpop.permute.xlu0 %715
    %v718 = vmul.f32 %v706, %v716
    %720 = vrot.lane.b32.xlu0 %v718, 32
    %v721 = vpop.permute.xlu0 %720
    %v723 = vadd.f32 %v713, %v721
    %v724 = vtanh.pop %v723
    %726 = vrot.lane.b32.xlu0 %v724, 64
    %v727 = vpop.permute.xlu0 %726
    %v729 = vmul.f32 %v706, %v727
    %731 = vrot.lane.b32.xlu0 %v723, 96
    %v732 = vpop.permute.xlu0 %731
    %734 = vst.msk [vmem:[#allocation5] sm:$0xff] %vm274, %v732
    %736 = vrot.lane.b32.xlu0 %v729, 32
    %v737 = vpop.permute.xlu0 %736
    %739 = vst.msk [vmem:[#allocation4] sm:$0xff] %vm274, %v737
    %740 = vst.msk [vmem:[#allocation3 + $0x18] sm:$0xff] %vm274, %v737
    %v741 = vld [vmem:[#allocation2 + $0x20] sm:$0xff]
    %v742 = vld [vmem:[#allocation4] sm:$0xff]
    %v744 = vsel %vm274, %v742, 0
    %746 = vmatprep.subr.mxu0 0.0
    %747 = vmatpush1.msra.mxu0 %v270
    %748 = vmatprep.subr.mxu0 0.0
    %749 = vmatpush1.msra.mxu0 %v271
    %750 = vmatprep.subr.mxu0 0.0
    %751 = vmatpush1.msra.mxu0 %v272
    %752 = vmatprep.subr.mxu0 0.0
    %753 = vmatpush1.msra.mxu0 %v273
    %754 = vmatprep.subr.mxu0 0.0
    %755 = vmatpush1.msra.mxu0 0.0
    %756 = vmatprep.subr.mxu0 0.0
    %757 = vmatpush1.msra.mxu0 0.0
    %758 = vmatprep.subr.mxu0 0.0
    %759 = vmatpush1.msra.mxu0 0.0
    %760 = vmatprep.subr.mxu0 0.0
    %761 = vmatpush1.msra.mxu0 0.0
    %762 = vmatprep.subr.mxu0 0.0
    %763 = vmatpush1.msra.mxu0 0.0
    %764 = vmatprep.subr.mxu0 0.0
    %765 = vmatpush1.msra.mxu0 0.0
    %766 = vmatprep.subr.mxu0 0.0
    %767 = vmatpush1.msra.mxu0 0.0
    %768 = vmatprep.subr.mxu0 0.0
    %769 = vmatpush1.msra.mxu0 0.0
    %770 = vmatprep.subr.mxu0 0.0
    %771 = vmatpush1.msra.mxu0 0.0
    %772 = vmatprep.subr.mxu0 0.0
    %773 = vmatpush1.msra.mxu0 0.0
    %774 = vmatprep.subr.mxu0 0.0
    %775 = vmatpush1.msra.mxu0 0.0
    %776 = vmatprep.subr.mxu0 0.0
    %777 = vmatpush1.msra.mxu0 0.0
    %778 = vmatprep.subr.mxu0 0.0
    %779 = vmatpush1.msra.mxu0 0.0
    %780 = vmatprep.subr.mxu0 0.0
    %781 = vmatpush1.msra.mxu0 0.0
    %782 = vmatprep.subr.mxu0 0.0
    %783 = vmatpush1.msra.mxu0 0.0
    %784 = vmatprep.subr.mxu0 0.0
    %785 = vmatpush1.msra.mxu0 0.0
    %786 = vmatprep.subr.mxu0 0.0
    %787 = vmatpush1.msra.mxu0 0.0
    %788 = vmatprep.subr.mxu0 0.0
    %789 = vmatpush1.msra.mxu0 0.0
    %790 = vmatprep.subr.mxu0 0.0
    %791 = vmatpush1.msra.mxu0 0.0
    %792 = vmatprep.subr.mxu0 0.0
    %793 = vmatpush1.msra.mxu0 0.0
    %794 = vmatprep.subr.mxu0 0.0
    %795 = vmatpush1.msra.mxu0 0.0
    %796 = vmatprep.subr.mxu0 0.0
    %797 = vmatpush1.msra.mxu0 0.0
    %798 = vmatprep.subr.mxu0 0.0
    %799 = vmatpush1.msra.mxu0 0.0
    %800 = vmatprep.subr.mxu0 0.0
    %801 = vmatpush1.msra.mxu0 0.0
    %802 = vmatprep.subr.mxu0 0.0
    %803 = vmatpush1.msra.mxu0 0.0
    %804 = vmatprep.subr.mxu0 0.0
    %805 = vmatpush1.msra.mxu0 0.0
    %806 = vmatprep.subr.mxu0 0.0
    %807 = vmatpush1.msra.mxu0 0.0
    %808 = vmatprep.subr.mxu0 0.0
    %809 = vmatpush1.msra.mxu0 0.0
    %810 = vmatprep.mubr.f32.mxu0 0.0
    %811 = vmatmul.mubr.f32.gmra.mrb[0].mxu0 %v744
    %v812 = vpop.f32.mrb[0].mxu0
    %v813 = vadd.f32 0.0, %v812
    %v814 = vpop.f32.mrb[0].mxu0
    %815 = vdwg.mxu0
    %v816 = vadd.f32 %v741, %v813
    %v817 = vxor.u32 %v816, 2147483648
    %v818 = vmul.f32 %v817, 1.442695
    %v819 = vpow.pop %v818
    %v820 = vadd.f32 %v819, 1.0
    %v821 = vrcp.pop %v820
    %v822 = vmul.f32 1.0, %v821
    %v823 = vtanh.pop %v816
    %v824 = vld [vmem:[#allocation5] sm:$0xff]
    %826 = vrot.lane.b32.xlu0 %v824, 32
    %v827 = vpop.permute.xlu0 %826
    %v829 = vmul.f32 %v822, %v827
    %831 = vrot.lane.b32.xlu0 %v823, 64
    %v832 = vpop.permute.xlu0 %831
    %v834 = vmul.f32 %v822, %v832
    %836 = vrot.lane.b32.xlu0 %v834, 32
    %v837 = vpop.permute.xlu0 %836
    %v839 = vadd.f32 %v829, %v837
    %v840 = vtanh.pop %v839
    %842 = vrot.lane.b32.xlu0 %v840, 64
    %v843 = vpop.permute.xlu0 %842
    %v845 = vmul.f32 %v822, %v843
    %847 = vrot.lane.b32.xlu0 %v839, 96
    %v848 = vpop.permute.xlu0 %847
    %850 = vst.msk [vmem:[#allocation5] sm:$0xff] %vm274, %v848
    %852 = vrot.lane.b32.xlu0 %v845, 32
    %v853 = vpop.permute.xlu0 %852
    %855 = vst.msk [vmem:[#allocation4] sm:$0xff] %vm274, %v853
    %856 = vst.msk [vmem:[#allocation3 + $0x20] sm:$0xff] %vm274, %v853
    %v857 = vld [vmem:[#allocation2 + $0x28] sm:$0xff]
    %v858 = vld [vmem:[#allocation4] sm:$0xff]
    %v860 = vsel %vm274, %v858, 0
    %862 = vmatprep.subr.mxu0 0.0
    %863 = vmatpush1.msra.mxu0 %v270
    %864 = vmatprep.subr.mxu0 0.0
    %865 = vmatpush1.msra.mxu0 %v271
    %866 = vmatprep.subr.mxu0 0.0
    %867 = vmatpush1.msra.mxu0 %v272
    %868 = vmatprep.subr.mxu0 0.0
    %869 = vmatpush1.msra.mxu0 %v273
    %870 = vmatprep.subr.mxu0 0.0
    %871 = vmatpush1.msra.mxu0 0.0
    %872 = vmatprep.subr.mxu0 0.0
    %873 = vmatpush1.msra.mxu0 0.0
    %874 = vmatprep.subr.mxu0 0.0
    %875 = vmatpush1.msra.mxu0 0.0
    %876 = vmatprep.subr.mxu0 0.0
    %877 = vmatpush1.msra.mxu0 0.0
    %878 = vmatprep.subr.mxu0 0.0
    %879 = vmatpush1.msra.mxu0 0.0
    %880 = vmatprep.subr.mxu0 0.0
    %881 = vmatpush1.msra.mxu0 0.0
    %882 = vmatprep.subr.mxu0 0.0
    %883 = vmatpush1.msra.mxu0 0.0
    %884 = vmatprep.subr.mxu0 0.0
    %885 = vmatpush1.msra.mxu0 0.0
    %886 = vmatprep.subr.mxu0 0.0
    %887 = vmatpush1.msra.mxu0 0.0
    %888 = vmatprep.subr.mxu0 0.0
    %889 = vmatpush1.msra.mxu0 0.0
    %890 = vmatprep.subr.mxu0 0.0
    %891 = vmatpush1.msra.mxu0 0.0
    %892 = vmatprep.subr.mxu0 0.0
    %893 = vmatpush1.msra.mxu0 0.0
    %894 = vmatprep.subr.mxu0 0.0
    %895 = vmatpush1.msra.mxu0 0.0
    %896 = vmatprep.subr.mxu0 0.0
    %897 = vmatpush1.msra.mxu0 0.0
    %898 = vmatprep.subr.mxu0 0.0
    %899 = vmatpush1.msra.mxu0 0.0
    %900 = vmatprep.subr.mxu0 0.0
    %901 = vmatpush1.msra.mxu0 0.0
    %902 = vmatprep.subr.mxu0 0.0
    %903 = vmatpush1.msra.mxu0 0.0
    %904 = vmatprep.subr.mxu0 0.0
    %905 = vmatpush1.msra.mxu0 0.0
    %906 = vmatprep.subr.mxu0 0.0
    %907 = vmatpush1.msra.mxu0 0.0
    %908 = vmatprep.subr.mxu0 0.0
    %909 = vmatpush1.msra.mxu0 0.0
    %910 = vmatprep.subr.mxu0 0.0
    %911 = vmatpush1.msra.mxu0 0.0
    %912 = vmatprep.subr.mxu0 0.0
    %913 = vmatpush1.msra.mxu0 0.0
    %914 = vmatprep.subr.mxu0 0.0
    %915 = vmatpush1.msra.mxu0 0.0
    %916 = vmatprep.subr.mxu0 0.0
    %917 = vmatpush1.msra.mxu0 0.0
    %918 = vmatprep.subr.mxu0 0.0
    %919 = vmatpush1.msra.mxu0 0.0
    %920 = vmatprep.subr.mxu0 0.0
    %921 = vmatpush1.msra.mxu0 0.0
    %922 = vmatprep.subr.mxu0 0.0
    %923 = vmatpush1.msra.mxu0 0.0
    %924 = vmatprep.subr.mxu0 0.0
    %925 = vmatpush1.msra.mxu0 0.0
    %926 = vmatprep.mubr.f32.mxu0 0.0
    %927 = vmatmul.mubr.f32.gmra.mrb[0].mxu0 %v860
    %v928 = vpop.f32.mrb[0].mxu0
    %v929 = vadd.f32 0.0, %v928
    %v930 = vpop.f32.mrb[0].mxu0
    %931 = vdwg.mxu0
    %v932 = vadd.f32 %v857, %v929
    %v933 = vxor.u32 %v932, 2147483648
    %v934 = vmul.f32 %v933, 1.442695
    %v935 = vpow.pop %v934
    %v936 = vadd.f32 %v935, 1.0
    %v937 = vrcp.pop %v936
    %v938 = vmul.f32 1.0, %v937
    %v939 = vtanh.pop %v932
    %v940 = vld [vmem:[#allocation5] sm:$0xff]
    %942 = vrot.lane.b32.xlu0 %v940, 32
    %v943 = vpop.permute.xlu0 %942
    %v945 = vmul.f32 %v938, %v943
    %947 = vrot.lane.b32.xlu0 %v939, 64
    %v948 = vpop.permute.xlu0 %947
    %v950 = vmul.f32 %v938, %v948
    %952 = vrot.lane.b32.xlu0 %v950, 32
    %v953 = vpop.permute.xlu0 %952
    %v955 = vadd.f32 %v945, %v953
    %v956 = vtanh.pop %v955
    %958 = vrot.lane.b32.xlu0 %v956, 64
    %v959 = vpop.permute.xlu0 %958
    %v961 = vmul.f32 %v938, %v959
    %963 = vrot.lane.b32.xlu0 %v955, 96
    %v964 = vpop.permute.xlu0 %963
    %966 = vst.msk [vmem:[#allocation5] sm:$0xff] %vm274, %v964
    %968 = vrot.lane.b32.xlu0 %v961, 32
    %v969 = vpop.permute.xlu0 %968
    %971 = vst.msk [vmem:[#allocation4] sm:$0xff] %vm274, %v969
    %972 = vst.msk [vmem:[#allocation3 + $0x28] sm:$0xff] %vm274, %v969
    %v973 = vld [vmem:[#allocation2 + $0x30] sm:$0xff]
    %v974 = vld [vmem:[#allocation4] sm:$0xff]
    %v976 = vsel %vm274, %v974, 0
    %978 = vmatprep.subr.mxu0 0.0
    %979 = vmatpush1.msra.mxu0 %v270
    %980 = vmatprep.subr.mxu0 0.0
    %981 = vmatpush1.msra.mxu0 %v271
    %982 = vmatprep.subr.mxu0 0.0
    %983 = vmatpush1.msra.mxu0 %v272
    %984 = vmatprep.subr.mxu0 0.0
    %985 = vmatpush1.msra.mxu0 %v273
    %986 = vmatprep.subr.mxu0 0.0
    %987 = vmatpush1.msra.mxu0 0.0
    %988 = vmatprep.subr.mxu0 0.0
    %989 = vmatpush1.msra.mxu0 0.0
    %990 = vmatprep.subr.mxu0 0.0
    %991 = vmatpush1.msra.mxu0 0.0
    %992 = vmatprep.subr.mxu0 0.0
    %993 = vmatpush1.msra.mxu0 0.0
    %994 = vmatprep.subr.mxu0 0.0
    %995 = vmatpush1.msra.mxu0 0.0
    %996 = vmatprep.subr.mxu0 0.0
    %997 = vmatpush1.msra.mxu0 0.0
    %998 = vmatprep.subr.mxu0 0.0
    %999 = vmatpush1.msra.mxu0 0.0
    %1000 = vmatprep.subr.mxu0 0.0
    %1001 = vmatpush1.msra.mxu0 0.0
    %1002 = vmatprep.subr.mxu0 0.0
    %1003 = vmatpush1.msra.mxu0 0.0
    %1004 = vmatprep.subr.mxu0 0.0
    %1005 = vmatpush1.msra.mxu0 0.0
    %1006 = vmatprep.subr.mxu0 0.0
    %1007 = vmatpush1.msra.mxu0 0.0
    %1008 = vmatprep.subr.mxu0 0.0
    %1009 = vmatpush1.msra.mxu0 0.0
    %1010 = vmatprep.subr.mxu0 0.0
    %1011 = vmatpush1.msra.mxu0 0.0
    %1012 = vmatprep.subr.mxu0 0.0
    %1013 = vmatpush1.msra.mxu0 0.0
    %1014 = vmatprep.subr.mxu0 0.0
    %1015 = vmatpush1.msra.mxu0 0.0
    %1016 = vmatprep.subr.mxu0 0.0
    %1017 = vmatpush1.msra.mxu0 0.0
    %1018 = vmatprep.subr.mxu0 0.0
    %1019 = vmatpush1.msra.mxu0 0.0
    %1020 = vmatprep.subr.mxu0 0.0
    %1021 = vmatpush1.msra.mxu0 0.0
    %1022 = vmatprep.subr.mxu0 0.0
    %1023 = vmatpush1.msra.mxu0 0.0
    %1024 = vmatprep.subr.mxu0 0.0
    %1025 = vmatpush1.msra.mxu0 0.0
    %1026 = vmatprep.subr.mxu0 0.0
    %1027 = vmatpush1.msra.mxu0 0.0
    %1028 = vmatprep.subr.mxu0 0.0
    %1029 = vmatpush1.msra.mxu0 0.0
    %1030 = vmatprep.subr.mxu0 0.0
    %1031 = vmatpush1.msra.mxu0 0.0
    %1032 = vmatprep.subr.mxu0 0.0
    %1033 = vmatpush1.msra.mxu0 0.0
    %1034 = vmatprep.subr.mxu0 0.0
    %1035 = vmatpush1.msra.mxu0 0.0
    %1036 = vmatprep.subr.mxu0 0.0
    %1037 = vmatpush1.msra.mxu0 0.0
    %1038 = vmatprep.subr.mxu0 0.0
    %1039 = vmatpush1.msra.mxu0 0.0
    %1040 = vmatprep.subr.mxu0 0.0
    %1041 = vmatpush1.msra.mxu0 0.0
    %1042 = vmatprep.mubr.f32.mxu0 0.0
    %1043 = vmatmul.mubr.f32.gmra.mrb[0].mxu0 %v976
    %v1044 = vpop.f32.mrb[0].mxu0
    %v1045 = vadd.f32 0.0, %v1044
    %v1046 = vpop.f32.mrb[0].mxu0
    %1047 = vdwg.mxu0
    %v1048 = vadd.f32 %v973, %v1045
    %v1049 = vxor.u32 %v1048, 2147483648
    %v1050 = vmul.f32 %v1049, 1.442695
    %v1051 = vpow.pop %v1050
    %v1052 = vadd.f32 %v1051, 1.0
    %v1053 = vrcp.pop %v1052
    %v1054 = vmul.f32 1.0, %v1053
    %v1055 = vtanh.pop %v1048
    %v1056 = vld [vmem:[#allocation5] sm:$0xff]
    %1058 = vrot.lane.b32.xlu0 %v1056, 32
    %v1059 = vpop.permute.xlu0 %1058
    %v1061 = vmul.f32 %v1054, %v1059
    %1063 = vrot.lane.b32.xlu0 %v1055, 64
    %v1064 = vpop.permute.xlu0 %1063
    %v1066 = vmul.f32 %v1054, %v1064
    %1068 = vrot.lane.b32.xlu0 %v1066, 32
    %v1069 = vpop.permute.xlu0 %1068
    %v1071 = vadd.f32 %v1061, %v1069
    %v1072 = vtanh.pop %v1071
    %1074 = vrot.lane.b32.xlu0 %v1072, 64
    %v1075 = vpop.permute.xlu0 %1074
    %v1077 = vmul.f32 %v1054, %v1075
    %1079 = vrot.lane.b32.xlu0 %v1071, 96
    %v1080 = vpop.permute.xlu0 %1079
    %1082 = vst.msk [vmem:[#allocation5] sm:$0xff] %vm274, %v1080
    %1084 = vrot.lane.b32.xlu0 %v1077, 32
    %v1085 = vpop.permute.xlu0 %1084
    %1087 = vst.msk [vmem:[#allocation4] sm:$0xff] %vm274, %v1085
    %1088 = vst.msk [vmem:[#allocation3 + $0x30] sm:$0xff] %vm274, %v1085
    %v1089 = vld [vmem:[#allocation2 + $0x38] sm:$0xff]
    %v1090 = vld [vmem:[#allocation4] sm:$0xff]
    %v1092 = vsel %vm274, %v1090, 0
    %1094 = vmatprep.subr.mxu0 0.0
    %1095 = vmatpush1.msra.mxu0 %v270
    %1096 = vmatprep.subr.mxu0 0.0
    %1097 = vmatpush1.msra.mxu0 %v271
    %1098 = vmatprep.subr.mxu0 0.0
    %1099 = vmatpush1.msra.mxu0 %v272
    %1100 = vmatprep.subr.mxu0 0.0
    %1101 = vmatpush1.msra.mxu0 %v273
    %1102 = vmatprep.subr.mxu0 0.0
    %1103 = vmatpush1.msra.mxu0 0.0
    %1104 = vmatprep.subr.mxu0 0.0
    %1105 = vmatpush1.msra.mxu0 0.0
    %1106 = vmatprep.subr.mxu0 0.0
    %1107 = vmatpush1.msra.mxu0 0.0
    %1108 = vmatprep.subr.mxu0 0.0
    %1109 = vmatpush1.msra.mxu0 0.0
    %1110 = vmatprep.subr.mxu0 0.0
    %1111 = vmatpush1.msra.mxu0 0.0
    %1112 = vmatprep.subr.mxu0 0.0
    %1113 = vmatpush1.msra.mxu0 0.0
    %1114 = vmatprep.subr.mxu0 0.0
    %1115 = vmatpush1.msra.mxu0 0.0
    %1116 = vmatprep.subr.mxu0 0.0
    %1117 = vmatpush1.msra.mxu0 0.0
    %1118 = vmatprep.subr.mxu0 0.0
    %1119 = vmatpush1.msra.mxu0 0.0
    %1120 = vmatprep.subr.mxu0 0.0
    %1121 = vmatpush1.msra.mxu0 0.0
    %1122 = vmatprep.subr.mxu0 0.0
    %1123 = vmatpush1.msra.mxu0 0.0
    %1124 = vmatprep.subr.mxu0 0.0
    %1125 = vmatpush1.msra.mxu0 0.0
    %1126 = vmatprep.subr.mxu0 0.0
    %1127 = vmatpush1.msra.mxu0 0.0
    %1128 = vmatprep.subr.mxu0 0.0
    %1129 = vmatpush1.msra.mxu0 0.0
    %1130 = vmatprep.subr.mxu0 0.0
    %1131 = vmatpush1.msra.mxu0 0.0
    %1132 = vmatprep.subr.mxu0 0.0
    %1133 = vmatpush1.msra.mxu0 0.0
    %1134 = vmatprep.subr.mxu0 0.0
    %1135 = vmatpush1.msra.mxu0 0.0
    %1136 = vmatprep.subr.mxu0 0.0
    %1137 = vmatpush1.msra.mxu0 0.0
    %1138 = vmatprep.subr.mxu0 0.0
    %1139 = vmatpush1.msra.mxu0 0.0
    %1140 = vmatprep.subr.mxu0 0.0
    %1141 = vmatpush1.msra.mxu0 0.0
    %1142 = vmatprep.subr.mxu0 0.0
    %1143 = vmatpush1.msra.mxu0 0.0
    %1144 = vmatprep.subr.mxu0 0.0
    %1145 = vmatpush1.msra.mxu0 0.0
    %1146 = vmatprep.subr.mxu0 0.0
    %1147 = vmatpush1.msra.mxu0 0.0
    %1148 = vmatprep.subr.mxu0 0.0
    %1149 = vmatpush1.msra.mxu0 0.0
    %1150 = vmatprep.subr.mxu0 0.0
    %1151 = vmatpush1.msra.mxu0 0.0
    %1152 = vmatprep.subr.mxu0 0.0
    %1153 = vmatpush1.msra.mxu0 0.0
    %1154 = vmatprep.subr.mxu0 0.0
    %1155 = vmatpush1.msra.mxu0 0.0
    %1156 = vmatprep.subr.mxu0 0.0
    %1157 = vmatpush1.msra.mxu0 0.0
    %1158 = vmatprep.mubr.f32.mxu0 0.0
    %1159 = vmatmul.mubr.f32.gmra.mrb[0].mxu0 %v1092
    %v1160 = vpop.f32.mrb[0].mxu0
    %v1161 = vadd.f32 0.0, %v1160
    %v1162 = vpop.f32.mrb[0].mxu0
    %1163 = vdwg.mxu0
    %v1164 = vadd.f32 %v1089, %v1161
    %v1165 = vxor.u32 %v1164, 2147483648
    %v1166 = vmul.f32 %v1165, 1.442695
    %v1167 = vpow.pop %v1166
    %v1168 = vadd.f32 %v1167, 1.0
    %v1169 = vrcp.pop %v1168
    %v1170 = vmul.f32 1.0, %v1169
    %v1171 = vtanh.pop %v1164
    %v1172 = vld [vmem:[#allocation5] sm:$0xff]
    %1174 = vrot.lane.b32.xlu0 %v1172, 32
    %v1175 = vpop.permute.xlu0 %1174
    %v1177 = vmul.f32 %v1170, %v1175
    %1179 = vrot.lane.b32.xlu0 %v1171, 64
    %v1180 = vpop.permute.xlu0 %1179
    %v1182 = vmul.f32 %v1170, %v1180
    %1184 = vrot.lane.b32.xlu0 %v1182, 32
    %v1185 = vpop.permute.xlu0 %1184
    %v1187 = vadd.f32 %v1177, %v1185
    %v1188 = vtanh.pop %v1187
    %1190 = vrot.lane.b32.xlu0 %v1188, 64
    %v1191 = vpop.permute.xlu0 %1190
    %v1193 = vmul.f32 %v1170, %v1191
    %1195 = vrot.lane.b32.xlu0 %v1187, 96
    %v1196 = vpop.permute.xlu0 %1195
    %1198 = vst.msk [vmem:[#allocation5] sm:$0xff] %vm274, %v1196
    %1200 = vrot.lane.b32.xlu0 %v1193, 32
    %v1201 = vpop.permute.xlu0 %1200
    %1203 = vst.msk [vmem:[#allocation4] sm:$0xff] %vm274, %v1201
    %1204 = vst.msk [vmem:[#allocation3 + $0x38] sm:$0xff] %vm274, %v1201
    %v1205 = vld [vmem:[#allocation4] sm:$0xff]
    %1206 = vst.msk [vmem:[%s7] sm:$0xff] %vm274, %v1205
    %v1207 = vld [vmem:[#allocation5] sm:$0xff]
    %1208 = vst.msk [vmem:[%s8] sm:$0xff] %vm274, %v1207
    %v1209 = vld [vmem:[#allocation3] sm:$0xff]
    %v1210 = vld [vmem:[#allocation3 + $0x8] sm:$0xff]
    %v1211 = vld [vmem:[#allocation3 + $0x10] sm:$0xff]
    %v1212 = vld [vmem:[#allocation3 + $0x18] sm:$0xff]
    %v1213 = vld [vmem:[#allocation3 + $0x20] sm:$0xff]
    %v1214 = vld [vmem:[#allocation3 + $0x28] sm:$0xff]
    %v1215 = vld [vmem:[#allocation3 + $0x30] sm:$0xff]
    %v1216 = vld [vmem:[#allocation3 + $0x38] sm:$0xff]
    %v1217 = vld [vmem:[#allocation8] sm:$0xff]
    %v1218 = vld [vmem:[#allocation8 + $0x8] sm:$0xff]
    %v1219 = vld [vmem:[#allocation8 + $0x10] sm:$0xff]
    %v1220 = vld [vmem:[#allocation8 + $0x18] sm:$0xff]
    %v1221 = vld [vmem:[%s6] sm:$0x1]
    %v1223 = vlaneseq
    %v1224 = vshrl.u32 %v1223, 7
    %v1225 = vsub.s32 0, %v1224
    %v1226 = vrot.slane %v1221, %v1225
    %v1229 = vsel %vm274, %v1209, 0
    %v1232 = vsel %vm274, %v1210, 0
    %v1235 = vsel %vm274, %v1211, 0
    %v1238 = vsel %vm274, %v1212, 0
    %v1241 = vsel %vm274, %v1213, 0
    %v1244 = vsel %vm274, %v1214, 0
    %v1247 = vsel %vm274, %v1215, 0
    %v1250 = vsel %vm274, %v1216, 0
    %1252 = vmatprep.subr.mxu0 0.0
    %1253 = vmatpush1.msra.mxu0 %v1217
    %1254 = vmatprep.subr.mxu0 0.0
    %1255 = vmatpush1.msra.mxu0 %v1218
    %1256 = vmatprep.subr.mxu0 0.0
    %1257 = vmatpush1.msra.mxu0 %v1219
    %1258 = vmatprep.subr.mxu0 0.0
    %1259 = vmatpush1.msra.mxu0 %v1220
    %1260 = vmatprep.subr.mxu0 0.0
    %1261 = vmatpush1.msra.mxu0 0.0
    %1262 = vmatprep.subr.mxu0 0.0
    %1263 = vmatpush1.msra.mxu0 0.0
    %1264 = vmatprep.subr.mxu0 0.0
    %1265 = vmatpush1.msra.mxu0 0.0
    %1266 = vmatprep.subr.mxu0 0.0
    %1267 = vmatpush1.msra.mxu0 0.0
    %1268 = vmatprep.subr.mxu0 0.0
    %1269 = vmatpush1.msra.mxu0 0.0
    %1270 = vmatprep.subr.mxu0 0.0
    %1271 = vmatpush1.msra.mxu0 0.0
    %1272 = vmatprep.subr.mxu0 0.0
    %1273 = vmatpush1.msra.mxu0 0.0
    %1274 = vmatprep.subr.mxu0 0.0
    %1275 = vmatpush1.msra.mxu0 0.0
    %1276 = vmatprep.subr.mxu0 0.0
    %1277 = vmatpush1.msra.mxu0 0.0
    %1278 = vmatprep.subr.mxu0 0.0
    %1279 = vmatpush1.msra.mxu0 0.0
    %1280 = vmatprep.subr.mxu0 0.0
    %1281 = vmatpush1.msra.mxu0 0.0
    %1282 = vmatprep.subr.mxu0 0.0
    %1283 = vmatpush1.msra.mxu0 0.0
    %1284 = vmatprep.subr.mxu0 0.0
    %1285 = vmatpush1.msra.mxu0 0.0
    %1286 = vmatprep.subr.mxu0 0.0
    %1287 = vmatpush1.msra.mxu0 0.0
    %1288 = vmatprep.subr.mxu0 0.0
    %1289 = vmatpush1.msra.mxu0 0.0
    %1290 = vmatprep.subr.mxu0 0.0
    %1291 = vmatpush1.msra.mxu0 0.0
    %1292 = vmatprep.subr.mxu0 0.0
    %1293 = vmatpush1.msra.mxu0 0.0
    %1294 = vmatprep.subr.mxu0 0.0
    %1295 = vmatpush1.msra.mxu0 0.0
    %1296 = vmatprep.subr.mxu0 0.0
    %1297 = vmatpush1.msra.mxu0 0.0
    %1298 = vmatprep.subr.mxu0 0.0
    %1299 = vmatpush1.msra.mxu0 0.0
    %1300 = vmatprep.subr.mxu0 0.0
    %1301 = vmatpush1.msra.mxu0 0.0
    %1302 = vmatprep.subr.mxu0 0.0
    %1303 = vmatpush1.msra.mxu0 0.0
    %1304 = vmatprep.subr.mxu0 0.0
    %1305 = vmatpush1.msra.mxu0 0.0
    %1306 = vmatprep.subr.mxu0 0.0
    %1307 = vmatpush1.msra.mxu0 0.0
    %1308 = vmatprep.subr.mxu0 0.0
    %1309 = vmatpush1.msra.mxu0 0.0
    %1310 = vmatprep.subr.mxu0 0.0
    %1311 = vmatpush1.msra.mxu0 0.0
    %1312 = vmatprep.subr.mxu0 0.0
    %1313 = vmatpush1.msra.mxu0 0.0
    %1314 = vmatprep.subr.mxu0 0.0
    %1315 = vmatpush1.msra.mxu0 0.0
    %1316 = vmatprep.mubr.f32.mxu0 0.0
    %1317 = vmatmul.mubr.f32.gmra.mrb[0].mxu0 %v1229
    %v1318 = vpop.f32.mrb[0].mxu0
    %v1319 = vadd.f32 %v1226, %v1318
    %v1320 = vpop.f32.mrb[0].mxu0
    %1321 = vmatprep.mubr.f32.mxu0 0.0
    %1322 = vmatmul.mubr.f32.gmra.mrb[0].mxu0 %v1232
    %v1323 = vpop.f32.mrb[0].mxu0
    %v1324 = vadd.f32 %v1226, %v1323
    %v1325 = vpop.f32.mrb[0].mxu0
    %1326 = vmatprep.mubr.f32.mxu0 0.0
    %1327 = vmatmul.mubr.f32.gmra.mrb[0].mxu0 %v1235
    %v1328 = vpop.f32.mrb[0].mxu0
    %v1329 = vadd.f32 %v1226, %v1328
    %v1330 = vpop.f32.mrb[0].mxu0
    %1331 = vmatprep.mubr.f32.mxu0 0.0
    %1332 = vmatmul.mubr.f32.gmra.mrb[0].mxu0 %v1238
    %v1333 = vpop.f32.mrb[0].mxu0
    %v1334 = vadd.f32 %v1226, %v1333
    %v1335 = vpop.f32.mrb[0].mxu0
    %1336 = vmatprep.mubr.f32.mxu0 0.0
    %1337 = vmatmul.mubr.f32.gmra.mrb[0].mxu0 %v1241
    %v1338 = vpop.f32.mrb[0].mxu0
    %v1339 = vadd.f32 %v1226, %v1338
    %v1340 = vpop.f32.mrb[0].mxu0
    %1341 = vmatprep.mubr.f32.mxu0 0.0
    %1342 = vmatmul.mubr.f32.gmra.mrb[0].mxu0 %v1244
    %v1343 = vpop.f32.mrb[0].mxu0
    %v1344 = vadd.f32 %v1226, %v1343
    %v1345 = vpop.f32.mrb[0].mxu0
    %1346 = vmatprep.mubr.f32.mxu0 0.0
    %1347 = vmatmul.mubr.f32.gmra.mrb[0].mxu0 %v1247
    %v1348 = vpop.f32.mrb[0].mxu0
    %v1349 = vadd.f32 %v1226, %v1348
    %v1350 = vpop.f32.mrb[0].mxu0
    %1351 = vmatprep.mubr.f32.mxu0 0.0
    %1352 = vmatmul.mubr.f32.gmra.mrb[0].mxu0 %v1250
    %v1353 = vpop.f32.mrb[0].mxu0
    %v1354 = vadd.f32 %v1226, %v1353
    %v1355 = vpop.f32.mrb[0].mxu0
    %1356 = vdwg.mxu0
    %1357 = vst [vmem:[#allocation2] sm:$0xff] %v1319
    %1358 = vst [vmem:[#allocation2 + $0x8] sm:$0xff] %v1324
    %1359 = vst [vmem:[#allocation2 + $0x10] sm:$0xff] %v1329
    %1360 = vst [vmem:[#allocation2 + $0x18] sm:$0xff] %v1334
    %1361 = vst [vmem:[#allocation2 + $0x20] sm:$0xff] %v1339
    %1362 = vst [vmem:[#allocation2 + $0x28] sm:$0xff] %v1344
    %1363 = vst [vmem:[#allocation2 + $0x30] sm:$0xff] %v1349
    %1364 = vst [vmem:[#allocation2 + $0x38] sm:$0xff] %v1354
    %v1365 = vld [vmem:[%s5] sm:$0xff]
    %v1366 = vld [vmem:[%s5 + $0x8] sm:$0xff]
    %v1367 = vld [vmem:[%s5 + $0x10] sm:$0xff]
    %v1368 = vld [vmem:[%s5 + $0x18] sm:$0xff]
    %1369 = vst.msk [vmem:[#allocation4] sm:$0xff] %vm274, 0.0
    %1370 = vst.msk [vmem:[#allocation5] sm:$0xff] %vm274, 0.0
    %v1371 = vld [vmem:[#allocation2] sm:$0xff]
    %v1372 = vld [vmem:[#allocation4] sm:$0xff]
    %v1374 = vsel %vm274, %v1372, 0
    %1376 = vmatprep.subr.mxu0 0.0
    %1377 = vmatpush1.msra.mxu0 %v1365
    %1378 = vmatprep.subr.mxu0 0.0
    %1379 = vmatpush1.msra.mxu0 %v1366
    %1380 = vmatprep.subr.mxu0 0.0
    %1381 = vmatpush1.msra.mxu0 %v1367
    %1382 = vmatprep.subr.mxu0 0.0
    %1383 = vmatpush1.msra.mxu0 %v1368
    %1384 = vmatprep.subr.mxu0 0.0
    %1385 = vmatpush1.msra.mxu0 0.0
    %1386 = vmatprep.subr.mxu0 0.0
    %1387 = vmatpush1.msra.mxu0 0.0
    %1388 = vmatprep.subr.mxu0 0.0
    %1389 = vmatpush1.msra.mxu0 0.0
    %1390 = vmatprep.subr.mxu0 0.0
    %1391 = vmatpush1.msra.mxu0 0.0
    %1392 = vmatprep.subr.mxu0 0.0
    %1393 = vmatpush1.msra.mxu0 0.0
    %1394 = vmatprep.subr.mxu0 0.0
    %1395 = vmatpush1.msra.mxu0 0.0
    %1396 = vmatprep.subr.mxu0 0.0
    %1397 = vmatpush1.msra.mxu0 0.0
    %1398 = vmatprep.subr.mxu0 0.0
    %1399 = vmatpush1.msra.mxu0 0.0
    %1400 = vmatprep.subr.mxu0 0.0
    %1401 = vmatpush1.msra.mxu0 0.0
    %1402 = vmatprep.subr.mxu0 0.0
    %1403 = vmatpush1.msra.mxu0 0.0
    %1404 = vmatprep.subr.mxu0 0.0
    %1405 = vmatpush1.msra.mxu0 0.0
    %1406 = vmatprep.subr.mxu0 0.0
    %1407 = vmatpush1.msra.mxu0 0.0
    %1408 = vmatprep.subr.mxu0 0.0
    %1409 = vmatpush1.msra.mxu0 0.0
    %1410 = vmatprep.subr.mxu0 0.0
    %1411 = vmatpush1.msra.mxu0 0.0
    %1412 = vmatprep.subr.mxu0 0.0
    %1413 = vmatpush1.msra.mxu0 0.0
    %1414 = vmatprep.subr.mxu0 0.0
    %1415 = vmatpush1.msra.mxu0 0.0
    %1416 = vmatprep.subr.mxu0 0.0
    %1417 = vmatpush1.msra.mxu0 0.0
    %1418 = vmatprep.subr.mxu0 0.0
    %1419 = vmatpush1.msra.mxu0 0.0
    %1420 = vmatprep.subr.mxu0 0.0
    %1421 = vmatpush1.msra.mxu0 0.0
    %1422 = vmatprep.subr.mxu0 0.0
    %1423 = vmatpush1.msra.mxu0 0.0
    %1424 = vmatprep.subr.mxu0 0.0
    %1425 = vmatpush1.msra.mxu0 0.0
    %1426 = vmatprep.subr.mxu0 0.0
    %1427 = vmatpush1.msra.mxu0 0.0
    %1428 = vmatprep.subr.mxu0 0.0
    %1429 = vmatpush1.msra.mxu0 0.0
    %1430 = vmatprep.subr.mxu0 0.0
    %1431 = vmatpush1.msra.mxu0 0.0
    %1432 = vmatprep.subr.mxu0 0.0
    %1433 = vmatpush1.msra.mxu0 0.0
    %1434 = vmatprep.subr.mxu0 0.0
    %1435 = vmatpush1.msra.mxu0 0.0
    %1436 = vmatprep.subr.mxu0 0.0
    %1437 = vmatpush1.msra.mxu0 0.0
    %1438 = vmatprep.subr.mxu0 0.0
    %1439 = vmatpush1.msra.mxu0 0.0
    %1440 = vmatprep.mubr.f32.mxu0 0.0
    %1441 = vmatmul.mubr.f32.gmra.mrb[0].mxu0 %v1374
    %v1442 = vpop.f32.mrb[0].mxu0
    %v1443 = vadd.f32 0.0, %v1442
    %v1444 = vpop.f32.mrb[0].mxu0
    %1445 = vdwg.mxu0
    %v1446 = vadd.f32 %v1371, %v1443
    %v1447 = vxor.u32 %v1446, 2147483648
    %v1448 = vmul.f32 %v1447, 1.442695
    %v1449 = vpow.pop %v1448
    %v1450 = vadd.f32 %v1449, 1.0
    %v1451 = vrcp.pop %v1450
    %v1452 = vmul.f32 1.0, %v1451
    %v1453 = vtanh.pop %v1446
    %v1454 = vld [vmem:[#allocation5] sm:$0xff]
    %1456 = vrot.lane.b32.xlu0 %v1454, 32
    %v1457 = vpop.permute.xlu0 %1456
    %v1459 = vmul.f32 %v1452, %v1457
    %1461 = vrot.lane.b32.xlu0 %v1453, 64
    %v1462 = vpop.permute.xlu0 %1461
    %v1464 = vmul.f32 %v1452, %v1462
    %1466 = vrot.lane.b32.xlu0 %v1464, 32
    %v1467 = vpop.permute.xlu0 %1466
    %v1469 = vadd.f32 %v1459, %v1467
    %v1470 = vtanh.pop %v1469
    %1472 = vrot.lane.b32.xlu0 %v1470, 64
    %v1473 = vpop.permute.xlu0 %1472
    %v1475 = vmul.f32 %v1452, %v1473
    %1477 = vrot.lane.b32.xlu0 %v1469, 96
    %v1478 = vpop.permute.xlu0 %1477
    %1480 = vst.msk [vmem:[#allocation5] sm:$0xff] %vm274, %v1478
    %1482 = vrot.lane.b32.xlu0 %v1475, 32
    %v1483 = vpop.permute.xlu0 %1482
    %1485 = vst.msk [vmem:[#allocation4] sm:$0xff] %vm274, %v1483
    %v1486 = vld [vmem:[#allocation2 + $0x8] sm:$0xff]
    %v1487 = vld [vmem:[#allocation4] sm:$0xff]
    %v1489 = vsel %vm274, %v1487, 0
    %1491 = vmatprep.subr.mxu0 0.0
    %1492 = vmatpush1.msra.mxu0 %v1365
    %1493 = vmatprep.subr.mxu0 0.0
    %1494 = vmatpush1.msra.mxu0 %v1366
    %1495 = vmatprep.subr.mxu0 0.0
    %1496 = vmatpush1.msra.mxu0 %v1367
    %1497 = vmatprep.subr.mxu0 0.0
    %1498 = vmatpush1.msra.mxu0 %v1368
    %1499 = vmatprep.subr.mxu0 0.0
    %1500 = vmatpush1.msra.mxu0 0.0
    %1501 = vmatprep.subr.mxu0 0.0
    %1502 = vmatpush1.msra.mxu0 0.0
    %1503 = vmatprep.subr.mxu0 0.0
    %1504 = vmatpush1.msra.mxu0 0.0
    %1505 = vmatprep.subr.mxu0 0.0
    %1506 = vmatpush1.msra.mxu0 0.0
    %1507 = vmatprep.subr.mxu0 0.0
    %1508 = vmatpush1.msra.mxu0 0.0
    %1509 = vmatprep.subr.mxu0 0.0
    %1510 = vmatpush1.msra.mxu0 0.0
    %1511 = vmatprep.subr.mxu0 0.0
    %1512 = vmatpush1.msra.mxu0 0.0
    %1513 = vmatprep.subr.mxu0 0.0
    %1514 = vmatpush1.msra.mxu0 0.0
    %1515 = vmatprep.subr.mxu0 0.0
    %1516 = vmatpush1.msra.mxu0 0.0
    %1517 = vmatprep.subr.mxu0 0.0
    %1518 = vmatpush1.msra.mxu0 0.0
    %1519 = vmatprep.subr.mxu0 0.0
    %1520 = vmatpush1.msra.mxu0 0.0
    %1521 = vmatprep.subr.mxu0 0.0
    %1522 = vmatpush1.msra.mxu0 0.0
    %1523 = vmatprep.subr.mxu0 0.0
    %1524 = vmatpush1.msra.mxu0 0.0
    %1525 = vmatprep.subr.mxu0 0.0
    %1526 = vmatpush1.msra.mxu0 0.0
    %1527 = vmatprep.subr.mxu0 0.0
    %1528 = vmatpush1.msra.mxu0 0.0
    %1529 = vmatprep.subr.mxu0 0.0
    %1530 = vmatpush1.msra.mxu0 0.0
    %1531 = vmatprep.subr.mxu0 0.0
    %1532 = vmatpush1.msra.mxu0 0.0
    %1533 = vmatprep.subr.mxu0 0.0
    %1534 = vmatpush1.msra.mxu0 0.0
    %1535 = vmatprep.subr.mxu0 0.0
    %1536 = vmatpush1.msra.mxu0 0.0
    %1537 = vmatprep.subr.mxu0 0.0
    %1538 = vmatpush1.msra.mxu0 0.0
    %1539 = vmatprep.subr.mxu0 0.0
    %1540 = vmatpush1.msra.mxu0 0.0
    %1541 = vmatprep.subr.mxu0 0.0
    %1542 = vmatpush1.msra.mxu0 0.0
    %1543 = vmatprep.subr.mxu0 0.0
    %1544 = vmatpush1.msra.mxu0 0.0
    %1545 = vmatprep.subr.mxu0 0.0
    %1546 = vmatpush1.msra.mxu0 0.0
    %1547 = vmatprep.subr.mxu0 0.0
    %1548 = vmatpush1.msra.mxu0 0.0
    %1549 = vmatprep.subr.mxu0 0.0
    %1550 = vmatpush1.msra.mxu0 0.0
    %1551 = vmatprep.subr.mxu0 0.0
    %1552 = vmatpush1.msra.mxu0 0.0
    %1553 = vmatprep.subr.mxu0 0.0
    %1554 = vmatpush1.msra.mxu0 0.0
    %1555 = vmatprep.mubr.f32.mxu0 0.0
    %1556 = vmatmul.mubr.f32.gmra.mrb[0].mxu0 %v1489
    %v1557 = vpop.f32.mrb[0].mxu0
    %v1558 = vadd.f32 0.0, %v1557
    %v1559 = vpop.f32.mrb[0].mxu0
    %1560 = vdwg.mxu0
    %v1561 = vadd.f32 %v1486, %v1558
    %v1562 = vxor.u32 %v1561, 2147483648
    %v1563 = vmul.f32 %v1562, 1.442695
    %v1564 = vpow.pop %v1563
    %v1565 = vadd.f32 %v1564, 1.0
    %v1566 = vrcp.pop %v1565
    %v1567 = vmul.f32 1.0, %v1566
    %v1568 = vtanh.pop %v1561
    %v1569 = vld [vmem:[#allocation5] sm:$0xff]
    %1571 = vrot.lane.b32.xlu0 %v1569, 32
    %v1572 = vpop.permute.xlu0 %1571
    %v1574 = vmul.f32 %v1567, %v1572
    %1576 = vrot.lane.b32.xlu0 %v1568, 64
    %v1577 = vpop.permute.xlu0 %1576
    %v1579 = vmul.f32 %v1567, %v1577
    %1581 = vrot.lane.b32.xlu0 %v1579, 32
    %v1582 = vpop.permute.xlu0 %1581
    %v1584 = vadd.f32 %v1574, %v1582
    %v1585 = vtanh.pop %v1584
    %1587 = vrot.lane.b32.xlu0 %v1585, 64
    %v1588 = vpop.permute.xlu0 %1587
    %v1590 = vmul.f32 %v1567, %v1588
    %1592 = vrot.lane.b32.xlu0 %v1584, 96
    %v1593 = vpop.permute.xlu0 %1592
    %1595 = vst.msk [vmem:[#allocation5] sm:$0xff] %vm274, %v1593
    %1597 = vrot.lane.b32.xlu0 %v1590, 32
    %v1598 = vpop.permute.xlu0 %1597
    %1600 = vst.msk [vmem:[#allocation4] sm:$0xff] %vm274, %v1598
    %v1601 = vld [vmem:[#allocation2 + $0x10] sm:$0xff]
    %v1602 = vld [vmem:[#allocation4] sm:$0xff]
    %v1604 = vsel %vm274, %v1602, 0
    %1606 = vmatprep.subr.mxu0 0.0
    %1607 = vmatpush1.msra.mxu0 %v1365
    %1608 = vmatprep.subr.mxu0 0.0
    %1609 = vmatpush1.msra.mxu0 %v1366
    %1610 = vmatprep.subr.mxu0 0.0
    %1611 = vmatpush1.msra.mxu0 %v1367
    %1612 = vmatprep.subr.mxu0 0.0
    %1613 = vmatpush1.msra.mxu0 %v1368
    %1614 = vmatprep.subr.mxu0 0.0
    %1615 = vmatpush1.msra.mxu0 0.0
    %1616 = vmatprep.subr.mxu0 0.0
    %1617 = vmatpush1.msra.mxu0 0.0
    %1618 = vmatprep.subr.mxu0 0.0
    %1619 = vmatpush1.msra.mxu0 0.0
    %1620 = vmatprep.subr.mxu0 0.0
    %1621 = vmatpush1.msra.mxu0 0.0
    %1622 = vmatprep.subr.mxu0 0.0
    %1623 = vmatpush1.msra.mxu0 0.0
    %1624 = vmatprep.subr.mxu0 0.0
    %1625 = vmatpush1.msra.mxu0 0.0
    %1626 = vmatprep.subr.mxu0 0.0
    %1627 = vmatpush1.msra.mxu0 0.0
    %1628 = vmatprep.subr.mxu0 0.0
    %1629 = vmatpush1.msra.mxu0 0.0
    %1630 = vmatprep.subr.mxu0 0.0
    %1631 = vmatpush1.msra.mxu0 0.0
    %1632 = vmatprep.subr.mxu0 0.0
    %1633 = vmatpush1.msra.mxu0 0.0
    %1634 = vmatprep.subr.mxu0 0.0
    %1635 = vmatpush1.msra.mxu0 0.0
    %1636 = vmatprep.subr.mxu0 0.0
    %1637 = vmatpush1.msra.mxu0 0.0
    %1638 = vmatprep.subr.mxu0 0.0
    %1639 = vmatpush1.msra.mxu0 0.0
    %1640 = vmatprep.subr.mxu0 0.0
    %1641 = vmatpush1.msra.mxu0 0.0
    %1642 = vmatprep.subr.mxu0 0.0
    %1643 = vmatpush1.msra.mxu0 0.0
    %1644 = vmatprep.subr.mxu0 0.0
    %1645 = vmatpush1.msra.mxu0 0.0
    %1646 = vmatprep.subr.mxu0 0.0
    %1647 = vmatpush1.msra.mxu0 0.0
    %1648 = vmatprep.subr.mxu0 0.0
    %1649 = vmatpush1.msra.mxu0 0.0
    %1650 = vmatprep.subr.mxu0 0.0
    %1651 = vmatpush1.msra.mxu0 0.0
    %1652 = vmatprep.subr.mxu0 0.0
    %1653 = vmatpush1.msra.mxu0 0.0
    %1654 = vmatprep.subr.mxu0 0.0
    %1655 = vmatpush1.msra.mxu0 0.0
    %1656 = vmatprep.subr.mxu0 0.0
    %1657 = vmatpush1.msra.mxu0 0.0
    %1658 = vmatprep.subr.mxu0 0.0
    %1659 = vmatpush1.msra.mxu0 0.0
    %1660 = vmatprep.subr.mxu0 0.0
    %1661 = vmatpush1.msra.mxu0 0.0
    %1662 = vmatprep.subr.mxu0 0.0
    %1663 = vmatpush1.msra.mxu0 0.0
    %1664 = vmatprep.subr.mxu0 0.0
    %1665 = vmatpush1.msra.mxu0 0.0
    %1666 = vmatprep.subr.mxu0 0.0
    %1667 = vmatpush1.msra.mxu0 0.0
    %1668 = vmatprep.subr.mxu0 0.0
    %1669 = vmatpush1.msra.mxu0 0.0
    %1670 = vmatprep.mubr.f32.mxu0 0.0
    %1671 = vmatmul.mubr.f32.gmra.mrb[0].mxu0 %v1604
    %v1672 = vpop.f32.mrb[0].mxu0
    %v1673 = vadd.f32 0.0, %v1672
    %v1674 = vpop.f32.mrb[0].mxu0
    %1675 = vdwg.mxu0
    %v1676 = vadd.f32 %v1601, %v1673
    %v1677 = vxor.u32 %v1676, 2147483648
    %v1678 = vmul.f32 %v1677, 1.442695
    %v1679 = vpow.pop %v1678
    %v1680 = vadd.f32 %v1679, 1.0
    %v1681 = vrcp.pop %v1680
    %v1682 = vmul.f32 1.0, %v1681
    %v1683 = vtanh.pop %v1676
    %v1684 = vld [vmem:[#allocation5] sm:$0xff]
    %1686 = vrot.lane.b32.xlu0 %v1684, 32
    %v1687 = vpop.permute.xlu0 %1686
    %v1689 = vmul.f32 %v1682, %v1687
    %1691 = vrot.lane.b32.xlu0 %v1683, 64
    %v1692 = vpop.permute.xlu0 %1691
    %v1694 = vmul.f32 %v1682, %v1692
    %1696 = vrot.lane.b32.xlu0 %v1694, 32
    %v1697 = vpop.permute.xlu0 %1696
    %v1699 = vadd.f32 %v1689, %v1697
    %v1700 = vtanh.pop %v1699
    %1702 = vrot.lane.b32.xlu0 %v1700, 64
    %v1703 = vpop.permute.xlu0 %1702
    %v1705 = vmul.f32 %v1682, %v1703
    %1707 = vrot.lane.b32.xlu0 %v1699, 96
    %v1708 = vpop.permute.xlu0 %1707
    %1710 = vst.msk [vmem:[#allocation5] sm:$0xff] %vm274, %v1708
    %1712 = vrot.lane.b32.xlu0 %v1705, 32
    %v1713 = vpop.permute.xlu0 %1712
    %1715 = vst.msk [vmem:[#allocation4] sm:$0xff] %vm274, %v1713
    %v1716 = vld [vmem:[#allocation2 + $0x18] sm:$0xff]
    %v1717 = vld [vmem:[#allocation4] sm:$0xff]
    %v1719 = vsel %vm274, %v1717, 0
    %1721 = vmatprep.subr.mxu0 0.0
    %1722 = vmatpush1.msra.mxu0 %v1365
    %1723 = vmatprep.subr.mxu0 0.0
    %1724 = vmatpush1.msra.mxu0 %v1366
    %1725 = vmatprep.subr.mxu0 0.0
    %1726 = vmatpush1.msra.mxu0 %v1367
    %1727 = vmatprep.subr.mxu0 0.0
    %1728 = vmatpush1.msra.mxu0 %v1368
    %1729 = vmatprep.subr.mxu0 0.0
    %1730 = vmatpush1.msra.mxu0 0.0
    %1731 = vmatprep.subr.mxu0 0.0
    %1732 = vmatpush1.msra.mxu0 0.0
    %1733 = vmatprep.subr.mxu0 0.0
    %1734 = vmatpush1.msra.mxu0 0.0
    %1735 = vmatprep.subr.mxu0 0.0
    %1736 = vmatpush1.msra.mxu0 0.0
    %1737 = vmatprep.subr.mxu0 0.0
    %1738 = vmatpush1.msra.mxu0 0.0
    %1739 = vmatprep.subr.mxu0 0.0
    %1740 = vmatpush1.msra.mxu0 0.0
    %1741 = vmatprep.subr.mxu0 0.0
    %1742 = vmatpush1.msra.mxu0 0.0
    %1743 = vmatprep.subr.mxu0 0.0
    %1744 = vmatpush1.msra.mxu0 0.0
    %1745 = vmatprep.subr.mxu0 0.0
    %1746 = vmatpush1.msra.mxu0 0.0
    %1747 = vmatprep.subr.mxu0 0.0
    %1748 = vmatpush1.msra.mxu0 0.0
    %1749 = vmatprep.subr.mxu0 0.0
    %1750 = vmatpush1.msra.mxu0 0.0
    %1751 = vmatprep.subr.mxu0 0.0
    %1752 = vmatpush1.msra.mxu0 0.0
    %1753 = vmatprep.subr.mxu0 0.0
    %1754 = vmatpush1.msra.mxu0 0.0
    %1755 = vmatprep.subr.mxu0 0.0
    %1756 = vmatpush1.msra.mxu0 0.0
    %1757 = vmatprep.subr.mxu0 0.0
    %1758 = vmatpush1.msra.mxu0 0.0
    %1759 = vmatprep.subr.mxu0 0.0
    %1760 = vmatpush1.msra.mxu0 0.0
    %1761 = vmatprep.subr.mxu0 0.0
    %1762 = vmatpush1.msra.mxu0 0.0
    %1763 = vmatprep.subr.mxu0 0.0
    %1764 = vmatpush1.msra.mxu0 0.0
    %1765 = vmatprep.subr.mxu0 0.0
    %1766 = vmatpush1.msra.mxu0 0.0
    %1767 = vmatprep.subr.mxu0 0.0
    %1768 = vmatpush1.msra.mxu0 0.0
    %1769 = vmatprep.subr.mxu0 0.0
    %1770 = vmatpush1.msra.mxu0 0.0
    %1771 = vmatprep.subr.mxu0 0.0
    %1772 = vmatpush1.msra.mxu0 0.0
    %1773 = vmatprep.subr.mxu0 0.0
    %1774 = vmatpush1.msra.mxu0 0.0
    %1775 = vmatprep.subr.mxu0 0.0
    %1776 = vmatpush1.msra.mxu0 0.0
    %1777 = vmatprep.subr.mxu0 0.0
    %1778 = vmatpush1.msra.mxu0 0.0
    %1779 = vmatprep.subr.mxu0 0.0
    %1780 = vmatpush1.msra.mxu0 0.0
    %1781 = vmatprep.subr.mxu0 0.0
    %1782 = vmatpush1.msra.mxu0 0.0
    %1783 = vmatprep.subr.mxu0 0.0
    %1784 = vmatpush1.msra.mxu0 0.0
    %1785 = vmatprep.mubr.f32.mxu0 0.0
    %1786 = vmatmul.mubr.f32.gmra.mrb[0].mxu0 %v1719
    %v1787 = vpop.f32.mrb[0].mxu0
    %v1788 = vadd.f32 0.0, %v1787
    %v1789 = vpop.f32.mrb[0].mxu0
    %1790 = vdwg.mxu0
    %v1791 = vadd.f32 %v1716, %v1788
    %v1792 = vxor.u32 %v1791, 2147483648
    %v1793 = vmul.f32 %v1792, 1.442695
    %v1794 = vpow.pop %v1793
    %v1795 = vadd.f32 %v1794, 1.0
    %v1796 = vrcp.pop %v1795
    %v1797 = vmul.f32 1.0, %v1796
    %v1798 = vtanh.pop %v1791
    %v1799 = vld [vmem:[#allocation5] sm:$0xff]
    %1801 = vrot.lane.b32.xlu0 %v1799, 32
    %v1802 = vpop.permute.xlu0 %1801
    %v1804 = vmul.f32 %v1797, %v1802
    %1806 = vrot.lane.b32.xlu0 %v1798, 64
    %v1807 = vpop.permute.xlu0 %1806
    %v1809 = vmul.f32 %v1797, %v1807
    %1811 = vrot.lane.b32.xlu0 %v1809, 32
    %v1812 = vpop.permute.xlu0 %1811
    %v1814 = vadd.f32 %v1804, %v1812
    %v1815 = vtanh.pop %v1814
    %1817 = vrot.lane.b32.xlu0 %v1815, 64
    %v1818 = vpop.permute.xlu0 %1817
    %v1820 = vmul.f32 %v1797, %v1818
    %1822 = vrot.lane.b32.xlu0 %v1814, 96
    %v1823 = vpop.permute.xlu0 %1822
    %1825 = vst.msk [vmem:[#allocation5] sm:$0xff] %vm274, %v1823
    %1827 = vrot.lane.b32.xlu0 %v1820, 32
    %v1828 = vpop.permute.xlu0 %1827
    %1830 = vst.msk [vmem:[#allocation4] sm:$0xff] %vm274, %v1828
    %v1831 = vld [vmem:[#allocation2 + $0x20] sm:$0xff]
    %v1832 = vld [vmem:[#allocation4] sm:$0xff]
    %v1834 = vsel %vm274, %v1832, 0
    %1836 = vmatprep.subr.mxu0 0.0
    %1837 = vmatpush1.msra.mxu0 %v1365
    %1838 = vmatprep.subr.mxu0 0.0
    %1839 = vmatpush1.msra.mxu0 %v1366
    %1840 = vmatprep.subr.mxu0 0.0
    %1841 = vmatpush1.msra.mxu0 %v1367
    %1842 = vmatprep.subr.mxu0 0.0
    %1843 = vmatpush1.msra.mxu0 %v1368
    %1844 = vmatprep.subr.mxu0 0.0
    %1845 = vmatpush1.msra.mxu0 0.0
    %1846 = vmatprep.subr.mxu0 0.0
    %1847 = vmatpush1.msra.mxu0 0.0
    %1848 = vmatprep.subr.mxu0 0.0
    %1849 = vmatpush1.msra.mxu0 0.0
    %1850 = vmatprep.subr.mxu0 0.0
    %1851 = vmatpush1.msra.mxu0 0.0
    %1852 = vmatprep.subr.mxu0 0.0
    %1853 = vmatpush1.msra.mxu0 0.0
    %1854 = vmatprep.subr.mxu0 0.0
    %1855 = vmatpush1.msra.mxu0 0.0
    %1856 = vmatprep.subr.mxu0 0.0
    %1857 = vmatpush1.msra.mxu0 0.0
    %1858 = vmatprep.subr.mxu0 0.0
    %1859 = vmatpush1.msra.mxu0 0.0
    %1860 = vmatprep.subr.mxu0 0.0
    %1861 = vmatpush1.msra.mxu0 0.0
    %1862 = vmatprep.subr.mxu0 0.0
    %1863 = vmatpush1.msra.mxu0 0.0
    %1864 = vmatprep.subr.mxu0 0.0
    %1865 = vmatpush1.msra.mxu0 0.0
    %1866 = vmatprep.subr.mxu0 0.0
    %1867 = vmatpush1.msra.mxu0 0.0
    %1868 = vmatprep.subr.mxu0 0.0
    %1869 = vmatpush1.msra.mxu0 0.0
    %1870 = vmatprep.subr.mxu0 0.0
    %1871 = vmatpush1.msra.mxu0 0.0
    %1872 = vmatprep.subr.mxu0 0.0
    %1873 = vmatpush1.msra.mxu0 0.0
    %1874 = vmatprep.subr.mxu0 0.0
    %1875 = vmatpush1.msra.mxu0 0.0
    %1876 = vmatprep.subr.mxu0 0.0
    %1877 = vmatpush1.msra.mxu0 0.0
    %1878 = vmatprep.subr.mxu0 0.0
    %1879 = vmatpush1.msra.mxu0 0.0
    %1880 = vmatprep.subr.mxu0 0.0
    %1881 = vmatpush1.msra.mxu0 0.0
    %1882 = vmatprep.subr.mxu0 0.0
    %1883 = vmatpush1.msra.mxu0 0.0
    %1884 = vmatprep.subr.mxu0 0.0
    %1885 = vmatpush1.msra.mxu0 0.0
    %1886 = vmatprep.subr.mxu0 0.0
    %1887 = vmatpush1.msra.mxu0 0.0
    %1888 = vmatprep.subr.mxu0 0.0
    %1889 = vmatpush1.msra.mxu0 0.0
    %1890 = vmatprep.subr.mxu0 0.0
    %1891 = vmatpush1.msra.mxu0 0.0
    %1892 = vmatprep.subr.mxu0 0.0
    %1893 = vmatpush1.msra.mxu0 0.0
    %1894 = vmatprep.subr.mxu0 0.0
    %1895 = vmatpush1.msra.mxu0 0.0
    %1896 = vmatprep.subr.mxu0 0.0
    %1897 = vmatpush1.msra.mxu0 0.0
    %1898 = vmatprep.subr.mxu0 0.0
    %1899 = vmatpush1.msra.mxu0 0.0
    %1900 = vmatprep.mubr.f32.mxu0 0.0
    %1901 = vmatmul.mubr.f32.gmra.mrb[0].mxu0 %v1834
    %v1902 = vpop.f32.mrb[0].mxu0
    %v1903 = vadd.f32 0.0, %v1902
    %v1904 = vpop.f32.mrb[0].mxu0
    %1905 = vdwg.mxu0
    %v1906 = vadd.f32 %v1831, %v1903
    %v1907 = vxor.u32 %v1906, 2147483648
    %v1908 = vmul.f32 %v1907, 1.442695
    %v1909 = vpow.pop %v1908
    %v1910 = vadd.f32 %v1909, 1.0
    %v1911 = vrcp.pop %v1910
    %v1912 = vmul.f32 1.0, %v1911
    %v1913 = vtanh.pop %v1906
    %v1914 = vld [vmem:[#allocation5] sm:$0xff]
    %1916 = vrot.lane.b32.xlu0 %v1914, 32
    %v1917 = vpop.permute.xlu0 %1916
    %v1919 = vmul.f32 %v1912, %v1917
    %1921 = vrot.lane.b32.xlu0 %v1913, 64
    %v1922 = vpop.permute.xlu0 %1921
    %v1924 = vmul.f32 %v1912, %v1922
    %1926 = vrot.lane.b32.xlu0 %v1924, 32
    %v1927 = vpop.permute.xlu0 %1926
    %v1929 = vadd.f32 %v1919, %v1927
    %v1930 = vtanh.pop %v1929
    %1932 = vrot.lane.b32.xlu0 %v1930, 64
    %v1933 = vpop.permute.xlu0 %1932
    %v1935 = vmul.f32 %v1912, %v1933
    %1937 = vrot.lane.b32.xlu0 %v1929, 96
    %v1938 = vpop.permute.xlu0 %1937
    %1940 = vst.msk [vmem:[#allocation5] sm:$0xff] %vm274, %v1938
    %1942 = vrot.lane.b32.xlu0 %v1935, 32
    %v1943 = vpop.permute.xlu0 %1942
    %1945 = vst.msk [vmem:[#allocation4] sm:$0xff] %vm274, %v1943
    %v1946 = vld [vmem:[#allocation2 + $0x28] sm:$0xff]
    %v1947 = vld [vmem:[#allocation4] sm:$0xff]
    %v1949 = vsel %vm274, %v1947, 0
    %1951 = vmatprep.subr.mxu0 0.0
    %1952 = vmatpush1.msra.mxu0 %v1365
    %1953 = vmatprep.subr.mxu0 0.0
    %1954 = vmatpush1.msra.mxu0 %v1366
    %1955 = vmatprep.subr.mxu0 0.0
    %1956 = vmatpush1.msra.mxu0 %v1367
    %1957 = vmatprep.subr.mxu0 0.0
    %1958 = vmatpush1.msra.mxu0 %v1368
    %1959 = vmatprep.subr.mxu0 0.0
    %1960 = vmatpush1.msra.mxu0 0.0
    %1961 = vmatprep.subr.mxu0 0.0
    %1962 = vmatpush1.msra.mxu0 0.0
    %1963 = vmatprep.subr.mxu0 0.0
    %1964 = vmatpush1.msra.mxu0 0.0
    %1965 = vmatprep.subr.mxu0 0.0
    %1966 = vmatpush1.msra.mxu0 0.0
    %1967 = vmatprep.subr.mxu0 0.0
    %1968 = vmatpush1.msra.mxu0 0.0
    %1969 = vmatprep.subr.mxu0 0.0
    %1970 = vmatpush1.msra.mxu0 0.0
    %1971 = vmatprep.subr.mxu0 0.0
    %1972 = vmatpush1.msra.mxu0 0.0
    %1973 = vmatprep.subr.mxu0 0.0
    %1974 = vmatpush1.msra.mxu0 0.0
    %1975 = vmatprep.subr.mxu0 0.0
    %1976 = vmatpush1.msra.mxu0 0.0
    %1977 = vmatprep.subr.mxu0 0.0
    %1978 = vmatpush1.msra.mxu0 0.0
    %1979 = vmatprep.subr.mxu0 0.0
    %1980 = vmatpush1.msra.mxu0 0.0
    %1981 = vmatprep.subr.mxu0 0.0
    %1982 = vmatpush1.msra.mxu0 0.0
    %1983 = vmatprep.subr.mxu0 0.0
    %1984 = vmatpush1.msra.mxu0 0.0
    %1985 = vmatprep.subr.mxu0 0.0
    %1986 = vmatpush1.msra.mxu0 0.0
    %1987 = vmatprep.subr.mxu0 0.0
    %1988 = vmatpush1.msra.mxu0 0.0
    %1989 = vmatprep.subr.mxu0 0.0
    %1990 = vmatpush1.msra.mxu0 0.0
    %1991 = vmatprep.subr.mxu0 0.0
    %1992 = vmatpush1.msra.mxu0 0.0
    %1993 = vmatprep.subr.mxu0 0.0
    %1994 = vmatpush1.msra.mxu0 0.0
    %1995 = vmatprep.subr.mxu0 0.0
    %1996 = vmatpush1.msra.mxu0 0.0
    %1997 = vmatprep.subr.mxu0 0.0
    %1998 = vmatpush1.msra.mxu0 0.0
    %1999 = vmatprep.subr.mxu0 0.0
    %2000 = vmatpush1.msra.mxu0 0.0
    %2001 = vmatprep.subr.mxu0 0.0
    %2002 = vmatpush1.msra.mxu0 0.0
    %2003 = vmatprep.subr.mxu0 0.0
    %2004 = vmatpush1.msra.mxu0 0.0
    %2005 = vmatprep.subr.mxu0 0.0
    %2006 = vmatpush1.msra.mxu0 0.0
    %2007 = vmatprep.subr.mxu0 0.0
    %2008 = vmatpush1.msra.mxu0 0.0
    %2009 = vmatprep.subr.mxu0 0.0
    %2010 = vmatpush1.msra.mxu0 0.0
    %2011 = vmatprep.subr.mxu0 0.0
    %2012 = vmatpush1.msra.mxu0 0.0
    %2013 = vmatprep.subr.mxu0 0.0
    %2014 = vmatpush1.msra.mxu0 0.0
    %2015 = vmatprep.mubr.f32.mxu0 0.0
    %2016 = vmatmul.mubr.f32.gmra.mrb[0].mxu0 %v1949
    %v2017 = vpop.f32.mrb[0].mxu0
    %v2018 = vadd.f32 0.0, %v2017
    %v2019 = vpop.f32.mrb[0].mxu0
    %2020 = vdwg.mxu0
    %v2021 = vadd.f32 %v1946, %v2018
    %v2022 = vxor.u32 %v2021, 2147483648
    %v2023 = vmul.f32 %v2022, 1.442695
    %v2024 = vpow.pop %v2023
    %v2025 = vadd.f32 %v2024, 1.0
    %v2026 = vrcp.pop %v2025
    %v2027 = vmul.f32 1.0, %v2026
    %v2028 = vtanh.pop %v2021
    %v2029 = vld [vmem:[#allocation5] sm:$0xff]
    %2031 = vrot.lane.b32.xlu0 %v2029, 32
    %v2032 = vpop.permute.xlu0 %2031
    %v2034 = vmul.f32 %v2027, %v2032
    %2036 = vrot.lane.b32.xlu0 %v2028, 64
    %v2037 = vpop.permute.xlu0 %2036
    %v2039 = vmul.f32 %v2027, %v2037
    %2041 = vrot.lane.b32.xlu0 %v2039, 32
    %v2042 = vpop.permute.xlu0 %2041
    %v2044 = vadd.f32 %v2034, %v2042
    %v2045 = vtanh.pop %v2044
    %2047 = vrot.lane.b32.xlu0 %v2045, 64
    %v2048 = vpop.permute.xlu0 %2047
    %v2050 = vmul.f32 %v2027, %v2048
    %2052 = vrot.lane.b32.xlu0 %v2044, 96
    %v2053 = vpop.permute.xlu0 %2052
    %2055 = vst.msk [vmem:[#allocation5] sm:$0xff] %vm274, %v2053
    %2057 = vrot.lane.b32.xlu0 %v2050, 32
    %v2058 = vpop.permute.xlu0 %2057
    %2060 = vst.msk [vmem:[#allocation4] sm:$0xff] %vm274, %v2058
    %v2061 = vld [vmem:[#allocation2 + $0x30] sm:$0xff]
    %v2062 = vld [vmem:[#allocation4] sm:$0xff]
    %v2064 = vsel %vm274, %v2062, 0
    %2066 = vmatprep.subr.mxu0 0.0
    %2067 = vmatpush1.msra.mxu0 %v1365
    %2068 = vmatprep.subr.mxu0 0.0
    %2069 = vmatpush1.msra.mxu0 %v1366
    %2070 = vmatprep.subr.mxu0 0.0
    %2071 = vmatpush1.msra.mxu0 %v1367
    %2072 = vmatprep.subr.mxu0 0.0
    %2073 = vmatpush1.msra.mxu0 %v1368
    %2074 = vmatprep.subr.mxu0 0.0
    %2075 = vmatpush1.msra.mxu0 0.0
    %2076 = vmatprep.subr.mxu0 0.0
    %2077 = vmatpush1.msra.mxu0 0.0
    %2078 = vmatprep.subr.mxu0 0.0
    %2079 = vmatpush1.msra.mxu0 0.0
    %2080 = vmatprep.subr.mxu0 0.0
    %2081 = vmatpush1.msra.mxu0 0.0
    %2082 = vmatprep.subr.mxu0 0.0
    %2083 = vmatpush1.msra.mxu0 0.0
    %2084 = vmatprep.subr.mxu0 0.0
    %2085 = vmatpush1.msra.mxu0 0.0
    %2086 = vmatprep.subr.mxu0 0.0
    %2087 = vmatpush1.msra.mxu0 0.0
    %2088 = vmatprep.subr.mxu0 0.0
    %2089 = vmatpush1.msra.mxu0 0.0
    %2090 = vmatprep.subr.mxu0 0.0
    %2091 = vmatpush1.msra.mxu0 0.0
    %2092 = vmatprep.subr.mxu0 0.0
    %2093 = vmatpush1.msra.mxu0 0.0
    %2094 = vmatprep.subr.mxu0 0.0
    %2095 = vmatpush1.msra.mxu0 0.0
    %2096 = vmatprep.subr.mxu0 0.0
    %2097 = vmatpush1.msra.mxu0 0.0
    %2098 = vmatprep.subr.mxu0 0.0
    %2099 = vmatpush1.msra.mxu0 0.0
    %2100 = vmatprep.subr.mxu0 0.0
    %2101 = vmatpush1.msra.mxu0 0.0
    %2102 = vmatprep.subr.mxu0 0.0
    %2103 = vmatpush1.msra.mxu0 0.0
    %2104 = vmatprep.subr.mxu0 0.0
    %2105 = vmatpush1.msra.mxu0 0.0
    %2106 = vmatprep.subr.mxu0 0.0
    %2107 = vmatpush1.msra.mxu0 0.0
    %2108 = vmatprep.subr.mxu0 0.0
    %2109 = vmatpush1.msra.mxu0 0.0
    %2110 = vmatprep.subr.mxu0 0.0
    %2111 = vmatpush1.msra.mxu0 0.0
    %2112 = vmatprep.subr.mxu0 0.0
    %2113 = vmatpush1.msra.mxu0 0.0
    %2114 = vmatprep.subr.mxu0 0.0
    %2115 = vmatpush1.msra.mxu0 0.0
    %2116 = vmatprep.subr.mxu0 0.0
    %2117 = vmatpush1.msra.mxu0 0.0
    %2118 = vmatprep.subr.mxu0 0.0
    %2119 = vmatpush1.msra.mxu0 0.0
    %2120 = vmatprep.subr.mxu0 0.0
    %2121 = vmatpush1.msra.mxu0 0.0
    %2122 = vmatprep.subr.mxu0 0.0
    %2123 = vmatpush1.msra.mxu0 0.0
    %2124 = vmatprep.subr.mxu0 0.0
    %2125 = vmatpush1.msra.mxu0 0.0
    %2126 = vmatprep.subr.mxu0 0.0
    %2127 = vmatpush1.msra.mxu0 0.0
    %2128 = vmatprep.subr.mxu0 0.0
    %2129 = vmatpush1.msra.mxu0 0.0
    %2130 = vmatprep.mubr.f32.mxu0 0.0
    %2131 = vmatmul.mubr.f32.gmra.mrb[0].mxu0 %v2064
    %v2132 = vpop.f32.mrb[0].mxu0
    %v2133 = vadd.f32 0.0, %v2132
    %v2134 = vpop.f32.mrb[0].mxu0
    %2135 = vdwg.mxu0
    %v2136 = vadd.f32 %v2061, %v2133
    %v2137 = vxor.u32 %v2136, 2147483648
    %v2138 = vmul.f32 %v2137, 1.442695
    %v2139 = vpow.pop %v2138
    %v2140 = vadd.f32 %v2139, 1.0
    %v2141 = vrcp.pop %v2140
    %v2142 = vmul.f32 1.0, %v2141
    %v2143 = vtanh.pop %v2136
    %v2144 = vld [vmem:[#allocation5] sm:$0xff]
    %2146 = vrot.lane.b32.xlu0 %v2144, 32
    %v2147 = vpop.permute.xlu0 %2146
    %v2149 = vmul.f32 %v2142, %v2147
    %2151 = vrot.lane.b32.xlu0 %v2143, 64
    %v2152 = vpop.permute.xlu0 %2151
    %v2154 = vmul.f32 %v2142, %v2152
    %2156 = vrot.lane.b32.xlu0 %v2154, 32
    %v2157 = vpop.permute.xlu0 %2156
    %v2159 = vadd.f32 %v2149, %v2157
    %v2160 = vtanh.pop %v2159
    %2162 = vrot.lane.b32.xlu0 %v2160, 64
    %v2163 = vpop.permute.xlu0 %2162
    %v2165 = vmul.f32 %v2142, %v2163
    %2167 = vrot.lane.b32.xlu0 %v2159, 96
    %v2168 = vpop.permute.xlu0 %2167
    %2170 = vst.msk [vmem:[#allocation5] sm:$0xff] %vm274, %v2168
    %2172 = vrot.lane.b32.xlu0 %v2165, 32
    %v2173 = vpop.permute.xlu0 %2172
    %2175 = vst.msk [vmem:[#allocation4] sm:$0xff] %vm274, %v2173
    %v2176 = vld [vmem:[#allocation2 + $0x38] sm:$0xff]
    %v2177 = vld [vmem:[#allocation4] sm:$0xff]
    %v2179 = vsel %vm274, %v2177, 0
    %2181 = vmatprep.subr.mxu0 0.0
    %2182 = vmatpush1.msra.mxu0 %v1365
    %2183 = vmatprep.subr.mxu0 0.0
    %2184 = vmatpush1.msra.mxu0 %v1366
    %2185 = vmatprep.subr.mxu0 0.0
    %2186 = vmatpush1.msra.mxu0 %v1367
    %2187 = vmatprep.subr.mxu0 0.0
    %2188 = vmatpush1.msra.mxu0 %v1368
    %2189 = vmatprep.subr.mxu0 0.0
    %2190 = vmatpush1.msra.mxu0 0.0
    %2191 = vmatprep.subr.mxu0 0.0
    %2192 = vmatpush1.msra.mxu0 0.0
    %2193 = vmatprep.subr.mxu0 0.0
    %2194 = vmatpush1.msra.mxu0 0.0
    %2195 = vmatprep.subr.mxu0 0.0
    %2196 = vmatpush1.msra.mxu0 0.0
    %2197 = vmatprep.subr.mxu0 0.0
    %2198 = vmatpush1.msra.mxu0 0.0
    %2199 = vmatprep.subr.mxu0 0.0
    %2200 = vmatpush1.msra.mxu0 0.0
    %2201 = vmatprep.subr.mxu0 0.0
    %2202 = vmatpush1.msra.mxu0 0.0
    %2203 = vmatprep.subr.mxu0 0.0
    %2204 = vmatpush1.msra.mxu0 0.0
    %2205 = vmatprep.subr.mxu0 0.0
    %2206 = vmatpush1.msra.mxu0 0.0
    %2207 = vmatprep.subr.mxu0 0.0
    %2208 = vmatpush1.msra.mxu0 0.0
    %2209 = vmatprep.subr.mxu0 0.0
    %2210 = vmatpush1.msra.mxu0 0.0
    %2211 = vmatprep.subr.mxu0 0.0
    %2212 = vmatpush1.msra.mxu0 0.0
    %2213 = vmatprep.subr.mxu0 0.0
    %2214 = vmatpush1.msra.mxu0 0.0
    %2215 = vmatprep.subr.mxu0 0.0
    %2216 = vmatpush1.msra.mxu0 0.0
    %2217 = vmatprep.subr.mxu0 0.0
    %2218 = vmatpush1.msra.mxu0 0.0
    %2219 = vmatprep.subr.mxu0 0.0
    %2220 = vmatpush1.msra.mxu0 0.0
    %2221 = vmatprep.subr.mxu0 0.0
    %2222 = vmatpush1.msra.mxu0 0.0
    %2223 = vmatprep.subr.mxu0 0.0
    %2224 = vmatpush1.msra.mxu0 0.0
    %2225 = vmatprep.subr.mxu0 0.0
    %2226 = vmatpush1.msra.mxu0 0.0
    %2227 = vmatprep.subr.mxu0 0.0
    %2228 = vmatpush1.msra.mxu0 0.0
    %2229 = vmatprep.subr.mxu0 0.0
    %2230 = vmatpush1.msra.mxu0 0.0
    %2231 = vmatprep.subr.mxu0 0.0
    %2232 = vmatpush1.msra.mxu0 0.0
    %2233 = vmatprep.subr.mxu0 0.0
    %2234 = vmatpush1.msra.mxu0 0.0
    %2235 = vmatprep.subr.mxu0 0.0
    %2236 = vmatpush1.msra.mxu0 0.0
    %2237 = vmatprep.subr.mxu0 0.0
    %2238 = vmatpush1.msra.mxu0 0.0
    %2239 = vmatprep.subr.mxu0 0.0
    %2240 = vmatpush1.msra.mxu0 0.0
    %2241 = vmatprep.subr.mxu0 0.0
    %2242 = vmatpush1.msra.mxu0 0.0
    %2243 = vmatprep.subr.mxu0 0.0
    %2244 = vmatpush1.msra.mxu0 0.0
    %2245 = vmatprep.mubr.f32.mxu0 0.0
    %2246 = vmatmul.mubr.f32.gmra.mrb[0].mxu0 %v2179
    %v2247 = vpop.f32.mrb[0].mxu0
    %v2248 = vadd.f32 0.0, %v2247
    %v2249 = vpop.f32.mrb[0].mxu0
    %2250 = vdwg.mxu0
    %v2251 = vadd.f32 %v2176, %v2248
    %v2252 = vxor.u32 %v2251, 2147483648
    %v2253 = vmul.f32 %v2252, 1.442695
    %v2254 = vpow.pop %v2253
    %v2255 = vadd.f32 %v2254, 1.0
    %v2256 = vrcp.pop %v2255
    %v2257 = vmul.f32 1.0, %v2256
    %v2258 = vtanh.pop %v2251
    %v2259 = vld [vmem:[#allocation5] sm:$0xff]
    %2261 = vrot.lane.b32.xlu0 %v2259, 32
    %v2262 = vpop.permute.xlu0 %2261
    %v2264 = vmul.f32 %v2257, %v2262
    %2266 = vrot.lane.b32.xlu0 %v2258, 64
    %v2267 = vpop.permute.xlu0 %2266
    %v2269 = vmul.f32 %v2257, %v2267
    %2271 = vrot.lane.b32.xlu0 %v2269, 32
    %v2272 = vpop.permute.xlu0 %2271
    %v2274 = vadd.f32 %v2264, %v2272
    %v2275 = vtanh.pop %v2274
    %2277 = vrot.lane.b32.xlu0 %v2275, 64
    %v2278 = vpop.permute.xlu0 %2277
    %v2280 = vmul.f32 %v2257, %v2278
    %2282 = vrot.lane.b32.xlu0 %v2274, 96
    %v2283 = vpop.permute.xlu0 %2282
    %2285 = vst.msk [vmem:[#allocation5] sm:$0xff] %vm274, %v2283
    %2287 = vrot.lane.b32.xlu0 %v2280, 32
    %v2288 = vpop.permute.xlu0 %2287
    %2290 = vst.msk [vmem:[#allocation4] sm:$0xff] %vm274, %v2288
    %v2291 = vld [vmem:[#allocation4] sm:$0xff]
    %s2292 = scalar_lea.vmem %s7, 8
    %2293 = vst.msk [vmem:[%s2292] sm:$0xff] %vm274, %v2291
    %v2294 = vld [vmem:[#allocation5] sm:$0xff]
    %s2295 = scalar_lea.vmem %s8, 8
    %2296 = vst.msk [vmem:[%s2295] sm:$0xff] %vm274, %v2294
    // Predicated region
    $region38: #{_lambda_.1} parent=1 // pred_check
      _
    $region39: #{_lambda_.1} parent=1 // pred_check_branch
      %2298 = sbr.rel (0) target = $region41
    $region40: #{_lambda_.1} parent=1 // pred_region
      _
    $region41: #{_lambda_.1} parent=1 // pred_fallthru
      _
    // Predicated region
    $region42: #{_lambda_.1} parent=1 // pred_check
      _
    $region43: #{_lambda_.1} parent=1 // pred_check_branch
      %2300 = sbr.rel (0) target = $region45
    $region44: #{_lambda_.1} parent=1 // pred_region
      _
    $region45: #{_lambda_.1} parent=1 // pred_fallthru
      _
    // Predicated region
    $region46: #{_lambda_.1} parent=1 // pred_check
      _
    $region47: #{_lambda_.1} parent=1 // pred_check_branch
      %2302 = sbr.rel (0) target = $region49
    $region48: #{_lambda_.1} parent=1 // pred_region
      _
    $region49: #{_lambda_.1} parent=1 // pred_fallthru
      _
    // Predicated region
    $region50: #{_lambda_.1} parent=1 // pred_check
      _
    $region51: #{_lambda_.1} parent=1 // pred_check_branch
      %2304 = sbr.rel (0) target = $region53
    $region52: #{_lambda_.1} parent=1 // pred_region
      _
    $region53: #{_lambda_.1} parent=1 // pred_fallthru
      _
    %2305 = vsyncpa [#allocation7], 1
    %2306 = vsyncpa [#allocation9], 1

</llo_original>
